<compile_context>
chip_gen: v5e
topology: v5e:2x2
jax: 0.10.0
libtpu: 0.0.40
codegen_flags: <defaults>
</compile_context>

<pallas_src>
import math
from functools import partial

import jax
import jax.numpy as jnp
import numpy as np
from jax.experimental import pallas as pl
from jax.experimental.pallas import tpu as pltpu

# ----------------------------- synthetic config ------------------------------
NUM_HEADS = 2
NUM_CLASS = 3
CODE_SIZE = 7                      # ResidualCoder code size
NUM_DIR_BINS = 2
DIR_OFFSET = 0.78539
DIR_LIMIT_OFFSET = 0.0
ANCHOR_SIZES = [[3.9, 1.6, 1.56], [0.8, 0.6, 1.73], [1.76, 0.6, 1.73]]
ANCHOR_HEIGHTS = [-1.78, -0.6, -0.6]
ANCHOR_ROTATIONS = [0.0, math.pi / 2.0]
NUM_ANCHORS_PER_LOC = NUM_CLASS * len(ANCHOR_ROTATIONS)   # 6
POINT_CLOUD_RANGE = [0.0, -40.0, -3.0, 70.4, 40.0, 1.0]

A = NUM_ANCHORS_PER_LOC
C_CLS = A * NUM_CLASS          # 18
C_BOX = A * CODE_SIZE          # 42
C_VAR = A * CODE_SIZE          # 42
C_DIR = A * NUM_DIR_BINS       # 12
DIR_PERIOD = 2.0 * math.pi / NUM_DIR_BINS


def _round_up(x, m):
    return (x + m - 1) // m * m


# Weights are zero-padded to one full lane tile so every MXU dot is lane-aligned
# (matches the proven (T, Cin) x (Cin, 128k) configuration).
WPAD = _round_up(max(C_CLS, C_BOX, C_VAR), 128)


# ------------------------------ anchors / constants ---------------------------
def make_anchors(H, W):
    """Anchors laid out as pcdet: (H*W, A, 7) float32 (numpy, built once)."""
    x_min, y_min, _, x_max, y_max, _ = POINT_CLOUD_RANGE
    xs = np.linspace(x_min, x_max, W, dtype=np.float32)     # along W (nx)
    ys = np.linspace(y_min, y_max, H, dtype=np.float32)     # along H (ny)
    yy, xx = np.meshgrid(ys, xs, indexing="ij")              # (H, W)
    per_loc = []
    for size, height in zip(ANCHOR_SIZES, ANCHOR_HEIGHTS):
        for rot in ANCHOR_ROTATIONS:
            a = np.stack(
                [
                    xx, yy,
                    np.full((H, W), height, np.float32),
                    np.full((H, W), size[0], np.float32),
                    np.full((H, W), size[1], np.float32),
                    np.full((H, W), size[2], np.float32),
                    np.full((H, W), rot, np.float32),
                ],
                axis=-1,
            )
            per_loc.append(a)
    anchors = np.stack(per_loc, axis=2).astype(np.float32)   # (H, W, A, 7)
    return anchors.reshape(H * W, A, CODE_SIZE)


def build_anchor_constants(H, W):
    """Hoisted decode constants.  ResidualCoder.decode_torch is folded into
         decoded = where(sel==1, exp(raw) * amul, raw * amul + aadd)
       followed by the direction snap on sel==2 (rotation) columns."""
    anc = make_anchors(H, W)                                  # (HW, A, 7)
    xa, ya, za = anc[..., 0], anc[..., 1], anc[..., 2]
    dxa, dya, dza = anc[..., 3], anc[..., 4], anc[..., 5]
    ra = anc[..., 6]
    diag = np.sqrt(dxa * dxa + dya * dya)                     # diagonal folded in
    amul = np.stack([diag, diag, dza, dxa, dya, dza, np.ones_like(ra)], axis=-1)
    aadd = np.stack([xa, ya, za, np.zeros_like(dxa), np.zeros_like(dya),
                     np.zeros_like(dza), ra], axis=-1)
    sel = np.tile(np.array([0, 0, 0, 1, 1, 1, 2], np.int32), A)[None, :]   # (1, 42)
    HW = H * W
    return (jnp.asarray(amul.reshape(HW, C_BOX)),
            jnp.asarray(aadd.reshape(HW, C_BOX)),
            jnp.asarray(sel))


# ------------------------------ param init / packing --------------------------
def init_params(key, in_ch):
    params = []
    pi = 0.01
    for _ in range(NUM_HEADS):
        key, k1, k2, k3, k4 = jax.random.split(key, 5)
        params.append({
            "w_cls": jax.random.normal(k1, (in_ch, C_CLS), jnp.float32) * 0.01,
            "b_cls": jnp.full((C_CLS,), -math.log((1 - pi) / pi), jnp.float32),
            "w_box": jax.random.normal(k2, (in_ch, C_BOX), jnp.float32) * 0.001,
            "b_box": jnp.zeros((C_BOX,), jnp.float32),
            "w_var": jax.random.normal(k3, (in_ch, C_VAR), jnp.float32) * 0.001,
            "b_var": jnp.zeros((C_VAR,), jnp.float32),
            "w_dir": jax.random.normal(k4, (in_ch, C_DIR), jnp.float32) * 0.01,
            "b_dir": jnp.zeros((C_DIR,), jnp.float32),
        })
    return params


def pack_params(params, matmul_dtype):
    """Stack per-head conv weights into kernel-friendly, lane-padded arrays (once)."""
    def stack(name):
        return jnp.stack([p[name] for p in params], axis=0)

    def pad_w(w):                                   # (NH, C, k) -> (NH, C, WPAD)
        return jnp.pad(w, ((0, 0), (0, 0), (0, WPAD - w.shape[-1]))).astype(matmul_dtype)

    # Direction head folded to a per-anchor logit difference (argmax over 2 bins ==
    # sign of logit1-logit0), expanded to one column per box coordinate so the
    # rotation snap needs no in-kernel lane reshuffling.
    w_dir = stack("w_dir")                           # (NH, C, A*2), anchor-major
    b_dir = stack("b_dir")                           # (NH, A*2)
    wd = w_dir[:, :, 1::2] - w_dir[:, :, 0::2]       # (NH, C, A)
    bd = b_dir[:, 1::2] - b_dir[:, 0::2]             # (NH, A)
    w_dird = jnp.repeat(wd, CODE_SIZE, axis=2)       # (NH, C, 42)
    b_dird = jnp.repeat(bd, CODE_SIZE, axis=1)       # (NH, 42)

    return {
        "w_cls": pad_w(stack("w_cls")), "b_cls": stack("b_cls")[:, None, :],
        "w_box": pad_w(stack("w_box")), "b_box": stack("b_box")[:, None, :],
        "w_var": pad_w(stack("w_var")), "b_var": stack("b_var")[:, None, :],
        "w_dird": pad_w(w_dird),        "b_dird": b_dird[:, None, :],
    }


def _pick_matmul_dtype():
    """bf16 MXU operands on bf16-native generations (v6e/v7x) halve the activation
    read; keep f32 on v5e & older.  Everything after the MXU stays f32 everywhere."""
    try:
        kind = jax.devices()[0].device_kind.lower()
    except Exception:
        return jnp.float32
    if any(t in kind for t in ("v6", "v7", "7x")):
        return jnp.bfloat16
    return jnp.float32


# ------------------------------ Pallas kernel ---------------------------------
def _mimo_head_kernel(x_ref, amul_ref, aadd_ref, sel_ref,
                      wc_ref, bc_ref, wb_ref, bb_ref,
                      wv_ref, bv_ref, wd_ref, bd_ref,
                      *out_refs):
    x = x_ref[0]                                          # (T, C)  matmul dtype
    amul = amul_ref[...]                                  # (T, 42) f32 decode multiplier
    aadd = aadd_ref[...]                                  # (T, 42) f32 decode offset
    sel = jnp.broadcast_to(sel_ref[...], amul.shape)      # (T, 42) column kind
    is_dim = sel == 1                                     # exp-decoded size columns
    is_rot = sel == 2                                     # rotation columns

    def conv(w_ref, b_ref, width, h):
        # fused 1x1 conv: lane-aligned MXU matmul, f32 accumulate, then crop + bias
        y = jnp.dot(x, w_ref[h], preferred_element_type=jnp.float32)
        return y[:, :width] + b_ref[h]

    for h in range(NUM_HEADS):
        cls = conv(wc_ref, bc_ref, C_CLS, h)              # (T, 18) raw logits
        box_raw = conv(wb_ref, bb_ref, C_BOX, h)          # (T, 42)
        var_raw = conv(wv_ref, bv_ref, C_VAR, h)          # (T, 42) log-variance
        dird = conv(wd_ref, bd_ref, C_BOX, h)             # (T, 42) dir logit1 - logit0

        # ResidualCoder.decode_torch folded into mul/add/exp form (EUP exp, VPU rest)
        decoded = jnp.where(is_dim, jnp.exp(box_raw) * amul, box_raw * amul + aadd)

        # Direction-bin snap: argmax over 2 bins == (logit1 - logit0 > 0).
        label = (dird > 0).astype(jnp.float32)
        val = decoded - DIR_OFFSET
        dir_rot = val - jnp.floor(val / DIR_PERIOD + DIR_LIMIT_OFFSET) * DIR_PERIOD
        snapped = dir_rot + DIR_OFFSET + DIR_PERIOD * label
        box = jnp.where(is_rot, snapped, decoded)

        out_refs[3 * h + 0][0] = cls
        out_refs[3 * h + 1][0] = box
        out_refs[3 * h + 2][0] = jnp.exp(var_raw)


@partial(jax.jit, static_argnames=("tile_hw",))
def _mimo_heads_core(packed, anchor_consts, x_nchw, *, tile_hw=512):
    """Fused MIMO heads: returns ((cls, box, var) per head) in final shapes."""
    B, C, H, W = x_nchw.shape
    HW = H * W
    amul, aadd, sel = anchor_consts

    # NCHW -> NHWC rows feeding the fused 1x1-conv kernel.
    # TODO(synk): fuse this transpose into the kernel (NCHW blocks + leading-axis
    # contraction) to also save the activation-sized transpose round trip.
    x_rows = jnp.transpose(x_nchw, (0, 2, 3, 1)).reshape(B, HW, C)
    x_rows = x_rows.astype(packed["w_cls"].dtype)

    tile_hw = min(_round_up(tile_hw, 8), _round_up(HW, 8))
    hw_pad = _round_up(HW, tile_hw)
    if hw_pad != HW:
        pad = hw_pad - HW
        x_rows = jnp.pad(x_rows, ((0, 0), (0, pad), (0, 0)))
        amul = jnp.pad(amul, ((0, pad), (0, 0)), constant_values=1.0)
        aadd = jnp.pad(aadd, ((0, pad), (0, 0)))
    n_t = hw_pad // tile_hw
    grid = (n_t, B)   # batch innermost: anchor tiles are revisited -> their DMA is skipped

    xmap = lambda t, b: (b, t, 0)
    amap = lambda t, b: (t, 0)
    cmap = lambda t, b: (0, 0)
    wmap = lambda t, b: (0, 0, 0)

    in_specs = [
        pl.BlockSpec((1, tile_hw, C), xmap),
        pl.BlockSpec((tile_hw, C_BOX), amap),
        pl.BlockSpec((tile_hw, C_BOX), amap),
        pl.BlockSpec((1, C_BOX), cmap),
        pl.BlockSpec((NUM_HEADS, C, WPAD), wmap),
        pl.BlockSpec((NUM_HEADS, 1, C_CLS), wmap),
        pl.BlockSpec((NUM_HEADS, C, WPAD), wmap),
        pl.BlockSpec((NUM_HEADS, 1, C_BOX), wmap),
        pl.BlockSpec((NUM_HEADS, C, WPAD), wmap),
        pl.BlockSpec((NUM_HEADS, 1, C_VAR), wmap),
        pl.BlockSpec((NUM_HEADS, C, WPAD), wmap),
        pl.BlockSpec((NUM_HEADS, 1, C_BOX), wmap),
    ]
    out_shapes, out_specs = [], []
    for _ in range(NUM_HEADS):
        for k in (C_CLS, C_BOX, C_VAR):
            out_shapes.append(jax.ShapeDtypeStruct((B, hw_pad, k), jnp.float32))
            out_specs.append(pl.BlockSpec((1, tile_hw, k), xmap))

    # Per-step VMEM (double-buffered); only pass an explicit limit when the tile is
    # pushed past the v5e 16 MiB (or v7x 64 MiB total) scoped defaults.
    isz = x_rows.dtype.itemsize
    step_bytes = (tile_hw * C * isz
                  + 2 * tile_hw * C_BOX * 4
                  + 4 * NUM_HEADS * C * WPAD * isz
                  + NUM_HEADS * tile_hw * (C_CLS + C_BOX + C_VAR) * 4)
    vmem_bytes = 2 * step_bytes + (4 << 20)
    cparams = {"dimension_semantics": ("parallel", "parallel")}
    if vmem_bytes > (12 << 20):
        cparams["vmem_limit_bytes"] = int(min(vmem_bytes, 60 << 20))

    outs = pl.pallas_call(
        _mimo_head_kernel,
        out_shape=out_shapes,
        grid_spec=pltpu.PrefetchScalarGridSpec(
            num_scalar_prefetch=0,
            grid=grid,
            in_specs=in_specs,
            out_specs=out_specs,
        ),
        compiler_params=pltpu.CompilerParams(**cparams),
    )(x_rows, amul, aadd, sel,
      packed["w_cls"], packed["b_cls"], packed["w_box"], packed["b_box"],
      packed["w_var"], packed["b_var"], packed["w_dird"], packed["b_dird"])

    NA = HW * NUM_ANCHORS_PER_LOC
    final = []
    for h in range(NUM_HEADS):
        cls_o, box_o, var_o = outs[3 * h], outs[3 * h + 1], outs[3 * h + 2]
        if hw_pad != HW:
            cls_o, box_o, var_o = cls_o[:, :HW], box_o[:, :HW], var_o[:, :HW]
        # kernel outputs are laid out exactly like the final tensors -> metadata-only
        final.append((cls_o.reshape(B, NA, NUM_CLASS),
                      box_o.reshape(B, NA, CODE_SIZE),
                      var_o.reshape(B, NA, CODE_SIZE)))
    return tuple(final)


# ------------------------------- module forward --------------------------------
def anchor_head_mimo_forward(packed, anchor_consts, data_dict, *, tile_hw=512):
    x = data_dict["spatial_features_2d"]                 # (B, C, H, W), per-head batch
    per_head_bs = data_dict["batch_size"] // NUM_HEADS
    B = x.shape[0]
    assert B == per_head_bs
    # TODO(synk): training-time assign_targets / get_loss (and the per-head gt_boxes
    # index_select feeding it) is not implemented; this is the inference path only.
    heads = _mimo_heads_core(packed, anchor_consts, x, tile_hw=tile_hw)
    out_dict = dict(data_dict)
    for i, (cls_p, box_p, var_p) in enumerate(heads):
        sfx = "" if i == 0 else "_" + str(i)
        out_dict["batch_features" + sfx] = x
        out_dict["batch_cls_preds" + sfx] = cls_p
        out_dict["batch_box_preds" + sfx] = box_p
        out_dict["batch_var_preds" + sfx] = var_p
        out_dict["cls_preds_normalized" + sfx] = False
    return out_dict


# ------------------------------ pure-JAX reference -----------------------------
def limit_period(val, offset, period):
    return val - jnp.floor(val / period + offset) * period


def decode_boxes_ref(box_preds, anchors):
    xa, ya, za, dxa, dya, dza, ra = jnp.split(anchors, CODE_SIZE, axis=-1)
    xt, yt, zt, dxt, dyt, dzt, rt = jnp.split(box_preds, CODE_SIZE, axis=-1)
    diagonal = jnp.sqrt(dxa ** 2 + dya ** 2)
    xg = xt * diagonal + xa
    yg = yt * diagonal + ya
    zg = zt * dza + za
    dxg = jnp.exp(dxt) * dxa
    dyg = jnp.exp(dyt) * dya
    dzg = jnp.exp(dzt) * dza
    rg = rt + ra
    return jnp.concatenate([xg, yg, zg, dxg, dyg, dzg, rg], axis=-1)


def reference_forward(params, x, matmul_dtype):
    """Plain-JAX AnchorHeadSingleVAR prediction path (per head), for self-check."""
    B, C, H, W = x.shape
    NA = H * W * NUM_ANCHORS_PER_LOC
    anchors = jnp.asarray(make_anchors(H, W)).reshape(-1, CODE_SIZE)
    xr = jnp.transpose(x, (0, 2, 3, 1)).reshape(B * H * W, C).astype(matmul_dtype)
    outs = []
    for p in params:
        def conv(w, b):
            return jnp.dot(xr, w.astype(matmul_dtype),
                           preferred_element_type=jnp.float32) + b
        cls = conv(p["w_cls"], p["b_cls"]).reshape(B, NA, NUM_CLASS)
        box = conv(p["w_box"], p["b_box"]).reshape(B, NA, CODE_SIZE)
        var = conv(p["w_var"], p["b_var"]).reshape(B, NA, CODE_SIZE)
        dircls = conv(p["w_dir"], p["b_dir"]).reshape(B, NA, NUM_DIR_BINS)
        box = decode_boxes_ref(box, anchors[None])
        var = jnp.exp(var)
        dir_label = jnp.argmax(dircls, axis=-1).astype(jnp.float32)
        dir_rot = limit_period(box[..., 6] - DIR_OFFSET, DIR_LIMIT_OFFSET, DIR_PERIOD)
        box = box.at[..., 6].set(dir_rot + DIR_OFFSET + DIR_PERIOD * dir_label)
        outs.append((cls, box, var))
    return outs


# --------------------------------- main ----------------------------------------
if __name__ == "__main__":
    key = jax.random.PRNGKey(0)
    B, C, H, W = 2, 32, 16, 16                       # per-head batch, channels, spatial
    kx, kg, kp = jax.random.split(key, 3)
    x = jax.random.normal(kx, (B, C, H, W), jnp.float32)
    gt_boxes = jax.random.normal(kg, (NUM_HEADS * B, 5, 8), jnp.float32)
    params = init_params(kp, C)

    matmul_dtype = _pick_matmul_dtype()
    packed = pack_params(params, matmul_dtype)        # hoisted: packed/padded once
    anchor_consts = build_anchor_constants(H, W)      # hoisted: anchors + decode consts

    data_dict = {
        "spatial_features_2d": x,
        "gt_boxes": gt_boxes,
        "batch_size": NUM_HEADS * B,                  # MIMO total batch size
    }

    out = anchor_head_mimo_forward(packed, anchor_consts, data_dict, tile_hw=512)

    jax.block_until_ready(out["batch_cls_preds"])
    jax.block_until_ready(out["batch_box_preds"])
    jax.block_until_ready(out["batch_var_preds"])
    jax.block_until_ready(out["batch_box_preds_1"])

    # shape checks implied by the module
    NA = H * W * NUM_ANCHORS_PER_LOC
    assert out["batch_cls_preds"].shape == (B, NA, NUM_CLASS)
    assert out["batch_box_preds"].shape == (B, NA, CODE_SIZE)
    assert out["batch_var_preds"].shape == (B, NA, CODE_SIZE)
    assert out["batch_cls_preds_1"].shape == (B, NA, NUM_CLASS)
    assert out["batch_features"].shape == (B, C, H, W)
    assert out["cls_preds_normalized"] is False

    # numeric self-check against the pure-JAX reference of the same prediction path
    ref = reference_forward(params, x, matmul_dtype)
    for i in range(NUM_HEADS):
        sfx = "" if i == 0 else "_" + str(i)
        cls_r, box_r, var_r = ref[i]
        np.testing.assert_allclose(np.asarray(out["batch_cls_preds" + sfx]),
                                   np.asarray(cls_r), rtol=2e-2, atol=2e-2)
        np.testing.assert_allclose(np.asarray(out["batch_var_preds" + sfx]),
                                   np.asarray(var_r), rtol=2e-2, atol=2e-2)
        np.testing.assert_allclose(np.asarray(out["batch_box_preds" + sfx][..., :6]),
                                   np.asarray(box_r[..., :6]), rtol=2e-2, atol=2e-2)
        # rotation: allow the near-tie direction-bin flip (difference of exactly pi)
        dr = np.abs(np.asarray(out["batch_box_preds" + sfx][..., 6]) -
                    np.asarray(box_r[..., 6]))
        dr = np.minimum(dr, np.abs(dr - math.pi))
        assert float(dr.max()) < 2e-2

    print("KERNEL_OK")
</pallas_src>

<mosaic_0001>
module attributes {stable_mosaic.version = 11 : i64} {
  func.func @_mimo_head_kernel(%arg0: i32, %arg1: i32, %arg2: memref<1x256x32xf32, #tpu.memory_space<vmem>>, %arg3: memref<256x42xf32, #tpu.memory_space<vmem>>, %arg4: memref<256x42xf32, #tpu.memory_space<vmem>>, %arg5: memref<1x42xi32, #tpu.memory_space<vmem>>, %arg6: memref<2x32x128xf32, #tpu.memory_space<vmem>>, %arg7: memref<2x1x18xf32, #tpu.memory_space<vmem>>, %arg8: memref<2x32x128xf32, #tpu.memory_space<vmem>>, %arg9: memref<2x1x42xf32, #tpu.memory_space<vmem>>, %arg10: memref<2x32x128xf32, #tpu.memory_space<vmem>>, %arg11: memref<2x1x42xf32, #tpu.memory_space<vmem>>, %arg12: memref<2x32x128xf32, #tpu.memory_space<vmem>>, %arg13: memref<2x1x42xf32, #tpu.memory_space<vmem>>, %arg14: memref<1x256x18xf32, #tpu.memory_space<vmem>>, %arg15: memref<1x256x42xf32, #tpu.memory_space<vmem>>, %arg16: memref<1x256x42xf32, #tpu.memory_space<vmem>>, %arg17: memref<1x256x18xf32, #tpu.memory_space<vmem>>, %arg18: memref<1x256x42xf32, #tpu.memory_space<vmem>>, %arg19: memref<1x256x42xf32, #tpu.memory_space<vmem>>) attributes {dimension_semantics = [#tpu.dimension_semantics<parallel>, #tpu.dimension_semantics<parallel>], iteration_bounds = array<i64: 1, 2>, scalar_prefetch = 0 : i64, scratch_operands = 0 : i64, tpu.core_type = #tpu.core_type<tc>, window_params = [{transform_indices = @transform_0, window_bounds = array<i64: 1, 256, 32>}, {transform_indices = @transform_1, window_bounds = array<i64: 256, 42>}, {transform_indices = @transform_2, window_bounds = array<i64: 256, 42>}, {pipeline_mode = #tpu.pipeline_mode<synchronous>, transform_indices = @transform_3, window_bounds = array<i64: 1, 42>}, {pipeline_mode = #tpu.pipeline_mode<synchronous>, transform_indices = @transform_4, window_bounds = array<i64: 2, 32, 128>}, {pipeline_mode = #tpu.pipeline_mode<synchronous>, transform_indices = @transform_5, window_bounds = array<i64: 2, 1, 18>}, {pipeline_mode = #tpu.pipeline_mode<synchronous>, transform_indices = @transform_6, window_bounds = array<i64: 2, 32, 128>}, {pipeline_mode = #tpu.pipeline_mode<synchronous>, transform_indices = @transform_7, window_bounds = array<i64: 2, 1, 42>}, {pipeline_mode = #tpu.pipeline_mode<synchronous>, transform_indices = @transform_8, window_bounds = array<i64: 2, 32, 128>}, {pipeline_mode = #tpu.pipeline_mode<synchronous>, transform_indices = @transform_9, window_bounds = array<i64: 2, 1, 42>}, {pipeline_mode = #tpu.pipeline_mode<synchronous>, transform_indices = @transform_10, window_bounds = array<i64: 2, 32, 128>}, {pipeline_mode = #tpu.pipeline_mode<synchronous>, transform_indices = @transform_11, window_bounds = array<i64: 2, 1, 42>}, {transform_indices = @transform_12, window_bounds = array<i64: 1, 256, 18>}, {transform_indices = @transform_13, window_bounds = array<i64: 1, 256, 42>}, {transform_indices = @transform_14, window_bounds = array<i64: 1, 256, 42>}, {transform_indices = @transform_15, window_bounds = array<i64: 1, 256, 18>}, {transform_indices = @transform_16, window_bounds = array<i64: 1, 256, 42>}, {transform_indices = @transform_17, window_bounds = array<i64: 1, 256, 42>}]} {
    %c0 = arith.constant 0 : index
    %c0_0 = arith.constant 0 : index
    %c0_1 = arith.constant 0 : index
    %0 = vector.load %arg2[%c0, %c0_0, %c0_1] : memref<1x256x32xf32, #tpu.memory_space<vmem>>, vector<1x256x32xf32>
    %1 = vector.shape_cast %0 : vector<1x256x32xf32> to vector<256x32xf32>
    %c0_2 = arith.constant 0 : index
    %c0_3 = arith.constant 0 : index
    %2 = vector.load %arg3[%c0_2, %c0_3] : memref<256x42xf32, #tpu.memory_space<vmem>>, vector<256x42xf32>
    %c0_4 = arith.constant 0 : index
    %c0_5 = arith.constant 0 : index
    %3 = vector.load %arg4[%c0_4, %c0_5] : memref<256x42xf32, #tpu.memory_space<vmem>>, vector<256x42xf32>
    %c0_6 = arith.constant 0 : index
    %c0_7 = arith.constant 0 : index
    %4 = vector.load %arg5[%c0_6, %c0_7] : memref<1x42xi32, #tpu.memory_space<vmem>>, vector<1x42xi32>
    %5 = vector.shape_cast %4 : vector<1x42xi32> to vector<1x42xi32>
    %6 = vector.broadcast %5 : vector<1x42xi32> to vector<256x42xi32>
    %c1_i32 = arith.constant 1 : i32
    %7 = vector.broadcast %c1_i32 : i32 to vector<256x42xi32>
    %8 = arith.cmpi eq, %6, %7 : vector<256x42xi32>
    %c2_i32 = arith.constant 2 : i32
    %9 = vector.broadcast %c2_i32 : i32 to vector<256x42xi32>
    %10 = arith.cmpi eq, %6, %9 : vector<256x42xi32>
    %c0_8 = arith.constant 0 : index
    %c0_9 = arith.constant 0 : index
    %c0_10 = arith.constant 0 : index
    %11 = vector.load %arg6[%c0_8, %c0_9, %c0_10] : memref<2x32x128xf32, #tpu.memory_space<vmem>>, vector<1x32x128xf32>
    %12 = vector.shape_cast %11 : vector<1x32x128xf32> to vector<32x128xf32>
    %cst = arith.constant dense<0.000000e+00> : vector<256x128xf32>
    %13 = tpu.matmul %1, %12, %cst {dimension_numbers = #tpu.dot_dimension_numbers<[1], [0], [0], [1], [0, 0, 1, 1], [], []>} : vector<256x32xf32>, vector<32x128xf32>, vector<256x128xf32> -> vector<256x128xf32>
    %14 = vector.extract_strided_slice %13 {offsets = [0, 0], sizes = [256, 18], strides = [1, 1]} : vector<256x128xf32> to vector<256x18xf32>
    %c0_11 = arith.constant 0 : index
    %c0_12 = arith.constant 0 : index
    %c0_13 = arith.constant 0 : index
    %15 = vector.load %arg7[%c0_11, %c0_12, %c0_13] : memref<2x1x18xf32, #tpu.memory_space<vmem>>, vector<1x1x18xf32>
    %16 = vector.shape_cast %15 : vector<1x1x18xf32> to vector<1x18xf32>
    %17 = vector.broadcast %16 : vector<1x18xf32> to vector<256x18xf32>
    %18 = arith.addf %14, %17 : vector<256x18xf32>
    %c0_14 = arith.constant 0 : index
    %c0_15 = arith.constant 0 : index
    %c0_16 = arith.constant 0 : index
    %19 = vector.load %arg8[%c0_14, %c0_15, %c0_16] : memref<2x32x128xf32, #tpu.memory_space<vmem>>, vector<1x32x128xf32>
    %20 = vector.shape_cast %19 : vector<1x32x128xf32> to vector<32x128xf32>
    %cst_17 = arith.constant dense<0.000000e+00> : vector<256x128xf32>
    %21 = tpu.matmul %1, %20, %cst_17 {dimension_numbers = #tpu.dot_dimension_numbers<[1], [0], [0], [1], [0, 0, 1, 1], [], []>} : vector<256x32xf32>, vector<32x128xf32>, vector<256x128xf32> -> vector<256x128xf32>
    %22 = vector.extract_strided_slice %21 {offsets = [0, 0], sizes = [256, 42], strides = [1, 1]} : vector<256x128xf32> to vector<256x42xf32>
    %c0_18 = arith.constant 0 : index
    %c0_19 = arith.constant 0 : index
    %c0_20 = arith.constant 0 : index
    %23 = vector.load %arg9[%c0_18, %c0_19, %c0_20] : memref<2x1x42xf32, #tpu.memory_space<vmem>>, vector<1x1x42xf32>
    %24 = vector.shape_cast %23 : vector<1x1x42xf32> to vector<1x42xf32>
    %25 = vector.broadcast %24 : vector<1x42xf32> to vector<256x42xf32>
    %26 = arith.addf %22, %25 : vector<256x42xf32>
    %c0_21 = arith.constant 0 : index
    %c0_22 = arith.constant 0 : index
    %c0_23 = arith.constant 0 : index
    %27 = vector.load %arg10[%c0_21, %c0_22, %c0_23] : memref<2x32x128xf32, #tpu.memory_space<vmem>>, vector<1x32x128xf32>
    %28 = vector.shape_cast %27 : vector<1x32x128xf32> to vector<32x128xf32>
    %cst_24 = arith.constant dense<0.000000e+00> : vector<256x128xf32>
    %29 = tpu.matmul %1, %28, %cst_24 {dimension_numbers = #tpu.dot_dimension_numbers<[1], [0], [0], [1], [0, 0, 1, 1], [], []>} : vector<256x32xf32>, vector<32x128xf32>, vector<256x128xf32> -> vector<256x128xf32>
    %30 = vector.extract_strided_slice %29 {offsets = [0, 0], sizes = [256, 42], strides = [1, 1]} : vector<256x128xf32> to vector<256x42xf32>
    %c0_25 = arith.constant 0 : index
    %c0_26 = arith.constant 0 : index
    %c0_27 = arith.constant 0 : index
    %31 = vector.load %arg11[%c0_25, %c0_26, %c0_27] : memref<2x1x42xf32, #tpu.memory_space<vmem>>, vector<1x1x42xf32>
    %32 = vector.shape_cast %31 : vector<1x1x42xf32> to vector<1x42xf32>
    %33 = vector.broadcast %32 : vector<1x42xf32> to vector<256x42xf32>
    %34 = arith.addf %30, %33 : vector<256x42xf32>
    %c0_28 = arith.constant 0 : index
    %c0_29 = arith.constant 0 : index
    %c0_30 = arith.constant 0 : index
    %35 = vector.load %arg12[%c0_28, %c0_29, %c0_30] : memref<2x32x128xf32, #tpu.memory_space<vmem>>, vector<1x32x128xf32>
    %36 = vector.shape_cast %35 : vector<1x32x128xf32> to vector<32x128xf32>
    %cst_31 = arith.constant dense<0.000000e+00> : vector<256x128xf32>
    %37 = tpu.matmul %1, %36, %cst_31 {dimension_numbers = #tpu.dot_dimension_numbers<[1], [0], [0], [1], [0, 0, 1, 1], [], []>} : vector<256x32xf32>, vector<32x128xf32>, vector<256x128xf32> -> vector<256x128xf32>
    %38 = vector.extract_strided_slice %37 {offsets = [0, 0], sizes = [256, 42], strides = [1, 1]} : vector<256x128xf32> to vector<256x42xf32>
    %c0_32 = arith.constant 0 : index
    %c0_33 = arith.constant 0 : index
    %c0_34 = arith.constant 0 : index
    %39 = vector.load %arg13[%c0_32, %c0_33, %c0_34] : memref<2x1x42xf32, #tpu.memory_space<vmem>>, vector<1x1x42xf32>
    %40 = vector.shape_cast %39 : vector<1x1x42xf32> to vector<1x42xf32>
    %41 = vector.broadcast %40 : vector<1x42xf32> to vector<256x42xf32>
    %42 = arith.addf %38, %41 : vector<256x42xf32>
    %43 = math.exp %26 : vector<256x42xf32>
    %44 = arith.mulf %43, %2 : vector<256x42xf32>
    %45 = arith.mulf %26, %2 : vector<256x42xf32>
    %46 = arith.addf %45, %3 : vector<256x42xf32>
    %47 = arith.select %8, %44, %46 : vector<256x42xi1>, vector<256x42xf32>
    %cst_35 = arith.constant 0.000000e+00 : f32
    %48 = vector.broadcast %cst_35 : f32 to vector<256x42xf32>
    %49 = arith.cmpf ogt, %42, %48 : vector<256x42xf32>
    %50 = arith.extui %49 : vector<256x42xi1> to vector<256x42xi32>
    %51 = arith.sitofp %50 : vector<256x42xi32> to vector<256x42xf32>
    %cst_36 = arith.constant 7.853900e-01 : f32
    %52 = vector.broadcast %cst_36 : f32 to vector<256x42xf32>
    %53 = arith.subf %47, %52 : vector<256x42xf32>
    %cst_37 = arith.constant 3.14159274 : f32
    %54 = vector.broadcast %cst_37 : f32 to vector<256x42xf32>
    %55 = arith.divf %53, %54 : vector<256x42xf32>
    %cst_38 = arith.constant 0.000000e+00 : f32
    %56 = vector.broadcast %cst_38 : f32 to vector<256x42xf32>
    %57 = arith.addf %55, %56 : vector<256x42xf32>
    %58 = math.floor %57 : vector<256x42xf32>
    %cst_39 = arith.constant 3.14159274 : f32
    %59 = vector.broadcast %cst_39 : f32 to vector<256x42xf32>
    %60 = arith.mulf %58, %59 : vector<256x42xf32>
    %61 = arith.subf %53, %60 : vector<256x42xf32>
    %cst_40 = arith.constant 7.853900e-01 : f32
    %62 = vector.broadcast %cst_40 : f32 to vector<256x42xf32>
    %63 = arith.addf %61, %62 : vector<256x42xf32>
    %cst_41 = arith.constant 3.14159274 : f32
    %64 = vector.broadcast %cst_41 : f32 to vector<256x42xf32>
    %65 = arith.mulf %64, %51 : vector<256x42xf32>
    %66 = arith.addf %63, %65 : vector<256x42xf32>
    %67 = arith.select %10, %66, %47 : vector<256x42xi1>, vector<256x42xf32>
    %c0_42 = arith.constant 0 : index
    %c0_43 = arith.constant 0 : index
    %c0_44 = arith.constant 0 : index
    %68 = vector.load %arg14[%c0_42, %c0_43, %c0_44] : memref<1x256x18xf32, #tpu.memory_space<vmem>>, vector<1x256x18xf32>
    %69 = vector.shape_cast %68 : vector<1x256x18xf32> to vector<256x18xf32>
    %70 = vector.shape_cast %18 : vector<256x18xf32> to vector<1x256x18xf32>
    tpu.vector_store %arg14[%c0_42, %c0_43, %c0_44], %70 {strides = array<i32>} : memref<1x256x18xf32, #tpu.memory_space<vmem>>, vector<1x256x18xf32>,
    %c0_45 = arith.constant 0 : index
    %c0_46 = arith.constant 0 : index
    %c0_47 = arith.constant 0 : index
    %71 = vector.load %arg15[%c0_45, %c0_46, %c0_47] : memref<1x256x42xf32, #tpu.memory_space<vmem>>, vector<1x256x42xf32>
    %72 = vector.shape_cast %71 : vector<1x256x42xf32> to vector<256x42xf32>
    %73 = vector.shape_cast %67 : vector<256x42xf32> to vector<1x256x42xf32>
    tpu.vector_store %arg15[%c0_45, %c0_46, %c0_47], %73 {strides = array<i32>} : memref<1x256x42xf32, #tpu.memory_space<vmem>>, vector<1x256x42xf32>,
    %74 = math.exp %34 : vector<256x42xf32>
    %c0_48 = arith.constant 0 : index
    %c0_49 = arith.constant 0 : index
    %c0_50 = arith.constant 0 : index
    %75 = vector.load %arg16[%c0_48, %c0_49, %c0_50] : memref<1x256x42xf32, #tpu.memory_space<vmem>>, vector<1x256x42xf32>
    %76 = vector.shape_cast %75 : vector<1x256x42xf32> to vector<256x42xf32>
    %77 = vector.shape_cast %74 : vector<256x42xf32> to vector<1x256x42xf32>
    tpu.vector_store %arg16[%c0_48, %c0_49, %c0_50], %77 {strides = array<i32>} : memref<1x256x42xf32, #tpu.memory_space<vmem>>, vector<1x256x42xf32>,
    %c1 = arith.constant 1 : index
    %c0_51 = arith.constant 0 : index
    %c0_52 = arith.constant 0 : index
    %78 = vector.load %arg6[%c1, %c0_51, %c0_52] : memref<2x32x128xf32, #tpu.memory_space<vmem>>, vector<1x32x128xf32>
    %79 = vector.shape_cast %78 : vector<1x32x128xf32> to vector<32x128xf32>
    %cst_53 = arith.constant dense<0.000000e+00> : vector<256x128xf32>
    %80 = tpu.matmul %1, %79, %cst_53 {dimension_numbers = #tpu.dot_dimension_numbers<[1], [0], [0], [1], [0, 0, 1, 1], [], []>} : vector<256x32xf32>, vector<32x128xf32>, vector<256x128xf32> -> vector<256x128xf32>
    %81 = vector.extract_strided_slice %80 {offsets = [0, 0], sizes = [256, 18], strides = [1, 1]} : vector<256x128xf32> to vector<256x18xf32>
    %c1_54 = arith.constant 1 : index
    %c0_55 = arith.constant 0 : index
    %c0_56 = arith.constant 0 : index
    %82 = vector.load %arg7[%c1_54, %c0_55, %c0_56] : memref<2x1x18xf32, #tpu.memory_space<vmem>>, vector<1x1x18xf32>
    %83 = vector.shape_cast %82 : vector<1x1x18xf32> to vector<1x18xf32>
    %84 = vector.broadcast %83 : vector<1x18xf32> to vector<256x18xf32>
    %85 = arith.addf %81, %84 : vector<256x18xf32>
    %c1_57 = arith.constant 1 : index
    %c0_58 = arith.constant 0 : index
    %c0_59 = arith.constant 0 : index
    %86 = vector.load %arg8[%c1_57, %c0_58, %c0_59] : memref<2x32x128xf32, #tpu.memory_space<vmem>>, vector<1x32x128xf32>
    %87 = vector.shape_cast %86 : vector<1x32x128xf32> to vector<32x128xf32>
    %cst_60 = arith.constant dense<0.000000e+00> : vector<256x128xf32>
    %88 = tpu.matmul %1, %87, %cst_60 {dimension_numbers = #tpu.dot_dimension_numbers<[1], [0], [0], [1], [0, 0, 1, 1], [], []>} : vector<256x32xf32>, vector<32x128xf32>, vector<256x128xf32> -> vector<256x128xf32>
    %89 = vector.extract_strided_slice %88 {offsets = [0, 0], sizes = [256, 42], strides = [1, 1]} : vector<256x128xf32> to vector<256x42xf32>
    %c1_61 = arith.constant 1 : index
    %c0_62 = arith.constant 0 : index
    %c0_63 = arith.constant 0 : index
    %90 = vector.load %arg9[%c1_61, %c0_62, %c0_63] : memref<2x1x42xf32, #tpu.memory_space<vmem>>, vector<1x1x42xf32>
    %91 = vector.shape_cast %90 : vector<1x1x42xf32> to vector<1x42xf32>
    %92 = vector.broadcast %91 : vector<1x42xf32> to vector<256x42xf32>
    %93 = arith.addf %89, %92 : vector<256x42xf32>
    %c1_64 = arith.constant 1 : index
    %c0_65 = arith.constant 0 : index
    %c0_66 = arith.constant 0 : index
    %94 = vector.load %arg10[%c1_64, %c0_65, %c0_66] : memref<2x32x128xf32, #tpu.memory_space<vmem>>, vector<1x32x128xf32>
    %95 = vector.shape_cast %94 : vector<1x32x128xf32> to vector<32x128xf32>
    %cst_67 = arith.constant dense<0.000000e+00> : vector<256x128xf32>
    %96 = tpu.matmul %1, %95, %cst_67 {dimension_numbers = #tpu.dot_dimension_numbers<[1], [0], [0], [1], [0, 0, 1, 1], [], []>} : vector<256x32xf32>, vector<32x128xf32>, vector<256x128xf32> -> vector<256x128xf32>
    %97 = vector.extract_strided_slice %96 {offsets = [0, 0], sizes = [256, 42], strides = [1, 1]} : vector<256x128xf32> to vector<256x42xf32>
    %c1_68 = arith.constant 1 : index
    %c0_69 = arith.constant 0 : index
    %c0_70 = arith.constant 0 : index
    %98 = vector.load %arg11[%c1_68, %c0_69, %c0_70] : memref<2x1x42xf32, #tpu.memory_space<vmem>>, vector<1x1x42xf32>
    %99 = vector.shape_cast %98 : vector<1x1x42xf32> to vector<1x42xf32>
    %100 = vector.broadcast %99 : vector<1x42xf32> to vector<256x42xf32>
    %101 = arith.addf %97, %100 : vector<256x42xf32>
    %c1_71 = arith.constant 1 : index
    %c0_72 = arith.constant 0 : index
    %c0_73 = arith.constant 0 : index
    %102 = vector.load %arg12[%c1_71, %c0_72, %c0_73] : memref<2x32x128xf32, #tpu.memory_space<vmem>>, vector<1x32x128xf32>
    %103 = vector.shape_cast %102 : vector<1x32x128xf32> to vector<32x128xf32>
    %cst_74 = arith.constant dense<0.000000e+00> : vector<256x128xf32>
    %104 = tpu.matmul %1, %103, %cst_74 {dimension_numbers = #tpu.dot_dimension_numbers<[1], [0], [0], [1], [0, 0, 1, 1], [], []>} : vector<256x32xf32>, vector<32x128xf32>, vector<256x128xf32> -> vector<256x128xf32>
    %105 = vector.extract_strided_slice %104 {offsets = [0, 0], sizes = [256, 42], strides = [1, 1]} : vector<256x128xf32> to vector<256x42xf32>
    %c1_75 = arith.constant 1 : index
    %c0_76 = arith.constant 0 : index
    %c0_77 = arith.constant 0 : index
    %106 = vector.load %arg13[%c1_75, %c0_76, %c0_77] : memref<2x1x42xf32, #tpu.memory_space<vmem>>, vector<1x1x42xf32>
    %107 = vector.shape_cast %106 : vector<1x1x42xf32> to vector<1x42xf32>
    %108 = vector.broadcast %107 : vector<1x42xf32> to vector<256x42xf32>
    %109 = arith.addf %105, %108 : vector<256x42xf32>
    %110 = math.exp %93 : vector<256x42xf32>
    %111 = arith.mulf %110, %2 : vector<256x42xf32>
    %112 = arith.mulf %93, %2 : vector<256x42xf32>
    %113 = arith.addf %112, %3 : vector<256x42xf32>
    %114 = arith.select %8, %111, %113 : vector<256x42xi1>, vector<256x42xf32>
    %cst_78 = arith.constant 0.000000e+00 : f32
    %115 = vector.broadcast %cst_78 : f32 to vector<256x42xf32>
    %116 = arith.cmpf ogt, %109, %115 : vector<256x42xf32>
    %117 = arith.extui %116 : vector<256x42xi1> to vector<256x42xi32>
    %118 = arith.sitofp %117 : vector<256x42xi32> to vector<256x42xf32>
    %cst_79 = arith.constant 7.853900e-01 : f32
    %119 = vector.broadcast %cst_79 : f32 to vector<256x42xf32>
    %120 = arith.subf %114, %119 : vector<256x42xf32>
    %cst_80 = arith.constant 3.14159274 : f32
    %121 = vector.broadcast %cst_80 : f32 to vector<256x42xf32>
    %122 = arith.divf %120, %121 : vector<256x42xf32>
    %cst_81 = arith.constant 0.000000e+00 : f32
    %123 = vector.broadcast %cst_81 : f32 to vector<256x42xf32>
    %124 = arith.addf %122, %123 : vector<256x42xf32>
    %125 = math.floor %124 : vector<256x42xf32>
    %cst_82 = arith.constant 3.14159274 : f32
    %126 = vector.broadcast %cst_82 : f32 to vector<256x42xf32>
    %127 = arith.mulf %125, %126 : vector<256x42xf32>
    %128 = arith.subf %120, %127 : vector<256x42xf32>
    %cst_83 = arith.constant 7.853900e-01 : f32
    %129 = vector.broadcast %cst_83 : f32 to vector<256x42xf32>
    %130 = arith.addf %128, %129 : vector<256x42xf32>
    %cst_84 = arith.constant 3.14159274 : f32
    %131 = vector.broadcast %cst_84 : f32 to vector<256x42xf32>
    %132 = arith.mulf %131, %118 : vector<256x42xf32>
    %133 = arith.addf %130, %132 : vector<256x42xf32>
    %134 = arith.select %10, %133, %114 : vector<256x42xi1>, vector<256x42xf32>
    %c0_85 = arith.constant 0 : index
    %c0_86 = arith.constant 0 : index
    %c0_87 = arith.constant 0 : index
    %135 = vector.load %arg17[%c0_85, %c0_86, %c0_87] : memref<1x256x18xf32, #tpu.memory_space<vmem>>, vector<1x256x18xf32>
    %136 = vector.shape_cast %135 : vector<1x256x18xf32> to vector<256x18xf32>
    %137 = vector.shape_cast %85 : vector<256x18xf32> to vector<1x256x18xf32>
    tpu.vector_store %arg17[%c0_85, %c0_86, %c0_87], %137 {strides = array<i32>} : memref<1x256x18xf32, #tpu.memory_space<vmem>>, vector<1x256x18xf32>,
    %c0_88 = arith.constant 0 : index
    %c0_89 = arith.constant 0 : index
    %c0_90 = arith.constant 0 : index
    %138 = vector.load %arg18[%c0_88, %c0_89, %c0_90] : memref<1x256x42xf32, #tpu.memory_space<vmem>>, vector<1x256x42xf32>
    %139 = vector.shape_cast %138 : vector<1x256x42xf32> to vector<256x42xf32>
    %140 = vector.shape_cast %134 : vector<256x42xf32> to vector<1x256x42xf32>
    tpu.vector_store %arg18[%c0_88, %c0_89, %c0_90], %140 {strides = array<i32>} : memref<1x256x42xf32, #tpu.memory_space<vmem>>, vector<1x256x42xf32>,
    %141 = math.exp %101 : vector<256x42xf32>
    %c0_91 = arith.constant 0 : index
    %c0_92 = arith.constant 0 : index
    %c0_93 = arith.constant 0 : index
    %142 = vector.load %arg19[%c0_91, %c0_92, %c0_93] : memref<1x256x42xf32, #tpu.memory_space<vmem>>, vector<1x256x42xf32>
    %143 = vector.shape_cast %142 : vector<1x256x42xf32> to vector<256x42xf32>
    %144 = vector.shape_cast %141 : vector<256x42xf32> to vector<1x256x42xf32>
    tpu.vector_store %arg19[%c0_91, %c0_92, %c0_93], %144 {strides = array<i32>} : memref<1x256x42xf32, #tpu.memory_space<vmem>>, vector<1x256x42xf32>,
    return
  }
  func.func @transform_0(%arg0: i32, %arg1: i32) -> (i32, i32, i32) {
    %c0_i32 = arith.constant 0 : i32
    %c0_i32_0 = arith.constant 0 : i32
    return %arg1, %arg0, %c0_i32 : i32, i32, i32
  }
  func.func @transform_1(%arg0: i32, %arg1: i32) -> (i32, i32) {
    %c0_i32 = arith.constant 0 : i32
    %c0_i32_0 = arith.constant 0 : i32
    return %arg0, %c0_i32 : i32, i32
  }
  func.func @transform_2(%arg0: i32, %arg1: i32) -> (i32, i32) {
    %c0_i32 = arith.constant 0 : i32
    %c0_i32_0 = arith.constant 0 : i32
    return %arg0, %c0_i32 : i32, i32
  }
  func.func @transform_3(%arg0: i32, %arg1: i32) -> (i32, i32) {
    %c0_i32 = arith.constant 0 : i32
    %c0_i32_0 = arith.constant 0 : i32
    %c0_i32_1 = arith.constant 0 : i32
    return %c0_i32, %c0_i32_0 : i32, i32
  }
  func.func @transform_4(%arg0: i32, %arg1: i32) -> (i32, i32, i32) {
    %c0_i32 = arith.constant 0 : i32
    %c0_i32_0 = arith.constant 0 : i32
    %c0_i32_1 = arith.constant 0 : i32
    %c0_i32_2 = arith.constant 0 : i32
    return %c0_i32, %c0_i32_0, %c0_i32_1 : i32, i32, i32
  }
  func.func @transform_5(%arg0: i32, %arg1: i32) -> (i32, i32, i32) {
    %c0_i32 = arith.constant 0 : i32
    %c0_i32_0 = arith.constant 0 : i32
    %c0_i32_1 = arith.constant 0 : i32
    %c0_i32_2 = arith.constant 0 : i32
    return %c0_i32, %c0_i32_0, %c0_i32_1 : i32, i32, i32
  }
  func.func @transform_6(%arg0: i32, %arg1: i32) -> (i32, i32, i32) {
    %c0_i32 = arith.constant 0 : i32
    %c0_i32_0 = arith.constant 0 : i32
    %c0_i32_1 = arith.constant 0 : i32
    %c0_i32_2 = arith.constant 0 : i32
    return %c0_i32, %c0_i32_0, %c0_i32_1 : i32, i32, i32
  }
  func.func @transform_7(%arg0: i32, %arg1: i32) -> (i32, i32, i32) {
    %c0_i32 = arith.constant 0 : i32
    %c0_i32_0 = arith.constant 0 : i32
    %c0_i32_1 = arith.constant 0 : i32
    %c0_i32_2 = arith.constant 0 : i32
    return %c0_i32, %c0_i32_0, %c0_i32_1 : i32, i32, i32
  }
  func.func @transform_8(%arg0: i32, %arg1: i32) -> (i32, i32, i32) {
    %c0_i32 = arith.constant 0 : i32
    %c0_i32_0 = arith.constant 0 : i32
    %c0_i32_1 = arith.constant 0 : i32
    %c0_i32_2 = arith.constant 0 : i32
    return %c0_i32, %c0_i32_0, %c0_i32_1 : i32, i32, i32
  }
  func.func @transform_9(%arg0: i32, %arg1: i32) -> (i32, i32, i32) {
    %c0_i32 = arith.constant 0 : i32
    %c0_i32_0 = arith.constant 0 : i32
    %c0_i32_1 = arith.constant 0 : i32
    %c0_i32_2 = arith.constant 0 : i32
    return %c0_i32, %c0_i32_0, %c0_i32_1 : i32, i32, i32
  }
  func.func @transform_10(%arg0: i32, %arg1: i32) -> (i32, i32, i32) {
    %c0_i32 = arith.constant 0 : i32
    %c0_i32_0 = arith.constant 0 : i32
    %c0_i32_1 = arith.constant 0 : i32
    %c0_i32_2 = arith.constant 0 : i32
    return %c0_i32, %c0_i32_0, %c0_i32_1 : i32, i32, i32
  }
  func.func @transform_11(%arg0: i32, %arg1: i32) -> (i32, i32, i32) {
    %c0_i32 = arith.constant 0 : i32
    %c0_i32_0 = arith.constant 0 : i32
    %c0_i32_1 = arith.constant 0 : i32
    %c0_i32_2 = arith.constant 0 : i32
    return %c0_i32, %c0_i32_0, %c0_i32_1 : i32, i32, i32
  }
  func.func @transform_12(%arg0: i32, %arg1: i32) -> (i32, i32, i32) {
    %c0_i32 = arith.constant 0 : i32
    %c0_i32_0 = arith.constant 0 : i32
    return %arg1, %arg0, %c0_i32 : i32, i32, i32
  }
  func.func @transform_13(%arg0: i32, %arg1: i32) -> (i32, i32, i32) {
    %c0_i32 = arith.constant 0 : i32
    %c0_i32_0 = arith.constant 0 : i32
    return %arg1, %arg0, %c0_i32 : i32, i32, i32
  }
  func.func @transform_14(%arg0: i32, %arg1: i32) -> (i32, i32, i32) {
    %c0_i32 = arith.constant 0 : i32
    %c0_i32_0 = arith.constant 0 : i32
    return %arg1, %arg0, %c0_i32 : i32, i32, i32
  }
  func.func @transform_15(%arg0: i32, %arg1: i32) -> (i32, i32, i32) {
    %c0_i32 = arith.constant 0 : i32
    %c0_i32_0 = arith.constant 0 : i32
    return %arg1, %arg0, %c0_i32 : i32, i32, i32
  }
  func.func @transform_16(%arg0: i32, %arg1: i32) -> (i32, i32, i32) {
    %c0_i32 = arith.constant 0 : i32
    %c0_i32_0 = arith.constant 0 : i32
    return %arg1, %arg0, %c0_i32 : i32, i32, i32
  }
  func.func @transform_17(%arg0: i32, %arg1: i32) -> (i32, i32, i32) {
    %c0_i32 = arith.constant 0 : i32
    %c0_i32_0 = arith.constant 0 : i32
    return %arg1, %arg0, %c0_i32 : i32, i32, i32
  }
}

</mosaic_0001>

<llo_original>
// kernel: _mimo_heads_core.1
$region0: #{_mimo_heads_core.1}
  #allocation0 [shape = 'u32[]', space=smem, size = 0x4, offset = 0x4, fixed_abs, tag = 'smem constant byte address 0x4 - core index']
  #allocation1 [shape = 'u32[72,128]{1,0:T(1,128)}', space=vmem, size = 0x9000, scoped, tag = 'internal scratch']
  %s0 = inlined_call_operand.hbm [shape: f32[2,256,32], index: 0, kind: input, shape index: {}]
  %s1 = inlined_call_operand.vmem [shape: f32[256,42], index: 1, kind: input, shape index: {}]
  %s2 = inlined_call_operand.vmem [shape: f32[256,42], index: 2, kind: input, shape index: {}]
  %s3 = inlined_call_operand.hbm [shape: s32[1,42], index: 3, kind: input, shape index: {}]
  %s4 = inlined_call_operand.hbm [shape: f32[2,32,128], index: 4, kind: input, shape index: {}]
  %s5 = inlined_call_operand.hbm [shape: f32[2,1,18], index: 5, kind: input, shape index: {}]
  %s6 = inlined_call_operand.hbm [shape: f32[2,32,128], index: 6, kind: input, shape index: {}]
  %s7 = inlined_call_operand.hbm [shape: f32[2,1,42], index: 7, kind: input, shape index: {}]
  %s8 = inlined_call_operand.hbm [shape: f32[2,32,128], index: 8, kind: input, shape index: {}]
  %s9 = inlined_call_operand.hbm [shape: f32[2,1,42], index: 9, kind: input, shape index: {}]
  %s10 = inlined_call_operand.hbm [shape: f32[2,32,128], index: 10, kind: input, shape index: {}]
  %s11 = inlined_call_operand.hbm [shape: f32[2,1,42], index: 11, kind: input, shape index: {}]
  %s12 = inlined_call_operand.vmem [shape: f32[2,256,18], index: 12, kind: output, shape index: {0}]
  %s13 = inlined_call_operand.vmem [shape: f32[2,256,42], index: 13, kind: output, shape index: {1}]
  %s14 = inlined_call_operand.vmem [shape: f32[2,256,42], index: 14, kind: output, shape index: {2}]
  %s15 = inlined_call_operand.vmem [shape: f32[2,256,18], index: 15, kind: output, shape index: {3}]
  %s16 = inlined_call_operand.vmem [shape: f32[2,256,42], index: 16, kind: output, shape index: {4}]
  %s17 = inlined_call_operand.vmem [shape: f32[2,256,42], index: 17, kind: output, shape index: {5}]
  %18 = xla_tuple %s12, %s13, %s14, %s15, %s16, %s17
  %s19 = sld [smem:[#allocation0]]
  $region161: #{_mimo_heads_core.1} parent=0
    _
  %s21 = ssub.s32 1, %s19
  %s22 = scalar_select 0, %s21, %s19
  $region1: #{_mimo_heads_core.1} parent=0
    #allocation2 [shape = 'u8[262144]{0}', space=vmem, size = 0x40000, scoped, tag = 'input window, operand 0']
    #allocation3 [shape = 's32[2]{0}', space=sflag, size = 0x8, scoped, tag = 'scoped memory for _mimo_heads_core.1']
    #allocation4 [shape = 'u8[512]{0}', space=vmem, size = 0x400, scoped, tag = 'input window, operand 3, single buffered']
    #allocation5 [shape = 's32[1]{0}', space=sflag, size = 0x4, scoped, tag = 'scoped memory for _mimo_heads_core.1']
    #allocation6 [shape = 'u8[32768]{0}', space=vmem, size = 0x8000, scoped, tag = 'input window, operand 4, single buffered']
    #allocation7 [shape = 'u8[1024]{0}', space=vmem, size = 0x400, scoped, tag = 'input window, operand 5, single buffered']
    #allocation8 [shape = 's32[1]{0}', space=sflag, size = 0x4, scoped, tag = 'scoped memory for _mimo_heads_core.1']
    #allocation9 [shape = 'u8[32768]{0}', space=vmem, size = 0x8000, scoped, tag = 'input window, operand 6, single buffered']
    #allocation10 [shape = 'u8[1024]{0}', space=vmem, size = 0x400, scoped, tag = 'input window, operand 7, single buffered']
    #allocation11 [shape = 's32[1]{0}', space=sflag, size = 0x4, scoped, tag = 'scoped memory for _mimo_heads_core.1']
    #allocation12 [shape = 'u8[32768]{0}', space=vmem, size = 0x8000, scoped, tag = 'input window, operand 8, single buffered']
    #allocation13 [shape = 'u8[1024]{0}', space=vmem, size = 0x400, scoped, tag = 'input window, operand 9, single buffered']
    #allocation14 [shape = 's32[1]{0}', space=sflag, size = 0x4, scoped, tag = 'scoped memory for _mimo_heads_core.1']
    #allocation15 [shape = 'u8[32768]{0}', space=vmem, size = 0x8000, scoped, tag = 'input window, operand 10, single buffered']
    #allocation16 [shape = 'u8[1024]{0}', space=vmem, size = 0x400, scoped, tag = 'input window, operand 11, single buffered']
    #allocation17 [shape = 's32[1]{0}', space=sflag, size = 0x4, scoped, tag = 'scoped memory for _mimo_heads_core.1']
    %23 = vsyncpa [#allocation3], 0
    %s24 = scalar_lea.sflag [#allocation3], 1
    %25 = vsyncpa %s24, 0
    %26 = vsyncpa [#allocation5], 0
    %27 = vsyncpa [#allocation8], 0
    %28 = vsyncpa [#allocation11], 0
    %29 = vsyncpa [#allocation14], 0
    %30 = vsyncpa [#allocation17], 0
    loop: start=0, step=1, limit=4
    $region2: #{_mimo_heads_core.1} parent=1 // loop_pre_header
      _
    $region3: #{_mimo_heads_core.1} parent=1 // loop_header
      %s32 = sphi 0, %s36
      %p33 = scmp.ge.s32.totalorder %s32, 4
      %s39 = sphi 0, %s51
      %s40 = sphi 0, %s47
      %s41 = sphi 0, %s39
      %s42 = sphi 0, %s40
      %s43 = sphi 0, %s41
      %s44 = sphi 0, %s42
      %s56 = sphi 0, %s58
      %s59 = sphi 0, %s56
      %s60 = sphi 0, %s59
      %s76 = sphi 0, %s60
      %s82 = sphi 0, %s84
      %s85 = sphi 0, %s82
      %s86 = sphi 0, %s85
      %s102 = sphi 0, %s86
      %s108 = sphi 0, %s110
      %s111 = sphi 0, %s108
      %s112 = sphi 0, %s111
      %s128 = sphi 0, %s112
      %s132 = sphi 0, %s132
      %s134 = sphi 0, %s132
      %s135 = sphi 0, %s134
      %s149 = sphi 0, %s135
      %s153 = sphi 0, %s153
      %s155 = sphi 0, %s153
      %s156 = sphi 0, %s155
      %s170 = sphi 0, %s156
      %s174 = sphi 0, %s174
      %s176 = sphi 0, %s174
      %s177 = sphi 0, %s176
      %s191 = sphi 0, %s177
      %s195 = sphi 0, %s195
      %s197 = sphi 0, %s195
      %s198 = sphi 0, %s197
      %s212 = sphi 0, %s198
      %s216 = sphi 0, %s216
      %s218 = sphi 0, %s216
      %s219 = sphi 0, %s218
      %s233 = sphi 0, %s219
      %s237 = sphi 0, %s237
      %s239 = sphi 0, %s237
      %s240 = sphi 0, %s239
      %s254 = sphi 0, %s240
      %s258 = sphi 0, %s258
      %s260 = sphi 0, %s258
      %s261 = sphi 0, %s260
      %s275 = sphi 0, %s261
      %s279 = sphi 0, %s279
      %s281 = sphi 0, %s279
      %s282 = sphi 0, %s281
      %s296 = sphi 0, %s282
      %s300 = sphi 0, %s300
      %s302 = sphi 0, %s300
      %s303 = sphi 0, %s302
      %s317 = sphi 0, %s303
      %s325 = sphi 0, %s327
      %s328 = sphi 0, %s325
      %s329 = sphi 0, %s328
      %s345 = sphi 0, %s329
      %s353 = sphi 0, %s355
      %s356 = sphi 0, %s353
      %s357 = sphi 0, %s356
      %s373 = sphi 0, %s357
      %s381 = sphi 0, %s383
      %s384 = sphi 0, %s381
      %s385 = sphi 0, %s384
      %s401 = sphi 0, %s385
      %s409 = sphi 0, %s411
      %s412 = sphi 0, %s409
      %s413 = sphi 0, %s412
      %s429 = sphi 0, %s413
      %s437 = sphi 0, %s439
      %s440 = sphi 0, %s437
      %s441 = sphi 0, %s440
      %s457 = sphi 0, %s441
      %s465 = sphi 0, %s467
      %s468 = sphi 0, %s465
      %s469 = sphi 0, %s468
      %s485 = sphi 0, %s469
    $region4: #{_mimo_heads_core.1} parent=1 // loop_header_branch
      %35 = sbr.rel (%p33) target = $region8
    $region5: #{_mimo_heads_core.1} parent=1 // loop_body
      %s37 = ssub.s32 %s32, 1
      %s38 = ssub.s32 %s32, 2
      %s45 = sadd.s32 1, %s40
      %p46 = scmp.ge.s32.totalorder %s45, 2
      %s47 = scalar_select %p46, 0, %s45
      %s48 = sadd.s32 1, %s39
      %s49 = scalar_select %p46, %s48, %s39
      %p50 = scmp.ge.s32.totalorder %s49, 1
      %s51 = scalar_select %p50, 0, %s49
      %s52 = ssub.s32 %s40, %s47
      %s53 = ssub.s32 %s39, %s51
      %s54 = sor.u32 %s52, %s53
      %p55 = scmp.eq.s32.totalorder %s54, 0
      %s57 = sadd.s32 %s56, 1
      %s58 = scalar_select %p55, %s56, %s57
      %p61 = pneg %p55
      %p62 = scmp.eq.s32.totalorder %s32, 1
      %p63 = por %p61, %p62
      %p64 = scmp.ne.s32.totalorder %s56, %s59
      %p65 = scmp.eq.s32.totalorder %s32, 0
      %p66 = por %p64, %p65
      %p67 = scmp.ne.s32.totalorder %s56, %s59
      %p68 = scmp.eq.s32.totalorder %s37, 1
      %p69 = por %p67, %p68
      %p70 = scmp.ne.s32.totalorder %s59, %s60
      %p71 = scmp.eq.s32.totalorder %s37, 0
      %p72 = por %p70, %p71
      %p73 = scmp.ne.s32.totalorder %s59, %s60
      %p74 = scmp.eq.s32.totalorder %s38, 1
      %p75 = por %p73, %p74
      %p77 = scmp.ne.s32.totalorder %s60, %s76
      %p78 = scmp.eq.s32.totalorder %s38, 0
      %p79 = por %p77, %p78
      %s80 = ssub.s32 %s39, %s51
      %p81 = scmp.eq.s32.totalorder %s80, 0
      %s83 = sadd.s32 %s82, 1
      %s84 = scalar_select %p81, %s82, %s83
      %p87 = pneg %p81
      %p88 = scmp.eq.s32.totalorder %s32, 1
      %p89 = por %p87, %p88
      %p90 = scmp.ne.s32.totalorder %s82, %s85
      %p91 = scmp.eq.s32.totalorder %s32, 0
      %p92 = por %p90, %p91
      %p93 = scmp.ne.s32.totalorder %s82, %s85
      %p94 = scmp.eq.s32.totalorder %s37, 1
      %p95 = por %p93, %p94
      %p96 = scmp.ne.s32.totalorder %s85, %s86
      %p97 = scmp.eq.s32.totalorder %s37, 0
      %p98 = por %p96, %p97
      %p99 = scmp.ne.s32.totalorder %s85, %s86
      %p100 = scmp.eq.s32.totalorder %s38, 1
      %p101 = por %p99, %p100
      %p103 = scmp.ne.s32.totalorder %s86, %s102
      %p104 = scmp.eq.s32.totalorder %s38, 0
      %p105 = por %p103, %p104
      %s106 = ssub.s32 %s39, %s51
      %p107 = scmp.eq.s32.totalorder %s106, 0
      %s109 = sadd.s32 %s108, 1
      %s110 = scalar_select %p107, %s108, %s109
      %p113 = pneg %p107
      %p114 = scmp.eq.s32.totalorder %s32, 1
      %p115 = por %p113, %p114
      %p116 = scmp.ne.s32.totalorder %s108, %s111
      %p117 = scmp.eq.s32.totalorder %s32, 0
      %p118 = por %p116, %p117
      %p119 = scmp.ne.s32.totalorder %s108, %s111
      %p120 = scmp.eq.s32.totalorder %s37, 1
      %p121 = por %p119, %p120
      %p122 = scmp.ne.s32.totalorder %s111, %s112
      %p123 = scmp.eq.s32.totalorder %s37, 0
      %p124 = por %p122, %p123
      %p125 = scmp.ne.s32.totalorder %s111, %s112
      %p126 = scmp.eq.s32.totalorder %s38, 1
      %p127 = por %p125, %p126
      %p129 = scmp.ne.s32.totalorder %s112, %s128
      %p130 = scmp.eq.s32.totalorder %s38, 0
      %p131 = por %p129, %p130
      %s133 = sadd.s32 %s132, 1
      %p136 = scmp.eq.s32.totalorder %s32, 1
      %p137 = scmp.ne.s32.totalorder %s132, %s134
      %p138 = scmp.eq.s32.totalorder %s32, 0
      %p139 = por %p137, %p138
      %p140 = scmp.ne.s32.totalorder %s132, %s134
      %p141 = scmp.eq.s32.totalorder %s37, 1
      %p142 = por %p140, %p141
      %p143 = scmp.ne.s32.totalorder %s134, %s135
      %p144 = scmp.eq.s32.totalorder %s37, 0
      %p145 = por %p143, %p144
      %p146 = scmp.ne.s32.totalorder %s134, %s135
      %p147 = scmp.eq.s32.totalorder %s38, 1
      %p148 = por %p146, %p147
      %p150 = scmp.ne.s32.totalorder %s135, %s149
      %p151 = scmp.eq.s32.totalorder %s38, 0
      %p152 = por %p150, %p151
      %s154 = sadd.s32 %s153, 1
      %p157 = scmp.eq.s32.totalorder %s32, 1
      %p158 = scmp.ne.s32.totalorder %s153, %s155
      %p159 = scmp.eq.s32.totalorder %s32, 0
      %p160 = por %p158, %p159
      %p161 = scmp.ne.s32.totalorder %s153, %s155
      %p162 = scmp.eq.s32.totalorder %s37, 1
      %p163 = por %p161, %p162
      %p164 = scmp.ne.s32.totalorder %s155, %s156
      %p165 = scmp.eq.s32.totalorder %s37, 0
      %p166 = por %p164, %p165
      %p167 = scmp.ne.s32.totalorder %s155, %s156
      %p168 = scmp.eq.s32.totalorder %s38, 1
      %p169 = por %p167, %p168
      %p171 = scmp.ne.s32.totalorder %s156, %s170
      %p172 = scmp.eq.s32.totalorder %s38, 0
      %p173 = por %p171, %p172
      %s175 = sadd.s32 %s174, 1
      %p178 = scmp.eq.s32.totalorder %s32, 1
      %p179 = scmp.ne.s32.totalorder %s174, %s176
      %p180 = scmp.eq.s32.totalorder %s32, 0
      %p181 = por %p179, %p180
      %p182 = scmp.ne.s32.totalorder %s174, %s176
      %p183 = scmp.eq.s32.totalorder %s37, 1
      %p184 = por %p182, %p183
      %p185 = scmp.ne.s32.totalorder %s176, %s177
      %p186 = scmp.eq.s32.totalorder %s37, 0
      %p187 = por %p185, %p186
      %p188 = scmp.ne.s32.totalorder %s176, %s177
      %p189 = scmp.eq.s32.totalorder %s38, 1
      %p190 = por %p188, %p189
      %p192 = scmp.ne.s32.totalorder %s177, %s191
      %p193 = scmp.eq.s32.totalorder %s38, 0
      %p194 = por %p192, %p193
      %s196 = sadd.s32 %s195, 1
      %p199 = scmp.eq.s32.totalorder %s32, 1
      %p200 = scmp.ne.s32.totalorder %s195, %s197
      %p201 = scmp.eq.s32.totalorder %s32, 0
      %p202 = por %p200, %p201
      %p203 = scmp.ne.s32.totalorder %s195, %s197
      %p204 = scmp.eq.s32.totalorder %s37, 1
      %p205 = por %p203, %p204
      %p206 = scmp.ne.s32.totalorder %s197, %s198
      %p207 = scmp.eq.s32.totalorder %s37, 0
      %p208 = por %p206, %p207
      %p209 = scmp.ne.s32.totalorder %s197, %s198
      %p210 = scmp.eq.s32.totalorder %s38, 1
      %p211 = por %p209, %p210
      %p213 = scmp.ne.s32.totalorder %s198, %s212
      %p214 = scmp.eq.s32.totalorder %s38, 0
      %p215 = por %p213, %p214
      %s217 = sadd.s32 %s216, 1
      %p220 = scmp.eq.s32.totalorder %s32, 1
      %p221 = scmp.ne.s32.totalorder %s216, %s218
      %p222 = scmp.eq.s32.totalorder %s32, 0
      %p223 = por %p221, %p222
      %p224 = scmp.ne.s32.totalorder %s216, %s218
      %p225 = scmp.eq.s32.totalorder %s37, 1
      %p226 = por %p224, %p225
      %p227 = scmp.ne.s32.totalorder %s218, %s219
      %p228 = scmp.eq.s32.totalorder %s37, 0
      %p229 = por %p227, %p228
      %p230 = scmp.ne.s32.totalorder %s218, %s219
      %p231 = scmp.eq.s32.totalorder %s38, 1
      %p232 = por %p230, %p231
      %p234 = scmp.ne.s32.totalorder %s219, %s233
      %p235 = scmp.eq.s32.totalorder %s38, 0
      %p236 = por %p234, %p235
      %s238 = sadd.s32 %s237, 1
      %p241 = scmp.eq.s32.totalorder %s32, 1
      %p242 = scmp.ne.s32.totalorder %s237, %s239
      %p243 = scmp.eq.s32.totalorder %s32, 0
      %p244 = por %p242, %p243
      %p245 = scmp.ne.s32.totalorder %s237, %s239
      %p246 = scmp.eq.s32.totalorder %s37, 1
      %p247 = por %p245, %p246
      %p248 = scmp.ne.s32.totalorder %s239, %s240
      %p249 = scmp.eq.s32.totalorder %s37, 0
      %p250 = por %p248, %p249
      %p251 = scmp.ne.s32.totalorder %s239, %s240
      %p252 = scmp.eq.s32.totalorder %s38, 1
      %p253 = por %p251, %p252
      %p255 = scmp.ne.s32.totalorder %s240, %s254
      %p256 = scmp.eq.s32.totalorder %s38, 0
      %p257 = por %p255, %p256
      %s259 = sadd.s32 %s258, 1
      %p262 = scmp.eq.s32.totalorder %s32, 1
      %p263 = scmp.ne.s32.totalorder %s258, %s260
      %p264 = scmp.eq.s32.totalorder %s32, 0
      %p265 = por %p263, %p264
      %p266 = scmp.ne.s32.totalorder %s258, %s260
      %p267 = scmp.eq.s32.totalorder %s37, 1
      %p268 = por %p266, %p267
      %p269 = scmp.ne.s32.totalorder %s260, %s261
      %p270 = scmp.eq.s32.totalorder %s37, 0
      %p271 = por %p269, %p270
      %p272 = scmp.ne.s32.totalorder %s260, %s261
      %p273 = scmp.eq.s32.totalorder %s38, 1
      %p274 = por %p272, %p273
      %p276 = scmp.ne.s32.totalorder %s261, %s275
      %p277 = scmp.eq.s32.totalorder %s38, 0
      %p278 = por %p276, %p277
      %s280 = sadd.s32 %s279, 1
      %p283 = scmp.eq.s32.totalorder %s32, 1
      %p284 = scmp.ne.s32.totalorder %s279, %s281
      %p285 = scmp.eq.s32.totalorder %s32, 0
      %p286 = por %p284, %p285
      %p287 = scmp.ne.s32.totalorder %s279, %s281
      %p288 = scmp.eq.s32.totalorder %s37, 1
      %p289 = por %p287, %p288
      %p290 = scmp.ne.s32.totalorder %s281, %s282
      %p291 = scmp.eq.s32.totalorder %s37, 0
      %p292 = por %p290, %p291
      %p293 = scmp.ne.s32.totalorder %s281, %s282
      %p294 = scmp.eq.s32.totalorder %s38, 1
      %p295 = por %p293, %p294
      %p297 = scmp.ne.s32.totalorder %s282, %s296
      %p298 = scmp.eq.s32.totalorder %s38, 0
      %p299 = por %p297, %p298
      %s301 = sadd.s32 %s300, 1
      %p304 = scmp.eq.s32.totalorder %s32, 1
      %p305 = scmp.ne.s32.totalorder %s300, %s302
      %p306 = scmp.eq.s32.totalorder %s32, 0
      %p307 = por %p305, %p306
      %p308 = scmp.ne.s32.totalorder %s300, %s302
      %p309 = scmp.eq.s32.totalorder %s37, 1
      %p310 = por %p308, %p309
      %p311 = scmp.ne.s32.totalorder %s302, %s303
      %p312 = scmp.eq.s32.totalorder %s37, 0
      %p313 = por %p311, %p312
      %p314 = scmp.ne.s32.totalorder %s302, %s303
      %p315 = scmp.eq.s32.totalorder %s38, 1
      %p316 = por %p314, %p315
      %p318 = scmp.ne.s32.totalorder %s303, %s317
      %p319 = scmp.eq.s32.totalorder %s38, 0
      %p320 = por %p318, %p319
      %s321 = ssub.s32 %s40, %s47
      %s322 = ssub.s32 %s39, %s51
      %s323 = sor.u32 %s321, %s322
      %p324 = scmp.eq.s32.totalorder %s323, 0
      %s326 = sadd.s32 %s325, 1
      %s327 = scalar_select %p324, %s325, %s326
      %p330 = pneg %p324
      %p331 = scmp.eq.s32.totalorder %s32, 1
      %p332 = por %p330, %p331
      %p333 = scmp.ne.s32.totalorder %s325, %s328
      %p334 = scmp.eq.s32.totalorder %s32, 0
      %p335 = por %p333, %p334
      %p336 = scmp.ne.s32.totalorder %s325, %s328
      %p337 = scmp.eq.s32.totalorder %s37, 1
      %p338 = por %p336, %p337
      %p339 = scmp.ne.s32.totalorder %s328, %s329
      %p340 = scmp.eq.s32.totalorder %s37, 0
      %p341 = por %p339, %p340
      %p342 = scmp.ne.s32.totalorder %s328, %s329
      %p343 = scmp.eq.s32.totalorder %s38, 1
      %p344 = por %p342, %p343
      %p346 = scmp.ne.s32.totalorder %s329, %s345
      %p347 = scmp.eq.s32.totalorder %s38, 0
      %p348 = por %p346, %p347
      %s349 = ssub.s32 %s40, %s47
      %s350 = ssub.s32 %s39, %s51
      %s351 = sor.u32 %s349, %s350
      %p352 = scmp.eq.s32.totalorder %s351, 0
      %s354 = sadd.s32 %s353, 1
      %s355 = scalar_select %p352, %s353, %s354
      %p358 = pneg %p352
      %p359 = scmp.eq.s32.totalorder %s32, 1
      %p360 = por %p358, %p359
      %p361 = scmp.ne.s32.totalorder %s353, %s356
      %p362 = scmp.eq.s32.totalorder %s32, 0
      %p363 = por %p361, %p362
      %p364 = scmp.ne.s32.totalorder %s353, %s356
      %p365 = scmp.eq.s32.totalorder %s37, 1
      %p366 = por %p364, %p365
      %p367 = scmp.ne.s32.totalorder %s356, %s357
      %p368 = scmp.eq.s32.totalorder %s37, 0
      %p369 = por %p367, %p368
      %p370 = scmp.ne.s32.totalorder %s356, %s357
      %p371 = scmp.eq.s32.totalorder %s38, 1
      %p372 = por %p370, %p371
      %p374 = scmp.ne.s32.totalorder %s357, %s373
      %p375 = scmp.eq.s32.totalorder %s38, 0
      %p376 = por %p374, %p375
      %s377 = ssub.s32 %s40, %s47
      %s378 = ssub.s32 %s39, %s51
      %s379 = sor.u32 %s377, %s378
      %p380 = scmp.eq.s32.totalorder %s379, 0
      %s382 = sadd.s32 %s381, 1
      %s383 = scalar_select %p380, %s381, %s382
      %p386 = pneg %p380
      %p387 = scmp.eq.s32.totalorder %s32, 1
      %p388 = por %p386, %p387
      %p389 = scmp.ne.s32.totalorder %s381, %s384
      %p390 = scmp.eq.s32.totalorder %s32, 0
      %p391 = por %p389, %p390
      %p392 = scmp.ne.s32.totalorder %s381, %s384
      %p393 = scmp.eq.s32.totalorder %s37, 1
      %p394 = por %p392, %p393
      %p395 = scmp.ne.s32.totalorder %s384, %s385
      %p396 = scmp.eq.s32.totalorder %s37, 0
      %p397 = por %p395, %p396
      %p398 = scmp.ne.s32.totalorder %s384, %s385
      %p399 = scmp.eq.s32.totalorder %s38, 1
      %p400 = por %p398, %p399
      %p402 = scmp.ne.s32.totalorder %s385, %s401
      %p403 = scmp.eq.s32.totalorder %s38, 0
      %p404 = por %p402, %p403
      %s405 = ssub.s32 %s40, %s47
      %s406 = ssub.s32 %s39, %s51
      %s407 = sor.u32 %s405, %s406
      %p408 = scmp.eq.s32.totalorder %s407, 0
      %s410 = sadd.s32 %s409, 1
      %s411 = scalar_select %p408, %s409, %s410
      %p414 = pneg %p408
      %p415 = scmp.eq.s32.totalorder %s32, 1
      %p416 = por %p414, %p415
      %p417 = scmp.ne.s32.totalorder %s409, %s412
      %p418 = scmp.eq.s32.totalorder %s32, 0
      %p419 = por %p417, %p418
      %p420 = scmp.ne.s32.totalorder %s409, %s412
      %p421 = scmp.eq.s32.totalorder %s37, 1
      %p422 = por %p420, %p421
      %p423 = scmp.ne.s32.totalorder %s412, %s413
      %p424 = scmp.eq.s32.totalorder %s37, 0
      %p425 = por %p423, %p424
      %p426 = scmp.ne.s32.totalorder %s412, %s413
      %p427 = scmp.eq.s32.totalorder %s38, 1
      %p428 = por %p426, %p427
      %p430 = scmp.ne.s32.totalorder %s413, %s429
      %p431 = scmp.eq.s32.totalorder %s38, 0
      %p432 = por %p430, %p431
      %s433 = ssub.s32 %s40, %s47
      %s434 = ssub.s32 %s39, %s51
      %s435 = sor.u32 %s433, %s434
      %p436 = scmp.eq.s32.totalorder %s435, 0
      %s438 = sadd.s32 %s437, 1
      %s439 = scalar_select %p436, %s437, %s438
      %p442 = pneg %p436
      %p443 = scmp.eq.s32.totalorder %s32, 1
      %p444 = por %p442, %p443
      %p445 = scmp.ne.s32.totalorder %s437, %s440
      %p446 = scmp.eq.s32.totalorder %s32, 0
      %p447 = por %p445, %p446
      %p448 = scmp.ne.s32.totalorder %s437, %s440
      %p449 = scmp.eq.s32.totalorder %s37, 1
      %p450 = por %p448, %p449
      %p451 = scmp.ne.s32.totalorder %s440, %s441
      %p452 = scmp.eq.s32.totalorder %s37, 0
      %p453 = por %p451, %p452
      %p454 = scmp.ne.s32.totalorder %s440, %s441
      %p455 = scmp.eq.s32.totalorder %s38, 1
      %p456 = por %p454, %p455
      %p458 = scmp.ne.s32.totalorder %s441, %s457
      %p459 = scmp.eq.s32.totalorder %s38, 0
      %p460 = por %p458, %p459
      %s461 = ssub.s32 %s40, %s47
      %s462 = ssub.s32 %s39, %s51
      %s463 = sor.u32 %s461, %s462
      %p464 = scmp.eq.s32.totalorder %s463, 0
      %s466 = sadd.s32 %s465, 1
      %s467 = scalar_select %p464, %s465, %s466
      %p470 = pneg %p464
      %p471 = scmp.eq.s32.totalorder %s32, 1
      %p472 = por %p470, %p471
      %p473 = scmp.ne.s32.totalorder %s465, %s468
      %p474 = scmp.eq.s32.totalorder %s32, 0
      %p475 = por %p473, %p474
      %p476 = scmp.ne.s32.totalorder %s465, %s468
      %p477 = scmp.eq.s32.totalorder %s37, 1
      %p478 = por %p476, %p477
      %p479 = scmp.ne.s32.totalorder %s468, %s469
      %p480 = scmp.eq.s32.totalorder %s37, 0
      %p481 = por %p479, %p480
      %p482 = scmp.ne.s32.totalorder %s468, %s469
      %p483 = scmp.eq.s32.totalorder %s38, 1
      %p484 = por %p482, %p483
      %p486 = scmp.ne.s32.totalorder %s469, %s485
      %p487 = scmp.eq.s32.totalorder %s38, 0
      %p488 = por %p486, %p487
      %p489 = scmp.le.s32.totalorder 1, %s32
      %p490 = scmp.lt.s32.totalorder %s32, 3
      %p491 = pnand %p489, %p490
      %p492 = pneg %p491
      // Predicated region
      $region9: #{_mimo_heads_core.1} parent=5 // pred_check
        _
      $region10: #{_mimo_heads_core.1} parent=5 // pred_check_branch
        %494 = sbr.rel (%p491) target = $region12
      $region11: #{_mimo_heads_core.1} parent=5 // pred_region
        %s495 = ssub.s32 %s32, 1
        // Predicated region
        $region13: #{_mimo_heads_core.1} parent=11 // pred_check
          %p496 = pneg %p98
        $region14: #{_mimo_heads_core.1} parent=11 // pred_check_branch
          %498 = sbr.rel (%p496) target = $region16
        $region15: #{_mimo_heads_core.1} parent=11 // pred_region
          %s499 = smul.u32 32, %s41
          %p500 = scmp.lt.s32.totalorder %s499, 31
          %s501 = scalar_select %p500, %s499, 31
          %s502 = smul.addr %s501, 8
          %s503 = scalar_lea.vmem %s1, %s502
          %s504 = smul.u32 32, %s41
        $region16: #{_mimo_heads_core.1} parent=11 // pred_fallthru
          _
        // Predicated region
        $region17: #{_mimo_heads_core.1} parent=11 // pred_check
          %p505 = pneg %p124
        $region18: #{_mimo_heads_core.1} parent=11 // pred_check_branch
          %507 = sbr.rel (%p505) target = $region20
        $region19: #{_mimo_heads_core.1} parent=11 // pred_region
          %s508 = smul.u32 32, %s41
          %p509 = scmp.lt.s32.totalorder %s508, 31
          %s510 = scalar_select %p509, %s508, 31
          %s511 = smul.addr %s510, 8
          %s512 = scalar_lea.vmem %s2, %s511
          %s513 = smul.u32 32, %s41
        $region20: #{_mimo_heads_core.1} parent=11 // pred_fallthru
          _
        // Predicated region
        $region21: #{_mimo_heads_core.1} parent=11 // pred_check
          %p514 = pneg %p145
        $region22: #{_mimo_heads_core.1} parent=11 // pred_check_branch
          %516 = sbr.rel (%p514) target = $region24
        $region23: #{_mimo_heads_core.1} parent=11 // pred_region
          %518 = vsyncadd [#allocation5], 0
          %s520 = sshll.u32 %s3, 4
          %s521 = int_to_ptr.hbm [resolvable:$true] %s520
          %s522 = sshll.u32 [#allocation4], 4
          %s523 = int_to_ptr.vmem [resolvable:$true] %s522
          %525 = dma.hbm_to_vmem [thread:$0]  %s521, 16, %s523, [#allocation5]
        $region24: #{_mimo_heads_core.1} parent=11 // pred_fallthru
          _
        // Predicated region
        $region25: #{_mimo_heads_core.1} parent=11 // pred_check
          %p526 = pneg %p166
        $region26: #{_mimo_heads_core.1} parent=11 // pred_check_branch
          %528 = sbr.rel (%p526) target = $region28
        $region27: #{_mimo_heads_core.1} parent=11 // pred_region
          %530 = vsyncadd [#allocation5], 0
          %s531 = sshll.u32 %s4, 4
          %s532 = int_to_ptr.hbm [resolvable:$true] %s531
          %s533 = sshll.u32 [#allocation6], 4
          %s534 = int_to_ptr.vmem [resolvable:$true] %s533
          %539 = dma.hbm_to_vmem [thread:$0]  %s532, 1024, %s534, [#allocation5], 128, 128, 8
        $region28: #{_mimo_heads_core.1} parent=11 // pred_fallthru
          _
        // Predicated region
        $region29: #{_mimo_heads_core.1} parent=11 // pred_check
          %p540 = pneg %p187
        $region30: #{_mimo_heads_core.1} parent=11 // pred_check_branch
          %542 = sbr.rel (%p540) target = $region32
        $region31: #{_mimo_heads_core.1} parent=11 // pred_region
          %544 = vsyncadd [#allocation8], 0
          %s545 = sshll.u32 %s5, 4
          %s546 = int_to_ptr.hbm [resolvable:$true] %s545
          %s547 = sshll.u32 [#allocation7], 4
          %s548 = int_to_ptr.vmem [resolvable:$true] %s547
          %553 = dma.hbm_to_vmem [thread:$0]  %s546, 32, %s548, [#allocation8], 16, 16, 1
        $region32: #{_mimo_heads_core.1} parent=11 // pred_fallthru
          _
        // Predicated region
        $region33: #{_mimo_heads_core.1} parent=11 // pred_check
          %p554 = pneg %p208
        $region34: #{_mimo_heads_core.1} parent=11 // pred_check_branch
          %556 = sbr.rel (%p554) target = $region36
        $region35: #{_mimo_heads_core.1} parent=11 // pred_region
          %558 = vsyncadd [#allocation8], 0
          %s559 = sshll.u32 %s6, 4
          %s560 = int_to_ptr.hbm [resolvable:$true] %s559
          %s561 = sshll.u32 [#allocation9], 4
          %s562 = int_to_ptr.vmem [resolvable:$true] %s561
          %567 = dma.hbm_to_vmem [thread:$0]  %s560, 1024, %s562, [#allocation8], 128, 128, 8
        $region36: #{_mimo_heads_core.1} parent=11 // pred_fallthru
          _
        // Predicated region
        $region37: #{_mimo_heads_core.1} parent=11 // pred_check
          %p568 = pneg %p229
        $region38: #{_mimo_heads_core.1} parent=11 // pred_check_branch
          %570 = sbr.rel (%p568) target = $region40
        $region39: #{_mimo_heads_core.1} parent=11 // pred_region
          %572 = vsyncadd [#allocation11], 0
          %s573 = sshll.u32 %s7, 4
          %s574 = int_to_ptr.hbm [resolvable:$true] %s573
          %s575 = sshll.u32 [#allocation10], 4
          %s576 = int_to_ptr.vmem [resolvable:$true] %s575
          %581 = dma.hbm_to_vmem [thread:$0]  %s574, 32, %s576, [#allocation11], 16, 16, 1
        $region40: #{_mimo_heads_core.1} parent=11 // pred_fallthru
          _
        // Predicated region
        $region41: #{_mimo_heads_core.1} parent=11 // pred_check
          %p582 = pneg %p250
        $region42: #{_mimo_heads_core.1} parent=11 // pred_check_branch
          %584 = sbr.rel (%p582) target = $region44
        $region43: #{_mimo_heads_core.1} parent=11 // pred_region
          %586 = vsyncadd [#allocation11], 0
          %s587 = sshll.u32 %s8, 4
          %s588 = int_to_ptr.hbm [resolvable:$true] %s587
          %s589 = sshll.u32 [#allocation12], 4
          %s590 = int_to_ptr.vmem [resolvable:$true] %s589
          %595 = dma.hbm_to_vmem [thread:$0]  %s588, 1024, %s590, [#allocation11], 128, 128, 8
        $region44: #{_mimo_heads_core.1} parent=11 // pred_fallthru
          _
        // Predicated region
        $region45: #{_mimo_heads_core.1} parent=11 // pred_check
          %p596 = pneg %p271
        $region46: #{_mimo_heads_core.1} parent=11 // pred_check_branch
          %598 = sbr.rel (%p596) target = $region48
        $region47: #{_mimo_heads_core.1} parent=11 // pred_region
          %600 = vsyncadd [#allocation14], 0
          %s601 = sshll.u32 %s9, 4
          %s602 = int_to_ptr.hbm [resolvable:$true] %s601
          %s603 = sshll.u32 [#allocation13], 4
          %s604 = int_to_ptr.vmem [resolvable:$true] %s603
          %609 = dma.hbm_to_vmem [thread:$0]  %s602, 32, %s604, [#allocation14], 16, 16, 1
        $region48: #{_mimo_heads_core.1} parent=11 // pred_fallthru
          _
        // Predicated region
        $region49: #{_mimo_heads_core.1} parent=11 // pred_check
          %p610 = pneg %p292
        $region50: #{_mimo_heads_core.1} parent=11 // pred_check_branch
          %612 = sbr.rel (%p610) target = $region52
        $region51: #{_mimo_heads_core.1} parent=11 // pred_region
          %614 = vsyncadd [#allocation14], 0
          %s615 = sshll.u32 %s10, 4
          %s616 = int_to_ptr.hbm [resolvable:$true] %s615
          %s617 = sshll.u32 [#allocation15], 4
          %s618 = int_to_ptr.vmem [resolvable:$true] %s617
          %623 = dma.hbm_to_vmem [thread:$0]  %s616, 1024, %s618, [#allocation14], 128, 128, 8
        $region52: #{_mimo_heads_core.1} parent=11 // pred_fallthru
          _
        // Predicated region
        $region53: #{_mimo_heads_core.1} parent=11 // pred_check
          %p624 = pneg %p313
        $region54: #{_mimo_heads_core.1} parent=11 // pred_check_branch
          %626 = sbr.rel (%p624) target = $region56
        $region55: #{_mimo_heads_core.1} parent=11 // pred_region
          %628 = vsyncadd [#allocation17], 0
          %s629 = sshll.u32 %s11, 4
          %s630 = int_to_ptr.hbm [resolvable:$true] %s629
          %s631 = sshll.u32 [#allocation16], 4
          %s632 = int_to_ptr.vmem [resolvable:$true] %s631
          %637 = dma.hbm_to_vmem [thread:$0]  %s630, 32, %s632, [#allocation17], 16, 16, 1
        $region56: #{_mimo_heads_core.1} parent=11 // pred_fallthru
          _
      $region12: #{_mimo_heads_core.1} parent=5 // pred_fallthru
        _
      %p638 = scmp.lt.s32.totalorder %s32, 2
      // Predicated region
      $region57: #{_mimo_heads_core.1} parent=5 // pred_check
        %p639 = pneg %p638
      $region58: #{_mimo_heads_core.1} parent=5 // pred_check_branch
        %641 = sbr.rel (%p639) target = $region60
      $region59: #{_mimo_heads_core.1} parent=5 // pred_region
        // Predicated region
        $region61: #{_mimo_heads_core.1} parent=59 // pred_check
          %p642 = pneg %p66
        $region62: #{_mimo_heads_core.1} parent=59 // pred_check_branch
          %644 = sbr.rel (%p642) target = $region64
        $region63: #{_mimo_heads_core.1} parent=59 // pred_region
          %s645 = sand.u32 %s56, 1
          %s646 = scalar_lea.sflag [#allocation3], %s645
          %s647 = sand.u32 %s56, 1
          %s648 = smul.addr %s647, 256
          %s649 = scalar_lea.vmem [#allocation2], %s648
          %s650 = smul.u32 32, %s39
          %652 = vsyncadd %s646, 0
          %s653 = smul.addr %s40, 32
          %s654 = sadd.s32 %s650, %s653
          %s655 = smul.addr %s654, 8
          %s656 = scalar_lea.hbm %s0, %s655
          %s657 = sshll.u32 %s656, 4
          %s658 = int_to_ptr.hbm [resolvable:$true] %s657
          %s659 = sshll.u32 %s649, 4
          %s660 = int_to_ptr.vmem [resolvable:$true] %s659
          %665 = dma.hbm_to_vmem [thread:$0]  %s658, 4096, %s660, %s646, 128, 128, 8
        $region64: #{_mimo_heads_core.1} parent=59 // pred_fallthru
          _
      $region60: #{_mimo_heads_core.1} parent=5 // pred_fallthru
        _
      %p666 = scmp.le.s32.totalorder 1, %s32
      %p667 = scmp.lt.s32.totalorder %s32, 3
      %p668 = pnand %p666, %p667
      %p669 = pneg %p668
      // Predicated region
      $region65: #{_mimo_heads_core.1} parent=5 // pred_check
        _
      $region66: #{_mimo_heads_core.1} parent=5 // pred_check_branch
        %671 = sbr.rel (%p668) target = $region68
      $region67: #{_mimo_heads_core.1} parent=5 // pred_region
        %s672 = ssub.s32 %s32, 1
        %s673 = sand.u32 %s59, 1
        %s674 = scalar_lea.sflag [#allocation3], %s673
        %s675 = sand.u32 %s59, 1
        %s676 = smul.addr %s675, 256
        %s677 = scalar_lea.vmem [#allocation2], %s676
        // Predicated region
        $region69: #{_mimo_heads_core.1} parent=67 // pred_check
          %p678 = pneg %p72
        $region70: #{_mimo_heads_core.1} parent=67 // pred_check_branch
          %680 = sbr.rel (%p678) target = $region72
        $region71: #{_mimo_heads_core.1} parent=67 // pred_region
          %682 = dma.done %s674, 4096
        $region72: #{_mimo_heads_core.1} parent=67 // pred_fallthru
          _
        // Predicated region
        $region73: #{_mimo_heads_core.1} parent=67 // pred_check
          %p683 = pneg %p145
        $region74: #{_mimo_heads_core.1} parent=67 // pred_check_branch
          %685 = sbr.rel (%p683) target = $region76
        $region75: #{_mimo_heads_core.1} parent=67 // pred_region
          %687 = dma.done [#allocation5], 16
        $region76: #{_mimo_heads_core.1} parent=67 // pred_fallthru
          _
        // Predicated region
        $region77: #{_mimo_heads_core.1} parent=67 // pred_check
          %p688 = pneg %p166
        $region78: #{_mimo_heads_core.1} parent=67 // pred_check_branch
          %690 = sbr.rel (%p688) target = $region80
        $region79: #{_mimo_heads_core.1} parent=67 // pred_region
          %692 = dma.done [#allocation5], 1024
        $region80: #{_mimo_heads_core.1} parent=67 // pred_fallthru
          _
        // Predicated region
        $region81: #{_mimo_heads_core.1} parent=67 // pred_check
          %p693 = pneg %p187
        $region82: #{_mimo_heads_core.1} parent=67 // pred_check_branch
          %695 = sbr.rel (%p693) target = $region84
        $region83: #{_mimo_heads_core.1} parent=67 // pred_region
          %697 = dma.done [#allocation8], 32
        $region84: #{_mimo_heads_core.1} parent=67 // pred_fallthru
          _
        // Predicated region
        $region85: #{_mimo_heads_core.1} parent=67 // pred_check
          %p698 = pneg %p208
        $region86: #{_mimo_heads_core.1} parent=67 // pred_check_branch
          %700 = sbr.rel (%p698) target = $region88
        $region87: #{_mimo_heads_core.1} parent=67 // pred_region
          %702 = dma.done [#allocation8], 1024
        $region88: #{_mimo_heads_core.1} parent=67 // pred_fallthru
          _
        // Predicated region
        $region89: #{_mimo_heads_core.1} parent=67 // pred_check
          %p703 = pneg %p229
        $region90: #{_mimo_heads_core.1} parent=67 // pred_check_branch
          %705 = sbr.rel (%p703) target = $region92
        $region91: #{_mimo_heads_core.1} parent=67 // pred_region
          %707 = dma.done [#allocation11], 32
        $region92: #{_mimo_heads_core.1} parent=67 // pred_fallthru
          _
        // Predicated region
        $region93: #{_mimo_heads_core.1} parent=67 // pred_check
          %p708 = pneg %p250
        $region94: #{_mimo_heads_core.1} parent=67 // pred_check_branch
          %710 = sbr.rel (%p708) target = $region96
        $region95: #{_mimo_heads_core.1} parent=67 // pred_region
          %712 = dma.done [#allocation11], 1024
        $region96: #{_mimo_heads_core.1} parent=67 // pred_fallthru
          _
        // Predicated region
        $region97: #{_mimo_heads_core.1} parent=67 // pred_check
          %p713 = pneg %p271
        $region98: #{_mimo_heads_core.1} parent=67 // pred_check_branch
          %715 = sbr.rel (%p713) target = $region100
        $region99: #{_mimo_heads_core.1} parent=67 // pred_region
          %717 = dma.done [#allocation14], 32
        $region100: #{_mimo_heads_core.1} parent=67 // pred_fallthru
          _
        // Predicated region
        $region101: #{_mimo_heads_core.1} parent=67 // pred_check
          %p718 = pneg %p292
        $region102: #{_mimo_heads_core.1} parent=67 // pred_check_branch
          %720 = sbr.rel (%p718) target = $region104
        $region103: #{_mimo_heads_core.1} parent=67 // pred_region
          %722 = dma.done [#allocation14], 1024
        $region104: #{_mimo_heads_core.1} parent=67 // pred_fallthru
          _
        // Predicated region
        $region105: #{_mimo_heads_core.1} parent=67 // pred_check
          %p723 = pneg %p313
        $region106: #{_mimo_heads_core.1} parent=67 // pred_check_branch
          %725 = sbr.rel (%p723) target = $region108
        $region107: #{_mimo_heads_core.1} parent=67 // pred_region
          %727 = dma.done [#allocation17], 32
        $region108: #{_mimo_heads_core.1} parent=67 // pred_fallthru
          _
        %s728 = sand.u32 %s59, 1
        %s729 = scalar_lea.sflag [#allocation3], %s728
        %s730 = sand.u32 %s59, 1
        %s731 = smul.addr %s730, 256
        %s732 = scalar_lea.vmem [#allocation2], %s731
        %p733 = pneg %p72
        %p734 = pneg %p69
        %s735 = smul.u32 32, %s41
        %p736 = scmp.lt.s32.totalorder %s735, 31
        %s737 = scalar_select %p736, %s735, 31
        %s738 = smul.addr %s737, 8
        %s739 = scalar_lea.vmem %s1, %s738
        %p740 = pneg %p98
        %p741 = pneg %p95
        %s742 = smul.u32 32, %s41
        %p743 = scmp.lt.s32.totalorder %s742, 31
        %s744 = scalar_select %p743, %s742, 31
        %s745 = smul.addr %s744, 8
        %s746 = scalar_lea.vmem %s2, %s745
        %p747 = pneg %p124
        %p748 = pneg %p121
        %p749 = pneg %p145
        %p750 = pneg %p142
        %p751 = pneg %p166
        %p752 = pneg %p163
        %p753 = pneg %p187
        %p754 = pneg %p184
        %p755 = pneg %p208
        %p756 = pneg %p205
        %p757 = pneg %p229
        %p758 = pneg %p226
        %p759 = pneg %p250
        %p760 = pneg %p247
        %p761 = pneg %p271
        %p762 = pneg %p268
        %p763 = pneg %p292
        %p764 = pneg %p289
        %p765 = pneg %p313
        %p766 = pneg %p310
        %p767 = pneg %p341
        %p768 = pneg %p338
        %s769 = smul.u32 32, %s41
        %p770 = scmp.lt.s32.totalorder %s42, 1
        %s771 = scalar_select %p770, %s42, 1
        %p772 = scmp.lt.s32.totalorder %s769, 31
        %s773 = scalar_select %p772, %s769, 31
        %s774 = smul.addr %s771, 32
        %s775 = sadd.s32 %s773, %s774
        %s776 = smul.addr %s775, 8
        %s777 = scalar_lea.vmem %s12, %s776
        %p778 = pneg %p369
        %p779 = pneg %p366
        %s780 = smul.u32 32, %s41
        %p781 = scmp.lt.s32.totalorder %s42, 1
        %s782 = scalar_select %p781, %s42, 1
        %p783 = scmp.lt.s32.totalorder %s780, 31
        %s784 = scalar_select %p783, %s780, 31
        %s785 = smul.addr %s782, 32
        %s786 = sadd.s32 %s784, %s785
        %s787 = smul.addr %s786, 8
        %s788 = scalar_lea.vmem %s13, %s787
        %p789 = pneg %p397
        %p790 = pneg %p394
        %s791 = smul.u32 32, %s41
        %p792 = scmp.lt.s32.totalorder %s42, 1
        %s793 = scalar_select %p792, %s42, 1
        %p794 = scmp.lt.s32.totalorder %s791, 31
        %s795 = scalar_select %p794, %s791, 31
        %s796 = smul.addr %s793, 32
        %s797 = sadd.s32 %s795, %s796
        %s798 = smul.addr %s797, 8
        %s799 = scalar_lea.vmem %s14, %s798
        %p800 = pneg %p425
        %p801 = pneg %p422
        %s802 = smul.u32 32, %s41
        %p803 = scmp.lt.s32.totalorder %s42, 1
        %s804 = scalar_select %p803, %s42, 1
        %p805 = scmp.lt.s32.totalorder %s802, 31
        %s806 = scalar_select %p805, %s802, 31
        %s807 = smul.addr %s804, 32
        %s808 = sadd.s32 %s806, %s807
        %s809 = smul.addr %s808, 8
        %s810 = scalar_lea.vmem %s15, %s809
        %p811 = pneg %p453
        %p812 = pneg %p450
        %s813 = smul.u32 32, %s41
        %p814 = scmp.lt.s32.totalorder %s42, 1
        %s815 = scalar_select %p814, %s42, 1
        %p816 = scmp.lt.s32.totalorder %s813, 31
        %s817 = scalar_select %p816, %s813, 31
        %s818 = smul.addr %s815, 32
        %s819 = sadd.s32 %s817, %s818
        %s820 = smul.addr %s819, 8
        %s821 = scalar_lea.vmem %s16, %s820
        %p822 = pneg %p481
        %p823 = pneg %p478
        %s824 = smul.u32 32, %s41
        %p825 = scmp.lt.s32.totalorder %s42, 1
        %s826 = scalar_select %p825, %s42, 1
        %p827 = scmp.lt.s32.totalorder %s824, 31
        %s828 = scalar_select %p827, %s824, 31
        %s829 = smul.addr %s826, 32
        %s830 = sadd.s32 %s828, %s829
        %s831 = smul.addr %s830, 8
        %s832 = scalar_lea.vmem %s17, %s831
        %s833 = smul.u32 32, %s41
        %s834 = smul.u32 32, %s41
        %p835 = scmp.lt.s32.totalorder %s834, 31
        %s836 = scalar_select %p835, %s834, 31
        %s837 = smul.addr %s836, 8
        %s838 = scalar_lea.vmem %s1, %s837
        %s839 = smul.u32 32, %s41
        %s840 = smul.u32 32, %s41
        %p841 = scmp.lt.s32.totalorder %s840, 31
        %s842 = scalar_select %p841, %s840, 31
        %s843 = smul.addr %s842, 8
        %s844 = scalar_lea.vmem %s2, %s843
        %s845 = smul.u32 32, %s41
        %s846 = smul.u32 32, %s41
        %p847 = scmp.lt.s32.totalorder %s42, 1
        %s848 = scalar_select %p847, %s42, 1
        %p849 = scmp.lt.s32.totalorder %s846, 31
        %s850 = scalar_select %p849, %s846, 31
        %s851 = smul.addr %s848, 32
        %s852 = sadd.s32 %s850, %s851
        %s853 = smul.addr %s852, 8
        %s854 = scalar_lea.vmem %s12, %s853
        %s855 = smul.u32 32, %s41
        %s856 = smul.u32 32, %s41
        %p857 = scmp.lt.s32.totalorder %s42, 1
        %s858 = scalar_select %p857, %s42, 1
        %p859 = scmp.lt.s32.totalorder %s856, 31
        %s860 = scalar_select %p859, %s856, 31
        %s861 = smul.addr %s858, 32
        %s862 = sadd.s32 %s860, %s861
        %s863 = smul.addr %s862, 8
        %s864 = scalar_lea.vmem %s13, %s863
        %s865 = smul.u32 32, %s41
        %s866 = smul.u32 32, %s41
        %p867 = scmp.lt.s32.totalorder %s42, 1
        %s868 = scalar_select %p867, %s42, 1
        %p869 = scmp.lt.s32.totalorder %s866, 31
        %s870 = scalar_select %p869, %s866, 31
        %s871 = smul.addr %s868, 32
        %s872 = sadd.s32 %s870, %s871
        %s873 = smul.addr %s872, 8
        %s874 = scalar_lea.vmem %s14, %s873
        %s875 = smul.u32 32, %s41
        %s876 = smul.u32 32, %s41
        %p877 = scmp.lt.s32.totalorder %s42, 1
        %s878 = scalar_select %p877, %s42, 1
        %p879 = scmp.lt.s32.totalorder %s876, 31
        %s880 = scalar_select %p879, %s876, 31
        %s881 = smul.addr %s878, 32
        %s882 = sadd.s32 %s880, %s881
        %s883 = smul.addr %s882, 8
        %s884 = scalar_lea.vmem %s15, %s883
        %s885 = smul.u32 32, %s41
        %s886 = smul.u32 32, %s41
        %p887 = scmp.lt.s32.totalorder %s42, 1
        %s888 = scalar_select %p887, %s42, 1
        %p889 = scmp.lt.s32.totalorder %s886, 31
        %s890 = scalar_select %p889, %s886, 31
        %s891 = smul.addr %s888, 32
        %s892 = sadd.s32 %s890, %s891
        %s893 = smul.addr %s892, 8
        %s894 = scalar_lea.vmem %s16, %s893
        %s895 = smul.u32 32, %s41
        %s896 = smul.u32 32, %s41
        %p897 = scmp.lt.s32.totalorder %s42, 1
        %s898 = scalar_select %p897, %s42, 1
        %p899 = scmp.lt.s32.totalorder %s896, 31
        %s900 = scalar_select %p899, %s896, 31
        %s901 = smul.addr %s898, 32
        %s902 = sadd.s32 %s900, %s901
        %s903 = smul.addr %s902, 8
        %s904 = scalar_lea.vmem %s17, %s903
        %s905 = smul.u32 32, %s41
        %v906 = vld [vmem:[%s677] sm:$0xff]
        %v907 = vld [vmem:[%s677 + $0x8] sm:$0xff]
        %v908 = vld [vmem:[%s677 + $0x10] sm:$0xff]
        %v909 = vld [vmem:[%s677 + $0x18] sm:$0xff]
        %v910 = vld [vmem:[%s677 + $0x20] sm:$0xff]
        %v911 = vld [vmem:[%s677 + $0x28] sm:$0xff]
        %v912 = vld [vmem:[%s677 + $0x30] sm:$0xff]
        %v913 = vld [vmem:[%s677 + $0x38] sm:$0xff]
        %v914 = vld [vmem:[%s677 + $0x40] sm:$0xff]
        %v915 = vld [vmem:[%s677 + $0x48] sm:$0xff]
        %v916 = vld [vmem:[%s677 + $0x50] sm:$0xff]
        %v917 = vld [vmem:[%s677 + $0x58] sm:$0xff]
        %v918 = vld [vmem:[%s677 + $0x60] sm:$0xff]
        %v919 = vld [vmem:[%s677 + $0x68] sm:$0xff]
        %v920 = vld [vmem:[%s677 + $0x70] sm:$0xff]
        %v921 = vld [vmem:[%s677 + $0x78] sm:$0xff]
        %v922 = vld [vmem:[%s677 + $0x80] sm:$0xff]
        %v923 = vld [vmem:[%s677 + $0x88] sm:$0xff]
        %v924 = vld [vmem:[%s677 + $0x90] sm:$0xff]
        %v925 = vld [vmem:[%s677 + $0x98] sm:$0xff]
        %v926 = vld [vmem:[%s677 + $0xa0] sm:$0xff]
        %v927 = vld [vmem:[%s677 + $0xa8] sm:$0xff]
        %v928 = vld [vmem:[%s677 + $0xb0] sm:$0xff]
        %v929 = vld [vmem:[%s677 + $0xb8] sm:$0xff]
        %v930 = vld [vmem:[%s677 + $0xc0] sm:$0xff]
        %v931 = vld [vmem:[%s677 + $0xc8] sm:$0xff]
        %v932 = vld [vmem:[%s677 + $0xd0] sm:$0xff]
        %v933 = vld [vmem:[%s677 + $0xd8] sm:$0xff]
        %v934 = vld [vmem:[%s677 + $0xe0] sm:$0xff]
        %v935 = vld [vmem:[%s677 + $0xe8] sm:$0xff]
        %v936 = vld [vmem:[%s677 + $0xf0] sm:$0xff]
        %v937 = vld [vmem:[%s677 + $0xf8] sm:$0xff]
        %v938 = vld [vmem:[%s838] sm:$0xff]
        %v939 = vld [vmem:[%s838 + $0x8] sm:$0xff]
        %v940 = vld [vmem:[%s838 + $0x10] sm:$0xff]
        %v941 = vld [vmem:[%s838 + $0x18] sm:$0xff]
        %v942 = vld [vmem:[%s838 + $0x20] sm:$0xff]
        %v943 = vld [vmem:[%s838 + $0x28] sm:$0xff]
        %v944 = vld [vmem:[%s838 + $0x30] sm:$0xff]
        %v945 = vld [vmem:[%s838 + $0x38] sm:$0xff]
        %v946 = vld [vmem:[%s838 + $0x40] sm:$0xff]
        %v947 = vld [vmem:[%s838 + $0x48] sm:$0xff]
        %v948 = vld [vmem:[%s838 + $0x50] sm:$0xff]
        %v949 = vld [vmem:[%s838 + $0x58] sm:$0xff]
        %v950 = vld [vmem:[%s838 + $0x60] sm:$0xff]
        %v951 = vld [vmem:[%s838 + $0x68] sm:$0xff]
        %v952 = vld [vmem:[%s838 + $0x70] sm:$0xff]
        %v953 = vld [vmem:[%s838 + $0x78] sm:$0xff]
        %v954 = vld [vmem:[%s838 + $0x80] sm:$0xff]
        %v955 = vld [vmem:[%s838 + $0x88] sm:$0xff]
        %v956 = vld [vmem:[%s838 + $0x90] sm:$0xff]
        %v957 = vld [vmem:[%s838 + $0x98] sm:$0xff]
        %v958 = vld [vmem:[%s838 + $0xa0] sm:$0xff]
        %v959 = vld [vmem:[%s838 + $0xa8] sm:$0xff]
        %v960 = vld [vmem:[%s838 + $0xb0] sm:$0xff]
        %v961 = vld [vmem:[%s838 + $0xb8] sm:$0xff]
        %v962 = vld [vmem:[%s838 + $0xc0] sm:$0xff]
        %v963 = vld [vmem:[%s838 + $0xc8] sm:$0xff]
        %v964 = vld [vmem:[%s838 + $0xd0] sm:$0xff]
        %v965 = vld [vmem:[%s838 + $0xd8] sm:$0xff]
        %v966 = vld [vmem:[%s838 + $0xe0] sm:$0xff]
        %v967 = vld [vmem:[%s838 + $0xe8] sm:$0xff]
        %v968 = vld [vmem:[%s838 + $0xf0] sm:$0xff]
        %v969 = vld [vmem:[%s838 + $0xf8] sm:$0xff]
        %v970 = vld [vmem:[%s844] sm:$0xff]
        %v971 = vld [vmem:[%s844 + $0x8] sm:$0xff]
        %v972 = vld [vmem:[%s844 + $0x10] sm:$0xff]
        %v973 = vld [vmem:[%s844 + $0x18] sm:$0xff]
        %v974 = vld [vmem:[%s844 + $0x20] sm:$0xff]
        %v975 = vld [vmem:[%s844 + $0x28] sm:$0xff]
        %v976 = vld [vmem:[%s844 + $0x30] sm:$0xff]
        %v977 = vld [vmem:[%s844 + $0x38] sm:$0xff]
        %v978 = vld [vmem:[%s844 + $0x40] sm:$0xff]
        %v979 = vld [vmem:[%s844 + $0x48] sm:$0xff]
        %v980 = vld [vmem:[%s844 + $0x50] sm:$0xff]
        %v981 = vld [vmem:[%s844 + $0x58] sm:$0xff]
        %v982 = vld [vmem:[%s844 + $0x60] sm:$0xff]
        %v983 = vld [vmem:[%s844 + $0x68] sm:$0xff]
        %v984 = vld [vmem:[%s844 + $0x70] sm:$0xff]
        %v985 = vld [vmem:[%s844 + $0x78] sm:$0xff]
        %v986 = vld [vmem:[%s844 + $0x80] sm:$0xff]
        %v987 = vld [vmem:[%s844 + $0x88] sm:$0xff]
        %v988 = vld [vmem:[%s844 + $0x90] sm:$0xff]
        %v989 = vld [vmem:[%s844 + $0x98] sm:$0xff]
        %v990 = vld [vmem:[%s844 + $0xa0] sm:$0xff]
        %v991 = vld [vmem:[%s844 + $0xa8] sm:$0xff]
        %v992 = vld [vmem:[%s844 + $0xb0] sm:$0xff]
        %v993 = vld [vmem:[%s844 + $0xb8] sm:$0xff]
        %v994 = vld [vmem:[%s844 + $0xc0] sm:$0xff]
        %v995 = vld [vmem:[%s844 + $0xc8] sm:$0xff]
        %v996 = vld [vmem:[%s844 + $0xd0] sm:$0xff]
        %v997 = vld [vmem:[%s844 + $0xd8] sm:$0xff]
        %v998 = vld [vmem:[%s844 + $0xe0] sm:$0xff]
        %v999 = vld [vmem:[%s844 + $0xe8] sm:$0xff]
        %v1000 = vld [vmem:[%s844 + $0xf0] sm:$0xff]
        %v1001 = vld [vmem:[%s844 + $0xf8] sm:$0xff]
        %v1002 = vld [vmem:[#allocation4] sm:$0x1]
        %v1003 = vperm.slane %v1002, 0
        %vm1004 = vcmp.eq.s32.totalorder %v1003, 1
        %vm1005 = vcmp.eq.s32.totalorder %v1003, 2
        %v1006 = vld [vmem:[#allocation6] sm:$0xff]
        %v1007 = vld [vmem:[#allocation6 + $0x8] sm:$0xff]
        %v1008 = vld [vmem:[#allocation6 + $0x10] sm:$0xff]
        %v1009 = vld [vmem:[#allocation6 + $0x18] sm:$0xff]
        %vm1010 = vcmask 261120
        %v1012 = vsel %vm1010, %v906, 0
        %v1015 = vsel %vm1010, %v907, 0
        %v1018 = vsel %vm1010, %v908, 0
        %v1021 = vsel %vm1010, %v909, 0
        %v1024 = vsel %vm1010, %v910, 0
        %v1027 = vsel %vm1010, %v911, 0
        %v1030 = vsel %vm1010, %v912, 0
        %v1033 = vsel %vm1010, %v913, 0
        %v1036 = vsel %vm1010, %v914, 0
        %v1039 = vsel %vm1010, %v915, 0
        %v1042 = vsel %vm1010, %v916, 0
        %v1045 = vsel %vm1010, %v917, 0
        %v1048 = vsel %vm1010, %v918, 0
        %v1051 = vsel %vm1010, %v919, 0
        %v1054 = vsel %vm1010, %v920, 0
        %v1057 = vsel %vm1010, %v921, 0
        %v1060 = vsel %vm1010, %v922, 0
        %v1063 = vsel %vm1010, %v923, 0
        %v1066 = vsel %vm1010, %v924, 0
        %v1069 = vsel %vm1010, %v925, 0
        %v1072 = vsel %vm1010, %v926, 0
        %v1075 = vsel %vm1010, %v927, 0
        %v1078 = vsel %vm1010, %v928, 0
        %v1081 = vsel %vm1010, %v929, 0
        %v1084 = vsel %vm1010, %v930, 0
        %v1087 = vsel %vm1010, %v931, 0
        %v1090 = vsel %vm1010, %v932, 0
        %v1093 = vsel %vm1010, %v933, 0
        %v1096 = vsel %vm1010, %v934, 0
        %v1099 = vsel %vm1010, %v935, 0
        %v1102 = vsel %vm1010, %v936, 0
        %v1105 = vsel %vm1010, %v937, 0
        %1107 = vmatpush.msra.mxu0 0.0
        %1108 = vmatpush.msra.mxu0 0.0
        %1109 = vmatpush.msra.mxu0 0.0
        %1110 = vmatpush.msra.mxu0 0.0
        %1111 = vmatpush.msra.mxu0 0.0
        %1112 = vmatpush.msra.mxu0 0.0
        %1113 = vmatpush.msra.mxu0 0.0
        %1114 = vmatpush.msra.mxu0 0.0
        %1115 = vmatpush.msra.mxu0 0.0
        %1116 = vmatpush.msra.mxu0 0.0
        %1117 = vmatpush.msra.mxu0 0.0
        %1118 = vmatpush.msra.mxu0 0.0
        %1119 = vmatpush.msra.mxu0 %v1009
        %1120 = vmatpush.msra.mxu0 %v1008
        %1121 = vmatpush.msra.mxu0 %v1007
        %1122 = vmatpush.msra.mxu0 %v1006
        %1123 = vmatmul.f32.gmra.mxu0 %v1012
        %v1124 = vpop.f32.mrf.mxu0
        %v1125 = vadd.f32 0.0, %v1124
        %1126 = vmatmul.f32.gmra.mxu0 %v1015
        %v1127 = vpop.f32.mrf.mxu0
        %v1128 = vadd.f32 0.0, %v1127
        %1129 = vmatmul.f32.gmra.mxu0 %v1018
        %v1130 = vpop.f32.mrf.mxu0
        %v1131 = vadd.f32 0.0, %v1130
        %1132 = vmatmul.f32.gmra.mxu0 %v1021
        %v1133 = vpop.f32.mrf.mxu0
        %v1134 = vadd.f32 0.0, %v1133
        %1135 = vmatmul.f32.gmra.mxu0 %v1024
        %v1136 = vpop.f32.mrf.mxu0
        %v1137 = vadd.f32 0.0, %v1136
        %1138 = vmatmul.f32.gmra.mxu0 %v1027
        %v1139 = vpop.f32.mrf.mxu0
        %v1140 = vadd.f32 0.0, %v1139
        %1141 = vmatmul.f32.gmra.mxu0 %v1030
        %v1142 = vpop.f32.mrf.mxu0
        %v1143 = vadd.f32 0.0, %v1142
        %1144 = vmatmul.f32.gmra.mxu0 %v1033
        %v1145 = vpop.f32.mrf.mxu0
        %v1146 = vadd.f32 0.0, %v1145
        %1147 = vmatmul.f32.gmra.mxu0 %v1036
        %v1148 = vpop.f32.mrf.mxu0
        %v1149 = vadd.f32 0.0, %v1148
        %1150 = vmatmul.f32.gmra.mxu0 %v1039
        %v1151 = vpop.f32.mrf.mxu0
        %v1152 = vadd.f32 0.0, %v1151
        %1153 = vmatmul.f32.gmra.mxu0 %v1042
        %v1154 = vpop.f32.mrf.mxu0
        %v1155 = vadd.f32 0.0, %v1154
        %1156 = vmatmul.f32.gmra.mxu0 %v1045
        %v1157 = vpop.f32.mrf.mxu0
        %v1158 = vadd.f32 0.0, %v1157
        %1159 = vmatmul.f32.gmra.mxu0 %v1048
        %v1160 = vpop.f32.mrf.mxu0
        %v1161 = vadd.f32 0.0, %v1160
        %1162 = vmatmul.f32.gmra.mxu0 %v1051
        %v1163 = vpop.f32.mrf.mxu0
        %v1164 = vadd.f32 0.0, %v1163
        %1165 = vmatmul.f32.gmra.mxu0 %v1054
        %v1166 = vpop.f32.mrf.mxu0
        %v1167 = vadd.f32 0.0, %v1166
        %1168 = vmatmul.f32.gmra.mxu0 %v1057
        %v1169 = vpop.f32.mrf.mxu0
        %v1170 = vadd.f32 0.0, %v1169
        %1171 = vmatmul.f32.gmra.mxu0 %v1060
        %v1172 = vpop.f32.mrf.mxu0
        %v1173 = vadd.f32 0.0, %v1172
        %1174 = vmatmul.f32.gmra.mxu0 %v1063
        %v1175 = vpop.f32.mrf.mxu0
        %v1176 = vadd.f32 0.0, %v1175
        %1177 = vmatmul.f32.gmra.mxu0 %v1066
        %v1178 = vpop.f32.mrf.mxu0
        %v1179 = vadd.f32 0.0, %v1178
        %1180 = vmatmul.f32.gmra.mxu0 %v1069
        %v1181 = vpop.f32.mrf.mxu0
        %v1182 = vadd.f32 0.0, %v1181
        %1183 = vmatmul.f32.gmra.mxu0 %v1072
        %v1184 = vpop.f32.mrf.mxu0
        %v1185 = vadd.f32 0.0, %v1184
        %1186 = vmatmul.f32.gmra.mxu0 %v1075
        %v1187 = vpop.f32.mrf.mxu0
        %v1188 = vadd.f32 0.0, %v1187
        %1189 = vmatmul.f32.gmra.mxu0 %v1078
        %v1190 = vpop.f32.mrf.mxu0
        %v1191 = vadd.f32 0.0, %v1190
        %1192 = vmatmul.f32.gmra.mxu0 %v1081
        %v1193 = vpop.f32.mrf.mxu0
        %v1194 = vadd.f32 0.0, %v1193
        %1195 = vmatmul.f32.gmra.mxu0 %v1084
        %v1196 = vpop.f32.mrf.mxu0
        %v1197 = vadd.f32 0.0, %v1196
        %1198 = vmatmul.f32.gmra.mxu0 %v1087
        %v1199 = vpop.f32.mrf.mxu0
        %v1200 = vadd.f32 0.0, %v1199
        %1201 = vmatmul.f32.gmra.mxu0 %v1090
        %v1202 = vpop.f32.mrf.mxu0
        %v1203 = vadd.f32 0.0, %v1202
        %1204 = vmatmul.f32.gmra.mxu0 %v1093
        %v1205 = vpop.f32.mrf.mxu0
        %v1206 = vadd.f32 0.0, %v1205
        %1207 = vmatmul.f32.gmra.mxu0 %v1096
        %v1208 = vpop.f32.mrf.mxu0
        %v1209 = vadd.f32 0.0, %v1208
        %1210 = vmatmul.f32.gmra.mxu0 %v1099
        %v1211 = vpop.f32.mrf.mxu0
        %v1212 = vadd.f32 0.0, %v1211
        %1213 = vmatmul.f32.gmra.mxu0 %v1102
        %v1214 = vpop.f32.mrf.mxu0
        %v1215 = vadd.f32 0.0, %v1214
        %1216 = vmatmul.f32.gmra.mxu0 %v1105
        %v1217 = vpop.f32.mrf.mxu0
        %v1218 = vadd.f32 0.0, %v1217
        %1219 = vdwg.mxu0
        %v1220 = vld [vmem:[#allocation7] sm:$0x1]
        %v1222 = vperm.slane %v1220, 0
        %v1224 = vadd.f32 %v1125, %v1222
        %v1225 = vadd.f32 %v1128, %v1222
        %v1226 = vadd.f32 %v1131, %v1222
        %v1227 = vadd.f32 %v1134, %v1222
        %v1228 = vadd.f32 %v1137, %v1222
        %v1229 = vadd.f32 %v1140, %v1222
        %v1230 = vadd.f32 %v1143, %v1222
        %v1231 = vadd.f32 %v1146, %v1222
        %v1232 = vadd.f32 %v1149, %v1222
        %v1233 = vadd.f32 %v1152, %v1222
        %v1234 = vadd.f32 %v1155, %v1222
        %v1235 = vadd.f32 %v1158, %v1222
        %v1236 = vadd.f32 %v1161, %v1222
        %v1237 = vadd.f32 %v1164, %v1222
        %v1238 = vadd.f32 %v1167, %v1222
        %v1239 = vadd.f32 %v1170, %v1222
        %v1240 = vadd.f32 %v1173, %v1222
        %v1241 = vadd.f32 %v1176, %v1222
        %v1242 = vadd.f32 %v1179, %v1222
        %v1243 = vadd.f32 %v1182, %v1222
        %v1244 = vadd.f32 %v1185, %v1222
        %v1245 = vadd.f32 %v1188, %v1222
        %v1246 = vadd.f32 %v1191, %v1222
        %v1247 = vadd.f32 %v1194, %v1222
        %v1248 = vadd.f32 %v1197, %v1222
        %v1249 = vadd.f32 %v1200, %v1222
        %v1250 = vadd.f32 %v1203, %v1222
        %v1251 = vadd.f32 %v1206, %v1222
        %v1252 = vadd.f32 %v1209, %v1222
        %v1253 = vadd.f32 %v1212, %v1222
        %v1254 = vadd.f32 %v1215, %v1222
        %v1255 = vadd.f32 %v1218, %v1222
        %v1256 = vld [vmem:[#allocation9] sm:$0xff]
        %v1257 = vld [vmem:[#allocation9 + $0x8] sm:$0xff]
        %v1258 = vld [vmem:[#allocation9 + $0x10] sm:$0xff]
        %v1259 = vld [vmem:[#allocation9 + $0x18] sm:$0xff]
        %1260 = vmatpush.msra.mxu0 0.0
        %1261 = vmatpush.msra.mxu0 0.0
        %1262 = vmatpush.msra.mxu0 0.0
        %1263 = vmatpush.msra.mxu0 0.0
        %1264 = vmatpush.msra.mxu0 0.0
        %1265 = vmatpush.msra.mxu0 0.0
        %1266 = vmatpush.msra.mxu0 0.0
        %1267 = vmatpush.msra.mxu0 0.0
        %1268 = vmatpush.msra.mxu0 0.0
        %1269 = vmatpush.msra.mxu0 0.0
        %1270 = vmatpush.msra.mxu0 0.0
        %1271 = vmatpush.msra.mxu0 0.0
        %1272 = vmatpush.msra.mxu0 %v1259
        %1273 = vmatpush.msra.mxu0 %v1258
        %1274 = vmatpush.msra.mxu0 %v1257
        %1275 = vmatpush.msra.mxu0 %v1256
        %1276 = vmatmul.f32.gmra.mxu0 %v1012
        %v1277 = vpop.f32.mrf.mxu0
        %v1278 = vadd.f32 0.0, %v1277
        %1279 = vmatmul.f32.gmra.mxu0 %v1015
        %v1280 = vpop.f32.mrf.mxu0
        %v1281 = vadd.f32 0.0, %v1280
        %1282 = vmatmul.f32.gmra.mxu0 %v1018
        %v1283 = vpop.f32.mrf.mxu0
        %v1284 = vadd.f32 0.0, %v1283
        %1285 = vmatmul.f32.gmra.mxu0 %v1021
        %v1286 = vpop.f32.mrf.mxu0
        %v1287 = vadd.f32 0.0, %v1286
        %1288 = vmatmul.f32.gmra.mxu0 %v1024
        %v1289 = vpop.f32.mrf.mxu0
        %v1290 = vadd.f32 0.0, %v1289
        %1291 = vmatmul.f32.gmra.mxu0 %v1027
        %v1292 = vpop.f32.mrf.mxu0
        %v1293 = vadd.f32 0.0, %v1292
        %1294 = vmatmul.f32.gmra.mxu0 %v1030
        %v1295 = vpop.f32.mrf.mxu0
        %v1296 = vadd.f32 0.0, %v1295
        %1297 = vmatmul.f32.gmra.mxu0 %v1033
        %v1298 = vpop.f32.mrf.mxu0
        %v1299 = vadd.f32 0.0, %v1298
        %1300 = vmatmul.f32.gmra.mxu0 %v1036
        %v1301 = vpop.f32.mrf.mxu0
        %v1302 = vadd.f32 0.0, %v1301
        %1303 = vmatmul.f32.gmra.mxu0 %v1039
        %v1304 = vpop.f32.mrf.mxu0
        %v1305 = vadd.f32 0.0, %v1304
        %1306 = vmatmul.f32.gmra.mxu0 %v1042
        %v1307 = vpop.f32.mrf.mxu0
        %v1308 = vadd.f32 0.0, %v1307
        %1309 = vmatmul.f32.gmra.mxu0 %v1045
        %v1310 = vpop.f32.mrf.mxu0
        %v1311 = vadd.f32 0.0, %v1310
        %1312 = vmatmul.f32.gmra.mxu0 %v1048
        %v1313 = vpop.f32.mrf.mxu0
        %v1314 = vadd.f32 0.0, %v1313
        %1315 = vmatmul.f32.gmra.mxu0 %v1051
        %v1316 = vpop.f32.mrf.mxu0
        %v1317 = vadd.f32 0.0, %v1316
        %1318 = vmatmul.f32.gmra.mxu0 %v1054
        %v1319 = vpop.f32.mrf.mxu0
        %v1320 = vadd.f32 0.0, %v1319
        %1321 = vmatmul.f32.gmra.mxu0 %v1057
        %v1322 = vpop.f32.mrf.mxu0
        %v1323 = vadd.f32 0.0, %v1322
        %1324 = vmatmul.f32.gmra.mxu0 %v1060
        %v1325 = vpop.f32.mrf.mxu0
        %v1326 = vadd.f32 0.0, %v1325
        %1327 = vmatmul.f32.gmra.mxu0 %v1063
        %v1328 = vpop.f32.mrf.mxu0
        %v1329 = vadd.f32 0.0, %v1328
        %1330 = vmatmul.f32.gmra.mxu0 %v1066
        %v1331 = vpop.f32.mrf.mxu0
        %v1332 = vadd.f32 0.0, %v1331
        %1333 = vmatmul.f32.gmra.mxu0 %v1069
        %v1334 = vpop.f32.mrf.mxu0
        %v1335 = vadd.f32 0.0, %v1334
        %1336 = vmatmul.f32.gmra.mxu0 %v1072
        %v1337 = vpop.f32.mrf.mxu0
        %v1338 = vadd.f32 0.0, %v1337
        %1339 = vmatmul.f32.gmra.mxu0 %v1075
        %v1340 = vpop.f32.mrf.mxu0
        %v1341 = vadd.f32 0.0, %v1340
        %1342 = vmatmul.f32.gmra.mxu0 %v1078
        %v1343 = vpop.f32.mrf.mxu0
        %v1344 = vadd.f32 0.0, %v1343
        %1345 = vmatmul.f32.gmra.mxu0 %v1081
        %v1346 = vpop.f32.mrf.mxu0
        %v1347 = vadd.f32 0.0, %v1346
        %1348 = vmatmul.f32.gmra.mxu0 %v1084
        %v1349 = vpop.f32.mrf.mxu0
        %v1350 = vadd.f32 0.0, %v1349
        %1351 = vmatmul.f32.gmra.mxu0 %v1087
        %v1352 = vpop.f32.mrf.mxu0
        %v1353 = vadd.f32 0.0, %v1352
        %1354 = vmatmul.f32.gmra.mxu0 %v1090
        %v1355 = vpop.f32.mrf.mxu0
        %v1356 = vadd.f32 0.0, %v1355
        %1357 = vmatmul.f32.gmra.mxu0 %v1093
        %v1358 = vpop.f32.mrf.mxu0
        %v1359 = vadd.f32 0.0, %v1358
        %1360 = vmatmul.f32.gmra.mxu0 %v1096
        %v1361 = vpop.f32.mrf.mxu0
        %v1362 = vadd.f32 0.0, %v1361
        %1363 = vmatmul.f32.gmra.mxu0 %v1099
        %v1364 = vpop.f32.mrf.mxu0
        %v1365 = vadd.f32 0.0, %v1364
        %1366 = vmatmul.f32.gmra.mxu0 %v1102
        %v1367 = vpop.f32.mrf.mxu0
        %v1368 = vadd.f32 0.0, %v1367
        %1369 = vmatmul.f32.gmra.mxu0 %v1105
        %v1370 = vpop.f32.mrf.mxu0
        %v1371 = vadd.f32 0.0, %v1370
        %1372 = vdwg.mxu0
        %v1373 = vld [vmem:[#allocation10] sm:$0x1]
        %v1375 = vperm.slane %v1373, 0
        %v1377 = vadd.f32 %v1278, %v1375
        %v1378 = vadd.f32 %v1281, %v1375
        %v1379 = vadd.f32 %v1284, %v1375
        %v1380 = vadd.f32 %v1287, %v1375
        %v1381 = vadd.f32 %v1290, %v1375
        %v1382 = vadd.f32 %v1293, %v1375
        %v1383 = vadd.f32 %v1296, %v1375
        %v1384 = vadd.f32 %v1299, %v1375
        %v1385 = vadd.f32 %v1302, %v1375
        %v1386 = vadd.f32 %v1305, %v1375
        %v1387 = vadd.f32 %v1308, %v1375
        %v1388 = vadd.f32 %v1311, %v1375
        %v1389 = vadd.f32 %v1314, %v1375
        %v1390 = vadd.f32 %v1317, %v1375
        %v1391 = vadd.f32 %v1320, %v1375
        %v1392 = vadd.f32 %v1323, %v1375
        %v1393 = vadd.f32 %v1326, %v1375
        %v1394 = vadd.f32 %v1329, %v1375
        %v1395 = vadd.f32 %v1332, %v1375
        %v1396 = vadd.f32 %v1335, %v1375
        %v1397 = vadd.f32 %v1338, %v1375
        %v1398 = vadd.f32 %v1341, %v1375
        %v1399 = vadd.f32 %v1344, %v1375
        %v1400 = vadd.f32 %v1347, %v1375
        %v1401 = vadd.f32 %v1350, %v1375
        %v1402 = vadd.f32 %v1353, %v1375
        %v1403 = vadd.f32 %v1356, %v1375
        %v1404 = vadd.f32 %v1359, %v1375
        %v1405 = vadd.f32 %v1362, %v1375
        %v1406 = vadd.f32 %v1365, %v1375
        %v1407 = vadd.f32 %v1368, %v1375
        %v1408 = vadd.f32 %v1371, %v1375
        %v1409 = vld [vmem:[#allocation12] sm:$0xff]
        %v1410 = vld [vmem:[#allocation12 + $0x8] sm:$0xff]
        %v1411 = vld [vmem:[#allocation12 + $0x10] sm:$0xff]
        %v1412 = vld [vmem:[#allocation12 + $0x18] sm:$0xff]
        %1413 = vmatpush.msra.mxu0 0.0
        %1414 = vmatpush.msra.mxu0 0.0
        %1415 = vmatpush.msra.mxu0 0.0
        %1416 = vmatpush.msra.mxu0 0.0
        %1417 = vmatpush.msra.mxu0 0.0
        %1418 = vmatpush.msra.mxu0 0.0
        %1419 = vmatpush.msra.mxu0 0.0
        %1420 = vmatpush.msra.mxu0 0.0
        %1421 = vmatpush.msra.mxu0 0.0
        %1422 = vmatpush.msra.mxu0 0.0
        %1423 = vmatpush.msra.mxu0 0.0
        %1424 = vmatpush.msra.mxu0 0.0
        %1425 = vmatpush.msra.mxu0 %v1412
        %1426 = vmatpush.msra.mxu0 %v1411
        %1427 = vmatpush.msra.mxu0 %v1410
        %1428 = vmatpush.msra.mxu0 %v1409
        %1429 = vmatmul.f32.gmra.mxu0 %v1012
        %v1430 = vpop.f32.mrf.mxu0
        %v1431 = vadd.f32 0.0, %v1430
        %1432 = vmatmul.f32.gmra.mxu0 %v1015
        %v1433 = vpop.f32.mrf.mxu0
        %v1434 = vadd.f32 0.0, %v1433
        %1435 = vmatmul.f32.gmra.mxu0 %v1018
        %v1436 = vpop.f32.mrf.mxu0
        %v1437 = vadd.f32 0.0, %v1436
        %1438 = vmatmul.f32.gmra.mxu0 %v1021
        %v1439 = vpop.f32.mrf.mxu0
        %v1440 = vadd.f32 0.0, %v1439
        %1441 = vmatmul.f32.gmra.mxu0 %v1024
        %v1442 = vpop.f32.mrf.mxu0
        %v1443 = vadd.f32 0.0, %v1442
        %1444 = vmatmul.f32.gmra.mxu0 %v1027
        %v1445 = vpop.f32.mrf.mxu0
        %v1446 = vadd.f32 0.0, %v1445
        %1447 = vmatmul.f32.gmra.mxu0 %v1030
        %v1448 = vpop.f32.mrf.mxu0
        %v1449 = vadd.f32 0.0, %v1448
        %1450 = vmatmul.f32.gmra.mxu0 %v1033
        %v1451 = vpop.f32.mrf.mxu0
        %v1452 = vadd.f32 0.0, %v1451
        %1453 = vmatmul.f32.gmra.mxu0 %v1036
        %v1454 = vpop.f32.mrf.mxu0
        %v1455 = vadd.f32 0.0, %v1454
        %1456 = vmatmul.f32.gmra.mxu0 %v1039
        %v1457 = vpop.f32.mrf.mxu0
        %v1458 = vadd.f32 0.0, %v1457
        %1459 = vmatmul.f32.gmra.mxu0 %v1042
        %v1460 = vpop.f32.mrf.mxu0
        %v1461 = vadd.f32 0.0, %v1460
        %1462 = vmatmul.f32.gmra.mxu0 %v1045
        %v1463 = vpop.f32.mrf.mxu0
        %v1464 = vadd.f32 0.0, %v1463
        %1465 = vmatmul.f32.gmra.mxu0 %v1048
        %v1466 = vpop.f32.mrf.mxu0
        %v1467 = vadd.f32 0.0, %v1466
        %1468 = vmatmul.f32.gmra.mxu0 %v1051
        %v1469 = vpop.f32.mrf.mxu0
        %v1470 = vadd.f32 0.0, %v1469
        %1471 = vmatmul.f32.gmra.mxu0 %v1054
        %v1472 = vpop.f32.mrf.mxu0
        %v1473 = vadd.f32 0.0, %v1472
        %1474 = vmatmul.f32.gmra.mxu0 %v1057
        %v1475 = vpop.f32.mrf.mxu0
        %v1476 = vadd.f32 0.0, %v1475
        %1477 = vmatmul.f32.gmra.mxu0 %v1060
        %v1478 = vpop.f32.mrf.mxu0
        %v1479 = vadd.f32 0.0, %v1478
        %1480 = vmatmul.f32.gmra.mxu0 %v1063
        %v1481 = vpop.f32.mrf.mxu0
        %v1482 = vadd.f32 0.0, %v1481
        %1483 = vmatmul.f32.gmra.mxu0 %v1066
        %v1484 = vpop.f32.mrf.mxu0
        %v1485 = vadd.f32 0.0, %v1484
        %1486 = vmatmul.f32.gmra.mxu0 %v1069
        %v1487 = vpop.f32.mrf.mxu0
        %v1488 = vadd.f32 0.0, %v1487
        %1489 = vmatmul.f32.gmra.mxu0 %v1072
        %v1490 = vpop.f32.mrf.mxu0
        %v1491 = vadd.f32 0.0, %v1490
        %1492 = vmatmul.f32.gmra.mxu0 %v1075
        %v1493 = vpop.f32.mrf.mxu0
        %v1494 = vadd.f32 0.0, %v1493
        %1495 = vmatmul.f32.gmra.mxu0 %v1078
        %v1496 = vpop.f32.mrf.mxu0
        %v1497 = vadd.f32 0.0, %v1496
        %1498 = vmatmul.f32.gmra.mxu0 %v1081
        %v1499 = vpop.f32.mrf.mxu0
        %v1500 = vadd.f32 0.0, %v1499
        %1501 = vmatmul.f32.gmra.mxu0 %v1084
        %v1502 = vpop.f32.mrf.mxu0
        %v1503 = vadd.f32 0.0, %v1502
        %1504 = vmatmul.f32.gmra.mxu0 %v1087
        %v1505 = vpop.f32.mrf.mxu0
        %v1506 = vadd.f32 0.0, %v1505
        %1507 = vmatmul.f32.gmra.mxu0 %v1090
        %v1508 = vpop.f32.mrf.mxu0
        %v1509 = vadd.f32 0.0, %v1508
        %1510 = vmatmul.f32.gmra.mxu0 %v1093
        %v1511 = vpop.f32.mrf.mxu0
        %v1512 = vadd.f32 0.0, %v1511
        %1513 = vmatmul.f32.gmra.mxu0 %v1096
        %v1514 = vpop.f32.mrf.mxu0
        %v1515 = vadd.f32 0.0, %v1514
        %1516 = vmatmul.f32.gmra.mxu0 %v1099
        %v1517 = vpop.f32.mrf.mxu0
        %v1518 = vadd.f32 0.0, %v1517
        %1519 = vmatmul.f32.gmra.mxu0 %v1102
        %v1520 = vpop.f32.mrf.mxu0
        %v1521 = vadd.f32 0.0, %v1520
        %1522 = vmatmul.f32.gmra.mxu0 %v1105
        %v1523 = vpop.f32.mrf.mxu0
        %v1524 = vadd.f32 0.0, %v1523
        %1525 = vdwg.mxu0
        %v1526 = vld [vmem:[#allocation13] sm:$0x1]
        %v1528 = vperm.slane %v1526, 0
        %v1530 = vadd.f32 %v1431, %v1528
        %v1531 = vadd.f32 %v1434, %v1528
        %v1532 = vadd.f32 %v1437, %v1528
        %v1533 = vadd.f32 %v1440, %v1528
        %v1534 = vadd.f32 %v1443, %v1528
        %v1535 = vadd.f32 %v1446, %v1528
        %v1536 = vadd.f32 %v1449, %v1528
        %v1537 = vadd.f32 %v1452, %v1528
        %v1538 = vadd.f32 %v1455, %v1528
        %v1539 = vadd.f32 %v1458, %v1528
        %v1540 = vadd.f32 %v1461, %v1528
        %v1541 = vadd.f32 %v1464, %v1528
        %v1542 = vadd.f32 %v1467, %v1528
        %v1543 = vadd.f32 %v1470, %v1528
        %v1544 = vadd.f32 %v1473, %v1528
        %v1545 = vadd.f32 %v1476, %v1528
        %v1546 = vadd.f32 %v1479, %v1528
        %v1547 = vadd.f32 %v1482, %v1528
        %v1548 = vadd.f32 %v1485, %v1528
        %v1549 = vadd.f32 %v1488, %v1528
        %v1550 = vadd.f32 %v1491, %v1528
        %v1551 = vadd.f32 %v1494, %v1528
        %v1552 = vadd.f32 %v1497, %v1528
        %v1553 = vadd.f32 %v1500, %v1528
        %v1554 = vadd.f32 %v1503, %v1528
        %v1555 = vadd.f32 %v1506, %v1528
        %v1556 = vadd.f32 %v1509, %v1528
        %v1557 = vadd.f32 %v1512, %v1528
        %v1558 = vadd.f32 %v1515, %v1528
        %v1559 = vadd.f32 %v1518, %v1528
        %v1560 = vadd.f32 %v1521, %v1528
        %v1561 = vadd.f32 %v1524, %v1528
        %v1562 = vld [vmem:[#allocation15] sm:$0xff]
        %v1563 = vld [vmem:[#allocation15 + $0x8] sm:$0xff]
        %v1564 = vld [vmem:[#allocation15 + $0x10] sm:$0xff]
        %v1565 = vld [vmem:[#allocation15 + $0x18] sm:$0xff]
        %1566 = vmatpush.msra.mxu0 0.0
        %1567 = vmatpush.msra.mxu0 0.0
        %1568 = vmatpush.msra.mxu0 0.0
        %1569 = vmatpush.msra.mxu0 0.0
        %1570 = vmatpush.msra.mxu0 0.0
        %1571 = vmatpush.msra.mxu0 0.0
        %1572 = vmatpush.msra.mxu0 0.0
        %1573 = vmatpush.msra.mxu0 0.0
        %1574 = vmatpush.msra.mxu0 0.0
        %1575 = vmatpush.msra.mxu0 0.0
        %1576 = vmatpush.msra.mxu0 0.0
        %1577 = vmatpush.msra.mxu0 0.0
        %1578 = vmatpush.msra.mxu0 %v1565
        %1579 = vmatpush.msra.mxu0 %v1564
        %1580 = vmatpush.msra.mxu0 %v1563
        %1581 = vmatpush.msra.mxu0 %v1562
        %1582 = vmatmul.f32.gmra.mxu0 %v1012
        %v1583 = vpop.f32.mrf.mxu0
        %v1584 = vadd.f32 0.0, %v1583
        %1585 = vmatmul.f32.gmra.mxu0 %v1015
        %v1586 = vpop.f32.mrf.mxu0
        %v1587 = vadd.f32 0.0, %v1586
        %1588 = vmatmul.f32.gmra.mxu0 %v1018
        %v1589 = vpop.f32.mrf.mxu0
        %v1590 = vadd.f32 0.0, %v1589
        %1591 = vmatmul.f32.gmra.mxu0 %v1021
        %v1592 = vpop.f32.mrf.mxu0
        %v1593 = vadd.f32 0.0, %v1592
        %1594 = vmatmul.f32.gmra.mxu0 %v1024
        %v1595 = vpop.f32.mrf.mxu0
        %v1596 = vadd.f32 0.0, %v1595
        %1597 = vmatmul.f32.gmra.mxu0 %v1027
        %v1598 = vpop.f32.mrf.mxu0
        %v1599 = vadd.f32 0.0, %v1598
        %1600 = vmatmul.f32.gmra.mxu0 %v1030
        %v1601 = vpop.f32.mrf.mxu0
        %v1602 = vadd.f32 0.0, %v1601
        %1603 = vmatmul.f32.gmra.mxu0 %v1033
        %v1604 = vpop.f32.mrf.mxu0
        %v1605 = vadd.f32 0.0, %v1604
        %1606 = vmatmul.f32.gmra.mxu0 %v1036
        %v1607 = vpop.f32.mrf.mxu0
        %v1608 = vadd.f32 0.0, %v1607
        %1609 = vmatmul.f32.gmra.mxu0 %v1039
        %v1610 = vpop.f32.mrf.mxu0
        %v1611 = vadd.f32 0.0, %v1610
        %1612 = vmatmul.f32.gmra.mxu0 %v1042
        %v1613 = vpop.f32.mrf.mxu0
        %v1614 = vadd.f32 0.0, %v1613
        %1615 = vmatmul.f32.gmra.mxu0 %v1045
        %v1616 = vpop.f32.mrf.mxu0
        %v1617 = vadd.f32 0.0, %v1616
        %1618 = vmatmul.f32.gmra.mxu0 %v1048
        %v1619 = vpop.f32.mrf.mxu0
        %v1620 = vadd.f32 0.0, %v1619
        %1621 = vmatmul.f32.gmra.mxu0 %v1051
        %v1622 = vpop.f32.mrf.mxu0
        %v1623 = vadd.f32 0.0, %v1622
        %1624 = vmatmul.f32.gmra.mxu0 %v1054
        %v1625 = vpop.f32.mrf.mxu0
        %v1626 = vadd.f32 0.0, %v1625
        %1627 = vmatmul.f32.gmra.mxu0 %v1057
        %v1628 = vpop.f32.mrf.mxu0
        %v1629 = vadd.f32 0.0, %v1628
        %1630 = vmatmul.f32.gmra.mxu0 %v1060
        %v1631 = vpop.f32.mrf.mxu0
        %v1632 = vadd.f32 0.0, %v1631
        %1633 = vmatmul.f32.gmra.mxu0 %v1063
        %v1634 = vpop.f32.mrf.mxu0
        %v1635 = vadd.f32 0.0, %v1634
        %1636 = vmatmul.f32.gmra.mxu0 %v1066
        %v1637 = vpop.f32.mrf.mxu0
        %v1638 = vadd.f32 0.0, %v1637
        %1639 = vmatmul.f32.gmra.mxu0 %v1069
        %v1640 = vpop.f32.mrf.mxu0
        %v1641 = vadd.f32 0.0, %v1640
        %1642 = vmatmul.f32.gmra.mxu0 %v1072
        %v1643 = vpop.f32.mrf.mxu0
        %v1644 = vadd.f32 0.0, %v1643
        %1645 = vmatmul.f32.gmra.mxu0 %v1075
        %v1646 = vpop.f32.mrf.mxu0
        %v1647 = vadd.f32 0.0, %v1646
        %1648 = vmatmul.f32.gmra.mxu0 %v1078
        %v1649 = vpop.f32.mrf.mxu0
        %v1650 = vadd.f32 0.0, %v1649
        %1651 = vmatmul.f32.gmra.mxu0 %v1081
        %v1652 = vpop.f32.mrf.mxu0
        %v1653 = vadd.f32 0.0, %v1652
        %1654 = vmatmul.f32.gmra.mxu0 %v1084
        %v1655 = vpop.f32.mrf.mxu0
        %v1656 = vadd.f32 0.0, %v1655
        %1657 = vmatmul.f32.gmra.mxu0 %v1087
        %v1658 = vpop.f32.mrf.mxu0
        %v1659 = vadd.f32 0.0, %v1658
        %1660 = vmatmul.f32.gmra.mxu0 %v1090
        %v1661 = vpop.f32.mrf.mxu0
        %v1662 = vadd.f32 0.0, %v1661
        %1663 = vmatmul.f32.gmra.mxu0 %v1093
        %v1664 = vpop.f32.mrf.mxu0
        %v1665 = vadd.f32 0.0, %v1664
        %1666 = vmatmul.f32.gmra.mxu0 %v1096
        %v1667 = vpop.f32.mrf.mxu0
        %v1668 = vadd.f32 0.0, %v1667
        %1669 = vmatmul.f32.gmra.mxu0 %v1099
        %v1670 = vpop.f32.mrf.mxu0
        %v1671 = vadd.f32 0.0, %v1670
        %1672 = vmatmul.f32.gmra.mxu0 %v1102
        %v1673 = vpop.f32.mrf.mxu0
        %v1674 = vadd.f32 0.0, %v1673
        %1675 = vmatmul.f32.gmra.mxu0 %v1105
        %v1676 = vpop.f32.mrf.mxu0
        %v1677 = vadd.f32 0.0, %v1676
        %1678 = vdwg.mxu0
        %v1679 = vld [vmem:[#allocation16] sm:$0x1]
        %v1681 = vperm.slane %v1679, 0
        %v1683 = vadd.f32 %v1584, %v1681
        %v1684 = vadd.f32 %v1587, %v1681
        %v1685 = vadd.f32 %v1590, %v1681
        %v1686 = vadd.f32 %v1593, %v1681
        %v1687 = vadd.f32 %v1596, %v1681
        %v1688 = vadd.f32 %v1599, %v1681
        %v1689 = vadd.f32 %v1602, %v1681
        %v1690 = vadd.f32 %v1605, %v1681
        %v1691 = vadd.f32 %v1608, %v1681
        %v1692 = vadd.f32 %v1611, %v1681
        %v1693 = vadd.f32 %v1614, %v1681
        %v1694 = vadd.f32 %v1617, %v1681
        %v1695 = vadd.f32 %v1620, %v1681
        %v1696 = vadd.f32 %v1623, %v1681
        %v1697 = vadd.f32 %v1626, %v1681
        %v1698 = vadd.f32 %v1629, %v1681
        %v1699 = vadd.f32 %v1632, %v1681
        %v1700 = vadd.f32 %v1635, %v1681
        %v1701 = vadd.f32 %v1638, %v1681
        %v1702 = vadd.f32 %v1641, %v1681
        %v1703 = vadd.f32 %v1644, %v1681
        %v1704 = vadd.f32 %v1647, %v1681
        %v1705 = vadd.f32 %v1650, %v1681
        %v1706 = vadd.f32 %v1653, %v1681
        %v1707 = vadd.f32 %v1656, %v1681
        %v1708 = vadd.f32 %v1659, %v1681
        %v1709 = vadd.f32 %v1662, %v1681
        %v1710 = vadd.f32 %v1665, %v1681
        %v1711 = vadd.f32 %v1668, %v1681
        %v1712 = vadd.f32 %v1671, %v1681
        %v1713 = vadd.f32 %v1674, %v1681
        %v1714 = vadd.f32 %v1677, %v1681
        %v1715 = vmul.f32 %v1377, 1.442695
        %v1716 = vpow.pop %v1715
        %v1717 = vmul.f32 %v1378, 1.442695
        %v1718 = vpow.pop %v1717
        %v1719 = vmul.f32 %v1379, 1.442695
        %v1720 = vpow.pop %v1719
        %v1721 = vmul.f32 %v1380, 1.442695
        %v1722 = vpow.pop %v1721
        %v1723 = vmul.f32 %v1381, 1.442695
        %v1724 = vpow.pop %v1723
        %v1725 = vmul.f32 %v1382, 1.442695
        %v1726 = vpow.pop %v1725
        %v1727 = vmul.f32 %v1383, 1.442695
        %v1728 = vpow.pop %v1727
        %v1729 = vmul.f32 %v1384, 1.442695
        %v1730 = vpow.pop %v1729
        %v1731 = vmul.f32 %v1385, 1.442695
        %v1732 = vpow.pop %v1731
        %v1733 = vmul.f32 %v1386, 1.442695
        %v1734 = vpow.pop %v1733
        %v1735 = vmul.f32 %v1387, 1.442695
        %v1736 = vpow.pop %v1735
        %v1737 = vmul.f32 %v1388, 1.442695
        %v1738 = vpow.pop %v1737
        %v1739 = vmul.f32 %v1389, 1.442695
        %v1740 = vpow.pop %v1739
        %v1741 = vmul.f32 %v1390, 1.442695
        %v1742 = vpow.pop %v1741
        %v1743 = vmul.f32 %v1391, 1.442695
        %v1744 = vpow.pop %v1743
        %v1745 = vmul.f32 %v1392, 1.442695
        %v1746 = vpow.pop %v1745
        %v1747 = vmul.f32 %v1393, 1.442695
        %v1748 = vpow.pop %v1747
        %v1749 = vmul.f32 %v1394, 1.442695
        %v1750 = vpow.pop %v1749
        %v1751 = vmul.f32 %v1395, 1.442695
        %v1752 = vpow.pop %v1751
        %v1753 = vmul.f32 %v1396, 1.442695
        %v1754 = vpow.pop %v1753
        %v1755 = vmul.f32 %v1397, 1.442695
        %v1756 = vpow.pop %v1755
        %v1757 = vmul.f32 %v1398, 1.442695
        %v1758 = vpow.pop %v1757
        %v1759 = vmul.f32 %v1399, 1.442695
        %v1760 = vpow.pop %v1759
        %v1761 = vmul.f32 %v1400, 1.442695
        %v1762 = vpow.pop %v1761
        %v1763 = vmul.f32 %v1401, 1.442695
        %v1764 = vpow.pop %v1763
        %v1765 = vmul.f32 %v1402, 1.442695
        %v1766 = vpow.pop %v1765
        %v1767 = vmul.f32 %v1403, 1.442695
        %v1768 = vpow.pop %v1767
        %v1769 = vmul.f32 %v1404, 1.442695
        %v1770 = vpow.pop %v1769
        %v1771 = vmul.f32 %v1405, 1.442695
        %v1772 = vpow.pop %v1771
        %v1773 = vmul.f32 %v1406, 1.442695
        %v1774 = vpow.pop %v1773
        %v1775 = vmul.f32 %v1407, 1.442695
        %v1776 = vpow.pop %v1775
        %v1777 = vmul.f32 %v1408, 1.442695
        %v1778 = vpow.pop %v1777
        %v1779 = vmul.f32 %v1716, %v938
        %v1780 = vmul.f32 %v1718, %v939
        %v1781 = vmul.f32 %v1720, %v940
        %v1782 = vmul.f32 %v1722, %v941
        %v1783 = vmul.f32 %v1724, %v942
        %v1784 = vmul.f32 %v1726, %v943
        %v1785 = vmul.f32 %v1728, %v944
        %v1786 = vmul.f32 %v1730, %v945
        %v1787 = vmul.f32 %v1732, %v946
        %v1788 = vmul.f32 %v1734, %v947
        %v1789 = vmul.f32 %v1736, %v948
        %v1790 = vmul.f32 %v1738, %v949
        %v1791 = vmul.f32 %v1740, %v950
        %v1792 = vmul.f32 %v1742, %v951
        %v1793 = vmul.f32 %v1744, %v952
        %v1794 = vmul.f32 %v1746, %v953
        %v1795 = vmul.f32 %v1748, %v954
        %v1796 = vmul.f32 %v1750, %v955
        %v1797 = vmul.f32 %v1752, %v956
        %v1798 = vmul.f32 %v1754, %v957
        %v1799 = vmul.f32 %v1756, %v958
        %v1800 = vmul.f32 %v1758, %v959
        %v1801 = vmul.f32 %v1760, %v960
        %v1802 = vmul.f32 %v1762, %v961
        %v1803 = vmul.f32 %v1764, %v962
        %v1804 = vmul.f32 %v1766, %v963
        %v1805 = vmul.f32 %v1768, %v964
        %v1806 = vmul.f32 %v1770, %v965
        %v1807 = vmul.f32 %v1772, %v966
        %v1808 = vmul.f32 %v1774, %v967
        %v1809 = vmul.f32 %v1776, %v968
        %v1810 = vmul.f32 %v1778, %v969
        %v1811 = vmul.f32 %v1377, %v938
        %v1812 = vmul.f32 %v1378, %v939
        %v1813 = vmul.f32 %v1379, %v940
        %v1814 = vmul.f32 %v1380, %v941
        %v1815 = vmul.f32 %v1381, %v942
        %v1816 = vmul.f32 %v1382, %v943
        %v1817 = vmul.f32 %v1383, %v944
        %v1818 = vmul.f32 %v1384, %v945
        %v1819 = vmul.f32 %v1385, %v946
        %v1820 = vmul.f32 %v1386, %v947
        %v1821 = vmul.f32 %v1387, %v948
        %v1822 = vmul.f32 %v1388, %v949
        %v1823 = vmul.f32 %v1389, %v950
        %v1824 = vmul.f32 %v1390, %v951
        %v1825 = vmul.f32 %v1391, %v952
        %v1826 = vmul.f32 %v1392, %v953
        %v1827 = vmul.f32 %v1393, %v954
        %v1828 = vmul.f32 %v1394, %v955
        %v1829 = vmul.f32 %v1395, %v956
        %v1830 = vmul.f32 %v1396, %v957
        %v1831 = vmul.f32 %v1397, %v958
        %v1832 = vmul.f32 %v1398, %v959
        %v1833 = vmul.f32 %v1399, %v960
        %v1834 = vmul.f32 %v1400, %v961
        %v1835 = vmul.f32 %v1401, %v962
        %v1836 = vmul.f32 %v1402, %v963
        %v1837 = vmul.f32 %v1403, %v964
        %v1838 = vmul.f32 %v1404, %v965
        %v1839 = vmul.f32 %v1405, %v966
        %v1840 = vmul.f32 %v1406, %v967
        %v1841 = vmul.f32 %v1407, %v968
        %v1842 = vmul.f32 %v1408, %v969
        %v1843 = vadd.f32 %v1811, %v970
        %v1844 = vadd.f32 %v1812, %v971
        %v1845 = vadd.f32 %v1813, %v972
        %v1846 = vadd.f32 %v1814, %v973
        %v1847 = vadd.f32 %v1815, %v974
        %v1848 = vadd.f32 %v1816, %v975
        %v1849 = vadd.f32 %v1817, %v976
        %v1850 = vadd.f32 %v1818, %v977
        %v1851 = vadd.f32 %v1819, %v978
        %v1852 = vadd.f32 %v1820, %v979
        %v1853 = vadd.f32 %v1821, %v980
        %v1854 = vadd.f32 %v1822, %v981
        %v1855 = vadd.f32 %v1823, %v982
        %v1856 = vadd.f32 %v1824, %v983
        %v1857 = vadd.f32 %v1825, %v984
        %v1858 = vadd.f32 %v1826, %v985
        %v1859 = vadd.f32 %v1827, %v986
        %v1860 = vadd.f32 %v1828, %v987
        %v1861 = vadd.f32 %v1829, %v988
        %v1862 = vadd.f32 %v1830, %v989
        %v1863 = vadd.f32 %v1831, %v990
        %v1864 = vadd.f32 %v1832, %v991
        %v1865 = vadd.f32 %v1833, %v992
        %v1866 = vadd.f32 %v1834, %v993
        %v1867 = vadd.f32 %v1835, %v994
        %v1868 = vadd.f32 %v1836, %v995
        %v1869 = vadd.f32 %v1837, %v996
        %v1870 = vadd.f32 %v1838, %v997
        %v1871 = vadd.f32 %v1839, %v998
        %v1872 = vadd.f32 %v1840, %v999
        %v1873 = vadd.f32 %v1841, %v1000
        %v1874 = vadd.f32 %v1842, %v1001
        %v1875 = vsel %vm1004, %v1779, %v1843
        %v1876 = vsel %vm1004, %v1780, %v1844
        %v1877 = vsel %vm1004, %v1781, %v1845
        %v1878 = vsel %vm1004, %v1782, %v1846
        %v1879 = vsel %vm1004, %v1783, %v1847
        %v1880 = vsel %vm1004, %v1784, %v1848
        %v1881 = vsel %vm1004, %v1785, %v1849
        %v1882 = vsel %vm1004, %v1786, %v1850
        %v1883 = vsel %vm1004, %v1787, %v1851
        %v1884 = vsel %vm1004, %v1788, %v1852
        %v1885 = vsel %vm1004, %v1789, %v1853
        %v1886 = vsel %vm1004, %v1790, %v1854
        %v1887 = vsel %vm1004, %v1791, %v1855
        %v1888 = vsel %vm1004, %v1792, %v1856
        %v1889 = vsel %vm1004, %v1793, %v1857
        %v1890 = vsel %vm1004, %v1794, %v1858
        %v1891 = vsel %vm1004, %v1795, %v1859
        %v1892 = vsel %vm1004, %v1796, %v1860
        %v1893 = vsel %vm1004, %v1797, %v1861
        %v1894 = vsel %vm1004, %v1798, %v1862
        %v1895 = vsel %vm1004, %v1799, %v1863
        %v1896 = vsel %vm1004, %v1800, %v1864
        %v1897 = vsel %vm1004, %v1801, %v1865
        %v1898 = vsel %vm1004, %v1802, %v1866
        %v1899 = vsel %vm1004, %v1803, %v1867
        %v1900 = vsel %vm1004, %v1804, %v1868
        %v1901 = vsel %vm1004, %v1805, %v1869
        %v1902 = vsel %vm1004, %v1806, %v1870
        %v1903 = vsel %vm1004, %v1807, %v1871
        %v1904 = vsel %vm1004, %v1808, %v1872
        %v1905 = vsel %vm1004, %v1809, %v1873
        %v1906 = vsel %vm1004, %v1810, %v1874
        %vm1907 = vcmp.gt.f32.partialorder %v1683, 0.0
        %vm1908 = vcmp.gt.f32.partialorder %v1684, 0.0
        %vm1909 = vcmp.gt.f32.partialorder %v1685, 0.0
        %vm1910 = vcmp.gt.f32.partialorder %v1686, 0.0
        %vm1911 = vcmp.gt.f32.partialorder %v1687, 0.0
        %vm1912 = vcmp.gt.f32.partialorder %v1688, 0.0
        %vm1913 = vcmp.gt.f32.partialorder %v1689, 0.0
        %vm1914 = vcmp.gt.f32.partialorder %v1690, 0.0
        %vm1915 = vcmp.gt.f32.partialorder %v1691, 0.0
        %vm1916 = vcmp.gt.f32.partialorder %v1692, 0.0
        %vm1917 = vcmp.gt.f32.partialorder %v1693, 0.0
        %vm1918 = vcmp.gt.f32.partialorder %v1694, 0.0
        %vm1919 = vcmp.gt.f32.partialorder %v1695, 0.0
        %vm1920 = vcmp.gt.f32.partialorder %v1696, 0.0
        %vm1921 = vcmp.gt.f32.partialorder %v1697, 0.0
        %vm1922 = vcmp.gt.f32.partialorder %v1698, 0.0
        %vm1923 = vcmp.gt.f32.partialorder %v1699, 0.0
        %vm1924 = vcmp.gt.f32.partialorder %v1700, 0.0
        %vm1925 = vcmp.gt.f32.partialorder %v1701, 0.0
        %vm1926 = vcmp.gt.f32.partialorder %v1702, 0.0
        %vm1927 = vcmp.gt.f32.partialorder %v1703, 0.0
        %vm1928 = vcmp.gt.f32.partialorder %v1704, 0.0
        %vm1929 = vcmp.gt.f32.partialorder %v1705, 0.0
        %vm1930 = vcmp.gt.f32.partialorder %v1706, 0.0
        %vm1931 = vcmp.gt.f32.partialorder %v1707, 0.0
        %vm1932 = vcmp.gt.f32.partialorder %v1708, 0.0
        %vm1933 = vcmp.gt.f32.partialorder %v1709, 0.0
        %vm1934 = vcmp.gt.f32.partialorder %v1710, 0.0
        %vm1935 = vcmp.gt.f32.partialorder %v1711, 0.0
        %vm1936 = vcmp.gt.f32.partialorder %v1712, 0.0
        %vm1937 = vcmp.gt.f32.partialorder %v1713, 0.0
        %vm1938 = vcmp.gt.f32.partialorder %v1714, 0.0
        %v1939 = vsel %vm1907, 1, 0
        %v1940 = vsel %vm1908, 1, 0
        %v1941 = vsel %vm1909, 1, 0
        %v1942 = vsel %vm1910, 1, 0
        %v1943 = vsel %vm1911, 1, 0
        %v1944 = vsel %vm1912, 1, 0
        %v1945 = vsel %vm1913, 1, 0
        %v1946 = vsel %vm1914, 1, 0
        %v1947 = vsel %vm1915, 1, 0
        %v1948 = vsel %vm1916, 1, 0
        %v1949 = vsel %vm1917, 1, 0
        %v1950 = vsel %vm1918, 1, 0
        %v1951 = vsel %vm1919, 1, 0
        %v1952 = vsel %vm1920, 1, 0
        %v1953 = vsel %vm1921, 1, 0
        %v1954 = vsel %vm1922, 1, 0
        %v1955 = vsel %vm1923, 1, 0
        %v1956 = vsel %vm1924, 1, 0
        %v1957 = vsel %vm1925, 1, 0
        %v1958 = vsel %vm1926, 1, 0
        %v1959 = vsel %vm1927, 1, 0
        %v1960 = vsel %vm1928, 1, 0
        %v1961 = vsel %vm1929, 1, 0
        %v1962 = vsel %vm1930, 1, 0
        %v1963 = vsel %vm1931, 1, 0
        %v1964 = vsel %vm1932, 1, 0
        %v1965 = vsel %vm1933, 1, 0
        %v1966 = vsel %vm1934, 1, 0
        %v1967 = vsel %vm1935, 1, 0
        %v1968 = vsel %vm1936, 1, 0
        %v1969 = vsel %vm1937, 1, 0
        %v1970 = vsel %vm1938, 1, 0
        %v1971 = vcvt.s32.f32 %v1939
        %v1972 = vcvt.s32.f32 %v1940
        %v1973 = vcvt.s32.f32 %v1941
        %v1974 = vcvt.s32.f32 %v1942
        %v1975 = vcvt.s32.f32 %v1943
        %v1976 = vcvt.s32.f32 %v1944
        %v1977 = vcvt.s32.f32 %v1945
        %v1978 = vcvt.s32.f32 %v1946
        %v1979 = vcvt.s32.f32 %v1947
        %v1980 = vcvt.s32.f32 %v1948
        %v1981 = vcvt.s32.f32 %v1949
        %v1982 = vcvt.s32.f32 %v1950
        %v1983 = vcvt.s32.f32 %v1951
        %v1984 = vcvt.s32.f32 %v1952
        %v1985 = vcvt.s32.f32 %v1953
        %v1986 = vcvt.s32.f32 %v1954
        %v1987 = vcvt.s32.f32 %v1955
        %v1988 = vcvt.s32.f32 %v1956
        %v1989 = vcvt.s32.f32 %v1957
        %v1990 = vcvt.s32.f32 %v1958
        %v1991 = vcvt.s32.f32 %v1959
        %v1992 = vcvt.s32.f32 %v1960
        %v1993 = vcvt.s32.f32 %v1961
        %v1994 = vcvt.s32.f32 %v1962
        %v1995 = vcvt.s32.f32 %v1963
        %v1996 = vcvt.s32.f32 %v1964
        %v1997 = vcvt.s32.f32 %v1965
        %v1998 = vcvt.s32.f32 %v1966
        %v1999 = vcvt.s32.f32 %v1967
        %v2000 = vcvt.s32.f32 %v1968
        %v2001 = vcvt.s32.f32 %v1969
        %v2002 = vcvt.s32.f32 %v1970
        %v2003 = vsub.f32 %v1875, 0.78539
        %v2004 = vsub.f32 %v1876, 0.78539
        %v2005 = vsub.f32 %v1877, 0.78539
        %v2006 = vsub.f32 %v1878, 0.78539
        %v2007 = vsub.f32 %v1879, 0.78539
        %v2008 = vsub.f32 %v1880, 0.78539
        %v2009 = vsub.f32 %v1881, 0.78539
        %v2010 = vsub.f32 %v1882, 0.78539
        %v2011 = vsub.f32 %v1883, 0.78539
        %v2012 = vsub.f32 %v1884, 0.78539
        %v2013 = vsub.f32 %v1885, 0.78539
        %v2014 = vsub.f32 %v1886, 0.78539
        %v2015 = vsub.f32 %v1887, 0.78539
        %v2016 = vsub.f32 %v1888, 0.78539
        %v2017 = vsub.f32 %v1889, 0.78539
        %v2018 = vsub.f32 %v1890, 0.78539
        %v2019 = vsub.f32 %v1891, 0.78539
        %v2020 = vsub.f32 %v1892, 0.78539
        %v2021 = vsub.f32 %v1893, 0.78539
        %v2022 = vsub.f32 %v1894, 0.78539
        %v2023 = vsub.f32 %v1895, 0.78539
        %v2024 = vsub.f32 %v1896, 0.78539
        %v2025 = vsub.f32 %v1897, 0.78539
        %v2026 = vsub.f32 %v1898, 0.78539
        %v2027 = vsub.f32 %v1899, 0.78539
        %v2028 = vsub.f32 %v1900, 0.78539
        %v2029 = vsub.f32 %v1901, 0.78539
        %v2030 = vsub.f32 %v1902, 0.78539
        %v2031 = vsub.f32 %v1903, 0.78539
        %v2032 = vsub.f32 %v1904, 0.78539
        %v2033 = vsub.f32 %v1905, 0.78539
        %v2034 = vsub.f32 %v1906, 0.78539
        %v2035 = vrcp.pop 3.1415927
        %v2036 = vmul.f32 3.1415927, %v2035
        %v2037 = vsub.f32 1.0, %v2036
        %v2038 = vmul.f32 %v2035, %v2037
        %v2039 = vadd.f32 %v2035, %v2038
        %vm2040 = vweird.f32 %v2035
        %v2041 = vsel %vm2040, %v2035, %v2039
        %v2042 = vmul.f32 %v2003, %v2041
        %v2043 = vmul.f32 %v2004, %v2041
        %v2044 = vmul.f32 %v2005, %v2041
        %v2045 = vmul.f32 %v2006, %v2041
        %v2046 = vmul.f32 %v2007, %v2041
        %v2047 = vmul.f32 %v2008, %v2041
        %v2048 = vmul.f32 %v2009, %v2041
        %v2049 = vmul.f32 %v2010, %v2041
        %v2050 = vmul.f32 %v2011, %v2041
        %v2051 = vmul.f32 %v2012, %v2041
        %v2052 = vmul.f32 %v2013, %v2041
        %v2053 = vmul.f32 %v2014, %v2041
        %v2054 = vmul.f32 %v2015, %v2041
        %v2055 = vmul.f32 %v2016, %v2041
        %v2056 = vmul.f32 %v2017, %v2041
        %v2057 = vmul.f32 %v2018, %v2041
        %v2058 = vmul.f32 %v2019, %v2041
        %v2059 = vmul.f32 %v2020, %v2041
        %v2060 = vmul.f32 %v2021, %v2041
        %v2061 = vmul.f32 %v2022, %v2041
        %v2062 = vmul.f32 %v2023, %v2041
        %v2063 = vmul.f32 %v2024, %v2041
        %v2064 = vmul.f32 %v2025, %v2041
        %v2065 = vmul.f32 %v2026, %v2041
        %v2066 = vmul.f32 %v2027, %v2041
        %v2067 = vmul.f32 %v2028, %v2041
        %v2068 = vmul.f32 %v2029, %v2041
        %v2069 = vmul.f32 %v2030, %v2041
        %v2070 = vmul.f32 %v2031, %v2041
        %v2071 = vmul.f32 %v2032, %v2041
        %v2072 = vmul.f32 %v2033, %v2041
        %v2073 = vmul.f32 %v2034, %v2041
        %v2074 = vadd.f32 %v2042, 0.0
        %v2075 = vadd.f32 %v2043, 0.0
        %v2076 = vadd.f32 %v2044, 0.0
        %v2077 = vadd.f32 %v2045, 0.0
        %v2078 = vadd.f32 %v2046, 0.0
        %v2079 = vadd.f32 %v2047, 0.0
        %v2080 = vadd.f32 %v2048, 0.0
        %v2081 = vadd.f32 %v2049, 0.0
        %v2082 = vadd.f32 %v2050, 0.0
        %v2083 = vadd.f32 %v2051, 0.0
        %v2084 = vadd.f32 %v2052, 0.0
        %v2085 = vadd.f32 %v2053, 0.0
        %v2086 = vadd.f32 %v2054, 0.0
        %v2087 = vadd.f32 %v2055, 0.0
        %v2088 = vadd.f32 %v2056, 0.0
        %v2089 = vadd.f32 %v2057, 0.0
        %v2090 = vadd.f32 %v2058, 0.0
        %v2091 = vadd.f32 %v2059, 0.0
        %v2092 = vadd.f32 %v2060, 0.0
        %v2093 = vadd.f32 %v2061, 0.0
        %v2094 = vadd.f32 %v2062, 0.0
        %v2095 = vadd.f32 %v2063, 0.0
        %v2096 = vadd.f32 %v2064, 0.0
        %v2097 = vadd.f32 %v2065, 0.0
        %v2098 = vadd.f32 %v2066, 0.0
        %v2099 = vadd.f32 %v2067, 0.0
        %v2100 = vadd.f32 %v2068, 0.0
        %v2101 = vadd.f32 %v2069, 0.0
        %v2102 = vadd.f32 %v2070, 0.0
        %v2103 = vadd.f32 %v2071, 0.0
        %v2104 = vadd.f32 %v2072, 0.0
        %v2105 = vadd.f32 %v2073, 0.0
        %v2106 = vfloor.f32 %v2074
        %v2107 = vfloor.f32 %v2075
        %v2108 = vfloor.f32 %v2076
        %v2109 = vfloor.f32 %v2077
        %v2110 = vfloor.f32 %v2078
        %v2111 = vfloor.f32 %v2079
        %v2112 = vfloor.f32 %v2080
        %v2113 = vfloor.f32 %v2081
        %v2114 = vfloor.f32 %v2082
        %v2115 = vfloor.f32 %v2083
        %v2116 = vfloor.f32 %v2084
        %v2117 = vfloor.f32 %v2085
        %v2118 = vfloor.f32 %v2086
        %v2119 = vfloor.f32 %v2087
        %v2120 = vfloor.f32 %v2088
        %v2121 = vfloor.f32 %v2089
        %v2122 = vfloor.f32 %v2090
        %v2123 = vfloor.f32 %v2091
        %v2124 = vfloor.f32 %v2092
        %v2125 = vfloor.f32 %v2093
        %v2126 = vfloor.f32 %v2094
        %v2127 = vfloor.f32 %v2095
        %v2128 = vfloor.f32 %v2096
        %v2129 = vfloor.f32 %v2097
        %v2130 = vfloor.f32 %v2098
        %v2131 = vfloor.f32 %v2099
        %v2132 = vfloor.f32 %v2100
        %v2133 = vfloor.f32 %v2101
        %v2134 = vfloor.f32 %v2102
        %v2135 = vfloor.f32 %v2103
        %v2136 = vfloor.f32 %v2104
        %v2137 = vfloor.f32 %v2105
        %v2138 = vmul.f32 %v2106, 3.1415927
        %v2139 = vmul.f32 %v2107, 3.1415927
        %v2140 = vmul.f32 %v2108, 3.1415927
        %v2141 = vmul.f32 %v2109, 3.1415927
        %v2142 = vmul.f32 %v2110, 3.1415927
        %v2143 = vmul.f32 %v2111, 3.1415927
        %v2144 = vmul.f32 %v2112, 3.1415927
        %v2145 = vmul.f32 %v2113, 3.1415927
        %v2146 = vmul.f32 %v2114, 3.1415927
        %v2147 = vmul.f32 %v2115, 3.1415927
        %v2148 = vmul.f32 %v2116, 3.1415927
        %v2149 = vmul.f32 %v2117, 3.1415927
        %v2150 = vmul.f32 %v2118, 3.1415927
        %v2151 = vmul.f32 %v2119, 3.1415927
        %v2152 = vmul.f32 %v2120, 3.1415927
        %v2153 = vmul.f32 %v2121, 3.1415927
        %v2154 = vmul.f32 %v2122, 3.1415927
        %v2155 = vmul.f32 %v2123, 3.1415927
        %v2156 = vmul.f32 %v2124, 3.1415927
        %v2157 = vmul.f32 %v2125, 3.1415927
        %v2158 = vmul.f32 %v2126, 3.1415927
        %v2159 = vmul.f32 %v2127, 3.1415927
        %v2160 = vmul.f32 %v2128, 3.1415927
        %v2161 = vmul.f32 %v2129, 3.1415927
        %v2162 = vmul.f32 %v2130, 3.1415927
        %v2163 = vmul.f32 %v2131, 3.1415927
        %v2164 = vmul.f32 %v2132, 3.1415927
        %v2165 = vmul.f32 %v2133, 3.1415927
        %v2166 = vmul.f32 %v2134, 3.1415927
        %v2167 = vmul.f32 %v2135, 3.1415927
        %v2168 = vmul.f32 %v2136, 3.1415927
        %v2169 = vmul.f32 %v2137, 3.1415927
        %v2170 = vsub.f32 %v2003, %v2138
        %v2171 = vsub.f32 %v2004, %v2139
        %v2172 = vsub.f32 %v2005, %v2140
        %v2173 = vsub.f32 %v2006, %v2141
        %v2174 = vsub.f32 %v2007, %v2142
        %v2175 = vsub.f32 %v2008, %v2143
        %v2176 = vsub.f32 %v2009, %v2144
        %v2177 = vsub.f32 %v2010, %v2145
        %v2178 = vsub.f32 %v2011, %v2146
        %v2179 = vsub.f32 %v2012, %v2147
        %v2180 = vsub.f32 %v2013, %v2148
        %v2181 = vsub.f32 %v2014, %v2149
        %v2182 = vsub.f32 %v2015, %v2150
        %v2183 = vsub.f32 %v2016, %v2151
        %v2184 = vsub.f32 %v2017, %v2152
        %v2185 = vsub.f32 %v2018, %v2153
        %v2186 = vsub.f32 %v2019, %v2154
        %v2187 = vsub.f32 %v2020, %v2155
        %v2188 = vsub.f32 %v2021, %v2156
        %v2189 = vsub.f32 %v2022, %v2157
        %v2190 = vsub.f32 %v2023, %v2158
        %v2191 = vsub.f32 %v2024, %v2159
        %v2192 = vsub.f32 %v2025, %v2160
        %v2193 = vsub.f32 %v2026, %v2161
        %v2194 = vsub.f32 %v2027, %v2162
        %v2195 = vsub.f32 %v2028, %v2163
        %v2196 = vsub.f32 %v2029, %v2164
        %v2197 = vsub.f32 %v2030, %v2165
        %v2198 = vsub.f32 %v2031, %v2166
        %v2199 = vsub.f32 %v2032, %v2167
        %v2200 = vsub.f32 %v2033, %v2168
        %v2201 = vsub.f32 %v2034, %v2169
        %v2202 = vadd.f32 %v2170, 0.78539
        %v2203 = vadd.f32 %v2171, 0.78539
        %v2204 = vadd.f32 %v2172, 0.78539
        %v2205 = vadd.f32 %v2173, 0.78539
        %v2206 = vadd.f32 %v2174, 0.78539
        %v2207 = vadd.f32 %v2175, 0.78539
        %v2208 = vadd.f32 %v2176, 0.78539
        %v2209 = vadd.f32 %v2177, 0.78539
        %v2210 = vadd.f32 %v2178, 0.78539
        %v2211 = vadd.f32 %v2179, 0.78539
        %v2212 = vadd.f32 %v2180, 0.78539
        %v2213 = vadd.f32 %v2181, 0.78539
        %v2214 = vadd.f32 %v2182, 0.78539
        %v2215 = vadd.f32 %v2183, 0.78539
        %v2216 = vadd.f32 %v2184, 0.78539
        %v2217 = vadd.f32 %v2185, 0.78539
        %v2218 = vadd.f32 %v2186, 0.78539
        %v2219 = vadd.f32 %v2187, 0.78539
        %v2220 = vadd.f32 %v2188, 0.78539
        %v2221 = vadd.f32 %v2189, 0.78539
        %v2222 = vadd.f32 %v2190, 0.78539
        %v2223 = vadd.f32 %v2191, 0.78539
        %v2224 = vadd.f32 %v2192, 0.78539
        %v2225 = vadd.f32 %v2193, 0.78539
        %v2226 = vadd.f32 %v2194, 0.78539
        %v2227 = vadd.f32 %v2195, 0.78539
        %v2228 = vadd.f32 %v2196, 0.78539
        %v2229 = vadd.f32 %v2197, 0.78539
        %v2230 = vadd.f32 %v2198, 0.78539
        %v2231 = vadd.f32 %v2199, 0.78539
        %v2232 = vadd.f32 %v2200, 0.78539
        %v2233 = vadd.f32 %v2201, 0.78539
        %v2234 = vmul.f32 %v1971, 3.1415927
        %v2235 = vmul.f32 %v1972, 3.1415927
        %v2236 = vmul.f32 %v1973, 3.1415927
        %v2237 = vmul.f32 %v1974, 3.1415927
        %v2238 = vmul.f32 %v1975, 3.1415927
        %v2239 = vmul.f32 %v1976, 3.1415927
        %v2240 = vmul.f32 %v1977, 3.1415927
        %v2241 = vmul.f32 %v1978, 3.1415927
        %v2242 = vmul.f32 %v1979, 3.1415927
        %v2243 = vmul.f32 %v1980, 3.1415927
        %v2244 = vmul.f32 %v1981, 3.1415927
        %v2245 = vmul.f32 %v1982, 3.1415927
        %v2246 = vmul.f32 %v1983, 3.1415927
        %v2247 = vmul.f32 %v1984, 3.1415927
        %v2248 = vmul.f32 %v1985, 3.1415927
        %v2249 = vmul.f32 %v1986, 3.1415927
        %v2250 = vmul.f32 %v1987, 3.1415927
        %v2251 = vmul.f32 %v1988, 3.1415927
        %v2252 = vmul.f32 %v1989, 3.1415927
        %v2253 = vmul.f32 %v1990, 3.1415927
        %v2254 = vmul.f32 %v1991, 3.1415927
        %v2255 = vmul.f32 %v1992, 3.1415927
        %v2256 = vmul.f32 %v1993, 3.1415927
        %v2257 = vmul.f32 %v1994, 3.1415927
        %v2258 = vmul.f32 %v1995, 3.1415927
        %v2259 = vmul.f32 %v1996, 3.1415927
        %v2260 = vmul.f32 %v1997, 3.1415927
        %v2261 = vmul.f32 %v1998, 3.1415927
        %v2262 = vmul.f32 %v1999, 3.1415927
        %v2263 = vmul.f32 %v2000, 3.1415927
        %v2264 = vmul.f32 %v2001, 3.1415927
        %v2265 = vmul.f32 %v2002, 3.1415927
        %v2266 = vadd.f32 %v2202, %v2234
        %v2267 = vadd.f32 %v2203, %v2235
        %v2268 = vadd.f32 %v2204, %v2236
        %v2269 = vadd.f32 %v2205, %v2237
        %v2270 = vadd.f32 %v2206, %v2238
        %v2271 = vadd.f32 %v2207, %v2239
        %v2272 = vadd.f32 %v2208, %v2240
        %v2273 = vadd.f32 %v2209, %v2241
        %v2274 = vadd.f32 %v2210, %v2242
        %v2275 = vadd.f32 %v2211, %v2243
        %v2276 = vadd.f32 %v2212, %v2244
        %v2277 = vadd.f32 %v2213, %v2245
        %v2278 = vadd.f32 %v2214, %v2246
        %v2279 = vadd.f32 %v2215, %v2247
        %v2280 = vadd.f32 %v2216, %v2248
        %v2281 = vadd.f32 %v2217, %v2249
        %v2282 = vadd.f32 %v2218, %v2250
        %v2283 = vadd.f32 %v2219, %v2251
        %v2284 = vadd.f32 %v2220, %v2252
        %v2285 = vadd.f32 %v2221, %v2253
        %v2286 = vadd.f32 %v2222, %v2254
        %v2287 = vadd.f32 %v2223, %v2255
        %v2288 = vadd.f32 %v2224, %v2256
        %v2289 = vadd.f32 %v2225, %v2257
        %v2290 = vadd.f32 %v2226, %v2258
        %v2291 = vadd.f32 %v2227, %v2259
        %v2292 = vadd.f32 %v2228, %v2260
        %v2293 = vadd.f32 %v2229, %v2261
        %v2294 = vadd.f32 %v2230, %v2262
        %v2295 = vadd.f32 %v2231, %v2263
        %v2296 = vadd.f32 %v2232, %v2264
        %v2297 = vadd.f32 %v2233, %v2265
        %v2298 = vsel %vm1005, %v2266, %v1875
        %v2299 = vsel %vm1005, %v2267, %v1876
        %v2300 = vsel %vm1005, %v2268, %v1877
        %v2301 = vsel %vm1005, %v2269, %v1878
        %v2302 = vsel %vm1005, %v2270, %v1879
        %v2303 = vsel %vm1005, %v2271, %v1880
        %v2304 = vsel %vm1005, %v2272, %v1881
        %v2305 = vsel %vm1005, %v2273, %v1882
        %v2306 = vsel %vm1005, %v2274, %v1883
        %v2307 = vsel %vm1005, %v2275, %v1884
        %v2308 = vsel %vm1005, %v2276, %v1885
        %v2309 = vsel %vm1005, %v2277, %v1886
        %v2310 = vsel %vm1005, %v2278, %v1887
        %v2311 = vsel %vm1005, %v2279, %v1888
        %v2312 = vsel %vm1005, %v2280, %v1889
        %v2313 = vsel %vm1005, %v2281, %v1890
        %v2314 = vsel %vm1005, %v2282, %v1891
        %v2315 = vsel %vm1005, %v2283, %v1892
        %v2316 = vsel %vm1005, %v2284, %v1893
        %v2317 = vsel %vm1005, %v2285, %v1894
        %v2318 = vsel %vm1005, %v2286, %v1895
        %v2319 = vsel %vm1005, %v2287, %v1896
        %v2320 = vsel %vm1005, %v2288, %v1897
        %v2321 = vsel %vm1005, %v2289, %v1898
        %v2322 = vsel %vm1005, %v2290, %v1899
        %v2323 = vsel %vm1005, %v2291, %v1900
        %v2324 = vsel %vm1005, %v2292, %v1901
        %v2325 = vsel %vm1005, %v2293, %v1902
        %v2326 = vsel %vm1005, %v2294, %v1903
        %v2327 = vsel %vm1005, %v2295, %v1904
        %v2328 = vsel %vm1005, %v2296, %v1905
        %v2329 = vsel %vm1005, %v2297, %v1906
        %vm2330 = vcmask 146432
        %2331 = vst.msk [vmem:[%s854] sm:$0xff] %vm2330, %v1224
        %2332 = vst.msk [vmem:[%s854 + $0x8] sm:$0xff] %vm2330, %v1225
        %2333 = vst.msk [vmem:[%s854 + $0x10] sm:$0xff] %vm2330, %v1226
        %2334 = vst.msk [vmem:[%s854 + $0x18] sm:$0xff] %vm2330, %v1227
        %2335 = vst.msk [vmem:[%s854 + $0x20] sm:$0xff] %vm2330, %v1228
        %2336 = vst.msk [vmem:[%s854 + $0x28] sm:$0xff] %vm2330, %v1229
        %2337 = vst.msk [vmem:[%s854 + $0x30] sm:$0xff] %vm2330, %v1230
        %2338 = vst.msk [vmem:[%s854 + $0x38] sm:$0xff] %vm2330, %v1231
        %2339 = vst.msk [vmem:[%s854 + $0x40] sm:$0xff] %vm2330, %v1232
        %2340 = vst.msk [vmem:[%s854 + $0x48] sm:$0xff] %vm2330, %v1233
        %2341 = vst.msk [vmem:[%s854 + $0x50] sm:$0xff] %vm2330, %v1234
        %2342 = vst.msk [vmem:[%s854 + $0x58] sm:$0xff] %vm2330, %v1235
        %2343 = vst.msk [vmem:[%s854 + $0x60] sm:$0xff] %vm2330, %v1236
        %2344 = vst.msk [vmem:[%s854 + $0x68] sm:$0xff] %vm2330, %v1237
        %2345 = vst.msk [vmem:[%s854 + $0x70] sm:$0xff] %vm2330, %v1238
        %2346 = vst.msk [vmem:[%s854 + $0x78] sm:$0xff] %vm2330, %v1239
        %2347 = vst.msk [vmem:[%s854 + $0x80] sm:$0xff] %vm2330, %v1240
        %2348 = vst.msk [vmem:[%s854 + $0x88] sm:$0xff] %vm2330, %v1241
        %2349 = vst.msk [vmem:[%s854 + $0x90] sm:$0xff] %vm2330, %v1242
        %2350 = vst.msk [vmem:[%s854 + $0x98] sm:$0xff] %vm2330, %v1243
        %2351 = vst.msk [vmem:[%s854 + $0xa0] sm:$0xff] %vm2330, %v1244
        %2352 = vst.msk [vmem:[%s854 + $0xa8] sm:$0xff] %vm2330, %v1245
        %2353 = vst.msk [vmem:[%s854 + $0xb0] sm:$0xff] %vm2330, %v1246
        %2354 = vst.msk [vmem:[%s854 + $0xb8] sm:$0xff] %vm2330, %v1247
        %2355 = vst.msk [vmem:[%s854 + $0xc0] sm:$0xff] %vm2330, %v1248
        %2356 = vst.msk [vmem:[%s854 + $0xc8] sm:$0xff] %vm2330, %v1249
        %2357 = vst.msk [vmem:[%s854 + $0xd0] sm:$0xff] %vm2330, %v1250
        %2358 = vst.msk [vmem:[%s854 + $0xd8] sm:$0xff] %vm2330, %v1251
        %2359 = vst.msk [vmem:[%s854 + $0xe0] sm:$0xff] %vm2330, %v1252
        %2360 = vst.msk [vmem:[%s854 + $0xe8] sm:$0xff] %vm2330, %v1253
        %2361 = vst.msk [vmem:[%s854 + $0xf0] sm:$0xff] %vm2330, %v1254
        %2362 = vst.msk [vmem:[%s854 + $0xf8] sm:$0xff] %vm2330, %v1255
        %vm2363 = vcmask 343040
        %2364 = vst.msk [vmem:[%s864] sm:$0xff] %vm2363, %v2298
        %2365 = vst.msk [vmem:[%s864 + $0x8] sm:$0xff] %vm2363, %v2299
        %2366 = vst.msk [vmem:[%s864 + $0x10] sm:$0xff] %vm2363, %v2300
        %2367 = vst.msk [vmem:[%s864 + $0x18] sm:$0xff] %vm2363, %v2301
        %2368 = vst.msk [vmem:[%s864 + $0x20] sm:$0xff] %vm2363, %v2302
        %2369 = vst.msk [vmem:[%s864 + $0x28] sm:$0xff] %vm2363, %v2303
        %2370 = vst.msk [vmem:[%s864 + $0x30] sm:$0xff] %vm2363, %v2304
        %2371 = vst.msk [vmem:[%s864 + $0x38] sm:$0xff] %vm2363, %v2305
        %2372 = vst.msk [vmem:[%s864 + $0x40] sm:$0xff] %vm2363, %v2306
        %2373 = vst.msk [vmem:[%s864 + $0x48] sm:$0xff] %vm2363, %v2307
        %2374 = vst.msk [vmem:[%s864 + $0x50] sm:$0xff] %vm2363, %v2308
        %2375 = vst.msk [vmem:[%s864 + $0x58] sm:$0xff] %vm2363, %v2309
        %2376 = vst.msk [vmem:[%s864 + $0x60] sm:$0xff] %vm2363, %v2310
        %2377 = vst.msk [vmem:[%s864 + $0x68] sm:$0xff] %vm2363, %v2311
        %2378 = vst.msk [vmem:[%s864 + $0x70] sm:$0xff] %vm2363, %v2312
        %2379 = vst.msk [vmem:[%s864 + $0x78] sm:$0xff] %vm2363, %v2313
        %2380 = vst.msk [vmem:[%s864 + $0x80] sm:$0xff] %vm2363, %v2314
        %2381 = vst.msk [vmem:[%s864 + $0x88] sm:$0xff] %vm2363, %v2315
        %2382 = vst.msk [vmem:[%s864 + $0x90] sm:$0xff] %vm2363, %v2316
        %2383 = vst.msk [vmem:[%s864 + $0x98] sm:$0xff] %vm2363, %v2317
        %2384 = vst.msk [vmem:[%s864 + $0xa0] sm:$0xff] %vm2363, %v2318
        %2385 = vst.msk [vmem:[%s864 + $0xa8] sm:$0xff] %vm2363, %v2319
        %2386 = vst.msk [vmem:[%s864 + $0xb0] sm:$0xff] %vm2363, %v2320
        %2387 = vst.msk [vmem:[%s864 + $0xb8] sm:$0xff] %vm2363, %v2321
        %2388 = vst.msk [vmem:[%s864 + $0xc0] sm:$0xff] %vm2363, %v2322
        %2389 = vst.msk [vmem:[%s864 + $0xc8] sm:$0xff] %vm2363, %v2323
        %2390 = vst.msk [vmem:[%s864 + $0xd0] sm:$0xff] %vm2363, %v2324
        %2391 = vst.msk [vmem:[%s864 + $0xd8] sm:$0xff] %vm2363, %v2325
        %2392 = vst.msk [vmem:[%s864 + $0xe0] sm:$0xff] %vm2363, %v2326
        %2393 = vst.msk [vmem:[%s864 + $0xe8] sm:$0xff] %vm2363, %v2327
        %2394 = vst.msk [vmem:[%s864 + $0xf0] sm:$0xff] %vm2363, %v2328
        %2395 = vst.msk [vmem:[%s864 + $0xf8] sm:$0xff] %vm2363, %v2329
        %v2396 = vmul.f32 %v1530, 1.442695
        %v2397 = vpow.pop %v2396
        %v2398 = vmul.f32 %v1531, 1.442695
        %v2399 = vpow.pop %v2398
        %v2400 = vmul.f32 %v1532, 1.442695
        %v2401 = vpow.pop %v2400
        %v2402 = vmul.f32 %v1533, 1.442695
        %v2403 = vpow.pop %v2402
        %v2404 = vmul.f32 %v1534, 1.442695
        %v2405 = vpow.pop %v2404
        %v2406 = vmul.f32 %v1535, 1.442695
        %v2407 = vpow.pop %v2406
        %v2408 = vmul.f32 %v1536, 1.442695
        %v2409 = vpow.pop %v2408
        %v2410 = vmul.f32 %v1537, 1.442695
        %v2411 = vpow.pop %v2410
        %v2412 = vmul.f32 %v1538, 1.442695
        %v2413 = vpow.pop %v2412
        %v2414 = vmul.f32 %v1539, 1.442695
        %v2415 = vpow.pop %v2414
        %v2416 = vmul.f32 %v1540, 1.442695
        %v2417 = vpow.pop %v2416
        %v2418 = vmul.f32 %v1541, 1.442695
        %v2419 = vpow.pop %v2418
        %v2420 = vmul.f32 %v1542, 1.442695
        %v2421 = vpow.pop %v2420
        %v2422 = vmul.f32 %v1543, 1.442695
        %v2423 = vpow.pop %v2422
        %v2424 = vmul.f32 %v1544, 1.442695
        %v2425 = vpow.pop %v2424
        %v2426 = vmul.f32 %v1545, 1.442695
        %v2427 = vpow.pop %v2426
        %v2428 = vmul.f32 %v1546, 1.442695
        %v2429 = vpow.pop %v2428
        %v2430 = vmul.f32 %v1547, 1.442695
        %v2431 = vpow.pop %v2430
        %v2432 = vmul.f32 %v1548, 1.442695
        %v2433 = vpow.pop %v2432
        %v2434 = vmul.f32 %v1549, 1.442695
        %v2435 = vpow.pop %v2434
        %v2436 = vmul.f32 %v1550, 1.442695
        %v2437 = vpow.pop %v2436
        %v2438 = vmul.f32 %v1551, 1.442695
        %v2439 = vpow.pop %v2438
        %v2440 = vmul.f32 %v1552, 1.442695
        %v2441 = vpow.pop %v2440
        %v2442 = vmul.f32 %v1553, 1.442695
        %v2443 = vpow.pop %v2442
        %v2444 = vmul.f32 %v1554, 1.442695
        %v2445 = vpow.pop %v2444
        %v2446 = vmul.f32 %v1555, 1.442695
        %v2447 = vpow.pop %v2446
        %v2448 = vmul.f32 %v1556, 1.442695
        %v2449 = vpow.pop %v2448
        %v2450 = vmul.f32 %v1557, 1.442695
        %v2451 = vpow.pop %v2450
        %v2452 = vmul.f32 %v1558, 1.442695
        %v2453 = vpow.pop %v2452
        %v2454 = vmul.f32 %v1559, 1.442695
        %v2455 = vpow.pop %v2454
        %v2456 = vmul.f32 %v1560, 1.442695
        %v2457 = vpow.pop %v2456
        %v2458 = vmul.f32 %v1561, 1.442695
        %v2459 = vpow.pop %v2458
        %2460 = vst.msk [vmem:[%s874] sm:$0xff] %vm2363, %v2397
        %2461 = vst.msk [vmem:[%s874 + $0x8] sm:$0xff] %vm2363, %v2399
        %2462 = vst.msk [vmem:[%s874 + $0x10] sm:$0xff] %vm2363, %v2401
        %2463 = vst.msk [vmem:[%s874 + $0x18] sm:$0xff] %vm2363, %v2403
        %2464 = vst.msk [vmem:[%s874 + $0x20] sm:$0xff] %vm2363, %v2405
        %2465 = vst.msk [vmem:[%s874 + $0x28] sm:$0xff] %vm2363, %v2407
        %2466 = vst.msk [vmem:[%s874 + $0x30] sm:$0xff] %vm2363, %v2409
        %2467 = vst.msk [vmem:[%s874 + $0x38] sm:$0xff] %vm2363, %v2411
        %2468 = vst.msk [vmem:[%s874 + $0x40] sm:$0xff] %vm2363, %v2413
        %2469 = vst.msk [vmem:[%s874 + $0x48] sm:$0xff] %vm2363, %v2415
        %2470 = vst.msk [vmem:[%s874 + $0x50] sm:$0xff] %vm2363, %v2417
        %2471 = vst.msk [vmem:[%s874 + $0x58] sm:$0xff] %vm2363, %v2419
        %2472 = vst.msk [vmem:[%s874 + $0x60] sm:$0xff] %vm2363, %v2421
        %2473 = vst.msk [vmem:[%s874 + $0x68] sm:$0xff] %vm2363, %v2423
        %2474 = vst.msk [vmem:[%s874 + $0x70] sm:$0xff] %vm2363, %v2425
        %2475 = vst.msk [vmem:[%s874 + $0x78] sm:$0xff] %vm2363, %v2427
        %2476 = vst.msk [vmem:[%s874 + $0x80] sm:$0xff] %vm2363, %v2429
        %2477 = vst.msk [vmem:[%s874 + $0x88] sm:$0xff] %vm2363, %v2431
        %2478 = vst.msk [vmem:[%s874 + $0x90] sm:$0xff] %vm2363, %v2433
        %2479 = vst.msk [vmem:[%s874 + $0x98] sm:$0xff] %vm2363, %v2435
        %2480 = vst.msk [vmem:[%s874 + $0xa0] sm:$0xff] %vm2363, %v2437
        %2481 = vst.msk [vmem:[%s874 + $0xa8] sm:$0xff] %vm2363, %v2439
        %2482 = vst.msk [vmem:[%s874 + $0xb0] sm:$0xff] %vm2363, %v2441
        %2483 = vst.msk [vmem:[%s874 + $0xb8] sm:$0xff] %vm2363, %v2443
        %2484 = vst.msk [vmem:[%s874 + $0xc0] sm:$0xff] %vm2363, %v2445
        %2485 = vst.msk [vmem:[%s874 + $0xc8] sm:$0xff] %vm2363, %v2447
        %2486 = vst.msk [vmem:[%s874 + $0xd0] sm:$0xff] %vm2363, %v2449
        %2487 = vst.msk [vmem:[%s874 + $0xd8] sm:$0xff] %vm2363, %v2451
        %2488 = vst.msk [vmem:[%s874 + $0xe0] sm:$0xff] %vm2363, %v2453
        %2489 = vst.msk [vmem:[%s874 + $0xe8] sm:$0xff] %vm2363, %v2455
        %2490 = vst.msk [vmem:[%s874 + $0xf0] sm:$0xff] %vm2363, %v2457
        %2491 = vst.msk [vmem:[%s874 + $0xf8] sm:$0xff] %vm2363, %v2459
        %s2492 = scalar_lea.vmem [#allocation6], 32
        %v2493 = vld [vmem:[%s2492] sm:$0xff]
        %v2494 = vld [vmem:[%s2492 + $0x8] sm:$0xff]
        %v2495 = vld [vmem:[%s2492 + $0x10] sm:$0xff]
        %v2496 = vld [vmem:[%s2492 + $0x18] sm:$0xff]
        %2497 = vmatpush.msra.mxu0 0.0
        %2498 = vmatpush.msra.mxu0 0.0
        %2499 = vmatpush.msra.mxu0 0.0
        %2500 = vmatpush.msra.mxu0 0.0
        %2501 = vmatpush.msra.mxu0 0.0
        %2502 = vmatpush.msra.mxu0 0.0
        %2503 = vmatpush.msra.mxu0 0.0
        %2504 = vmatpush.msra.mxu0 0.0
        %2505 = vmatpush.msra.mxu0 0.0
        %2506 = vmatpush.msra.mxu0 0.0
        %2507 = vmatpush.msra.mxu0 0.0
        %2508 = vmatpush.msra.mxu0 0.0
        %2509 = vmatpush.msra.mxu0 %v2496
        %2510 = vmatpush.msra.mxu0 %v2495
        %2511 = vmatpush.msra.mxu0 %v2494
        %2512 = vmatpush.msra.mxu0 %v2493
        %2513 = vmatmul.f32.gmra.mxu0 %v1012
        %v2514 = vpop.f32.mrf.mxu0
        %v2515 = vadd.f32 0.0, %v2514
        %2516 = vmatmul.f32.gmra.mxu0 %v1015
        %v2517 = vpop.f32.mrf.mxu0
        %v2518 = vadd.f32 0.0, %v2517
        %2519 = vmatmul.f32.gmra.mxu0 %v1018
        %v2520 = vpop.f32.mrf.mxu0
        %v2521 = vadd.f32 0.0, %v2520
        %2522 = vmatmul.f32.gmra.mxu0 %v1021
        %v2523 = vpop.f32.mrf.mxu0
        %v2524 = vadd.f32 0.0, %v2523
        %2525 = vmatmul.f32.gmra.mxu0 %v1024
        %v2526 = vpop.f32.mrf.mxu0
        %v2527 = vadd.f32 0.0, %v2526
        %2528 = vmatmul.f32.gmra.mxu0 %v1027
        %v2529 = vpop.f32.mrf.mxu0
        %v2530 = vadd.f32 0.0, %v2529
        %2531 = vmatmul.f32.gmra.mxu0 %v1030
        %v2532 = vpop.f32.mrf.mxu0
        %v2533 = vadd.f32 0.0, %v2532
        %2534 = vmatmul.f32.gmra.mxu0 %v1033
        %v2535 = vpop.f32.mrf.mxu0
        %v2536 = vadd.f32 0.0, %v2535
        %2537 = vmatmul.f32.gmra.mxu0 %v1036
        %v2538 = vpop.f32.mrf.mxu0
        %v2539 = vadd.f32 0.0, %v2538
        %2540 = vmatmul.f32.gmra.mxu0 %v1039
        %v2541 = vpop.f32.mrf.mxu0
        %v2542 = vadd.f32 0.0, %v2541
        %2543 = vmatmul.f32.gmra.mxu0 %v1042
        %v2544 = vpop.f32.mrf.mxu0
        %v2545 = vadd.f32 0.0, %v2544
        %2546 = vmatmul.f32.gmra.mxu0 %v1045
        %v2547 = vpop.f32.mrf.mxu0
        %v2548 = vadd.f32 0.0, %v2547
        %2549 = vmatmul.f32.gmra.mxu0 %v1048
        %v2550 = vpop.f32.mrf.mxu0
        %v2551 = vadd.f32 0.0, %v2550
        %2552 = vmatmul.f32.gmra.mxu0 %v1051
        %v2553 = vpop.f32.mrf.mxu0
        %v2554 = vadd.f32 0.0, %v2553
        %2555 = vmatmul.f32.gmra.mxu0 %v1054
        %v2556 = vpop.f32.mrf.mxu0
        %v2557 = vadd.f32 0.0, %v2556
        %2558 = vmatmul.f32.gmra.mxu0 %v1057
        %v2559 = vpop.f32.mrf.mxu0
        %v2560 = vadd.f32 0.0, %v2559
        %2561 = vmatmul.f32.gmra.mxu0 %v1060
        %v2562 = vpop.f32.mrf.mxu0
        %v2563 = vadd.f32 0.0, %v2562
        %2564 = vmatmul.f32.gmra.mxu0 %v1063
        %v2565 = vpop.f32.mrf.mxu0
        %v2566 = vadd.f32 0.0, %v2565
        %2567 = vmatmul.f32.gmra.mxu0 %v1066
        %v2568 = vpop.f32.mrf.mxu0
        %v2569 = vadd.f32 0.0, %v2568
        %2570 = vmatmul.f32.gmra.mxu0 %v1069
        %v2571 = vpop.f32.mrf.mxu0
        %v2572 = vadd.f32 0.0, %v2571
        %2573 = vmatmul.f32.gmra.mxu0 %v1072
        %v2574 = vpop.f32.mrf.mxu0
        %v2575 = vadd.f32 0.0, %v2574
        %2576 = vmatmul.f32.gmra.mxu0 %v1075
        %v2577 = vpop.f32.mrf.mxu0
        %v2578 = vadd.f32 0.0, %v2577
        %2579 = vmatmul.f32.gmra.mxu0 %v1078
        %v2580 = vpop.f32.mrf.mxu0
        %v2581 = vadd.f32 0.0, %v2580
        %2582 = vmatmul.f32.gmra.mxu0 %v1081
        %v2583 = vpop.f32.mrf.mxu0
        %v2584 = vadd.f32 0.0, %v2583
        %2585 = vmatmul.f32.gmra.mxu0 %v1084
        %v2586 = vpop.f32.mrf.mxu0
        %v2587 = vadd.f32 0.0, %v2586
        %2588 = vmatmul.f32.gmra.mxu0 %v1087
        %v2589 = vpop.f32.mrf.mxu0
        %v2590 = vadd.f32 0.0, %v2589
        %2591 = vmatmul.f32.gmra.mxu0 %v1090
        %v2592 = vpop.f32.mrf.mxu0
        %v2593 = vadd.f32 0.0, %v2592
        %2594 = vmatmul.f32.gmra.mxu0 %v1093
        %v2595 = vpop.f32.mrf.mxu0
        %v2596 = vadd.f32 0.0, %v2595
        %2597 = vmatmul.f32.gmra.mxu0 %v1096
        %v2598 = vpop.f32.mrf.mxu0
        %v2599 = vadd.f32 0.0, %v2598
        %2600 = vmatmul.f32.gmra.mxu0 %v1099
        %v2601 = vpop.f32.mrf.mxu0
        %v2602 = vadd.f32 0.0, %v2601
        %2603 = vmatmul.f32.gmra.mxu0 %v1102
        %v2604 = vpop.f32.mrf.mxu0
        %v2605 = vadd.f32 0.0, %v2604
        %2606 = vmatmul.f32.gmra.mxu0 %v1105
        %v2607 = vpop.f32.mrf.mxu0
        %v2608 = vadd.f32 0.0, %v2607
        %2609 = vdwg.mxu0
        %s2610 = scalar_lea.vmem [#allocation7], 1
        %v2611 = vld [vmem:[%s2610] sm:$0x1]
        %v2613 = vperm.slane %v2611, 0
        %v2615 = vadd.f32 %v2515, %v2613
        %v2616 = vadd.f32 %v2518, %v2613
        %v2617 = vadd.f32 %v2521, %v2613
        %v2618 = vadd.f32 %v2524, %v2613
        %v2619 = vadd.f32 %v2527, %v2613
        %v2620 = vadd.f32 %v2530, %v2613
        %v2621 = vadd.f32 %v2533, %v2613
        %v2622 = vadd.f32 %v2536, %v2613
        %v2623 = vadd.f32 %v2539, %v2613
        %v2624 = vadd.f32 %v2542, %v2613
        %v2625 = vadd.f32 %v2545, %v2613
        %v2626 = vadd.f32 %v2548, %v2613
        %v2627 = vadd.f32 %v2551, %v2613
        %v2628 = vadd.f32 %v2554, %v2613
        %v2629 = vadd.f32 %v2557, %v2613
        %v2630 = vadd.f32 %v2560, %v2613
        %v2631 = vadd.f32 %v2563, %v2613
        %v2632 = vadd.f32 %v2566, %v2613
        %v2633 = vadd.f32 %v2569, %v2613
        %v2634 = vadd.f32 %v2572, %v2613
        %v2635 = vadd.f32 %v2575, %v2613
        %v2636 = vadd.f32 %v2578, %v2613
        %v2637 = vadd.f32 %v2581, %v2613
        %v2638 = vadd.f32 %v2584, %v2613
        %v2639 = vadd.f32 %v2587, %v2613
        %v2640 = vadd.f32 %v2590, %v2613
        %v2641 = vadd.f32 %v2593, %v2613
        %v2642 = vadd.f32 %v2596, %v2613
        %v2643 = vadd.f32 %v2599, %v2613
        %v2644 = vadd.f32 %v2602, %v2613
        %v2645 = vadd.f32 %v2605, %v2613
        %v2646 = vadd.f32 %v2608, %v2613
        %s2647 = scalar_lea.vmem [#allocation9], 32
        %v2648 = vld [vmem:[%s2647] sm:$0xff]
        %v2649 = vld [vmem:[%s2647 + $0x8] sm:$0xff]
        %v2650 = vld [vmem:[%s2647 + $0x10] sm:$0xff]
        %v2651 = vld [vmem:[%s2647 + $0x18] sm:$0xff]
        %2652 = vmatpush.msra.mxu0 0.0
        %2653 = vmatpush.msra.mxu0 0.0
        %2654 = vmatpush.msra.mxu0 0.0
        %2655 = vmatpush.msra.mxu0 0.0
        %2656 = vmatpush.msra.mxu0 0.0
        %2657 = vmatpush.msra.mxu0 0.0
        %2658 = vmatpush.msra.mxu0 0.0
        %2659 = vmatpush.msra.mxu0 0.0
        %2660 = vmatpush.msra.mxu0 0.0
        %2661 = vmatpush.msra.mxu0 0.0
        %2662 = vmatpush.msra.mxu0 0.0
        %2663 = vmatpush.msra.mxu0 0.0
        %2664 = vmatpush.msra.mxu0 %v2651
        %2665 = vmatpush.msra.mxu0 %v2650
        %2666 = vmatpush.msra.mxu0 %v2649
        %2667 = vmatpush.msra.mxu0 %v2648
        %2668 = vmatmul.f32.gmra.mxu0 %v1012
        %v2669 = vpop.f32.mrf.mxu0
        %v2670 = vadd.f32 0.0, %v2669
        %2671 = vmatmul.f32.gmra.mxu0 %v1015
        %v2672 = vpop.f32.mrf.mxu0
        %v2673 = vadd.f32 0.0, %v2672
        %2674 = vmatmul.f32.gmra.mxu0 %v1018
        %v2675 = vpop.f32.mrf.mxu0
        %v2676 = vadd.f32 0.0, %v2675
        %2677 = vmatmul.f32.gmra.mxu0 %v1021
        %v2678 = vpop.f32.mrf.mxu0
        %v2679 = vadd.f32 0.0, %v2678
        %2680 = vmatmul.f32.gmra.mxu0 %v1024
        %v2681 = vpop.f32.mrf.mxu0
        %v2682 = vadd.f32 0.0, %v2681
        %2683 = vmatmul.f32.gmra.mxu0 %v1027
        %v2684 = vpop.f32.mrf.mxu0
        %v2685 = vadd.f32 0.0, %v2684
        %2686 = vmatmul.f32.gmra.mxu0 %v1030
        %v2687 = vpop.f32.mrf.mxu0
        %v2688 = vadd.f32 0.0, %v2687
        %2689 = vmatmul.f32.gmra.mxu0 %v1033
        %v2690 = vpop.f32.mrf.mxu0
        %v2691 = vadd.f32 0.0, %v2690
        %2692 = vmatmul.f32.gmra.mxu0 %v1036
        %v2693 = vpop.f32.mrf.mxu0
        %v2694 = vadd.f32 0.0, %v2693
        %2695 = vmatmul.f32.gmra.mxu0 %v1039
        %v2696 = vpop.f32.mrf.mxu0
        %v2697 = vadd.f32 0.0, %v2696
        %2698 = vmatmul.f32.gmra.mxu0 %v1042
        %v2699 = vpop.f32.mrf.mxu0
        %v2700 = vadd.f32 0.0, %v2699
        %2701 = vmatmul.f32.gmra.mxu0 %v1045
        %v2702 = vpop.f32.mrf.mxu0
        %v2703 = vadd.f32 0.0, %v2702
        %2704 = vmatmul.f32.gmra.mxu0 %v1048
        %v2705 = vpop.f32.mrf.mxu0
        %v2706 = vadd.f32 0.0, %v2705
        %2707 = vmatmul.f32.gmra.mxu0 %v1051
        %v2708 = vpop.f32.mrf.mxu0
        %v2709 = vadd.f32 0.0, %v2708
        %2710 = vmatmul.f32.gmra.mxu0 %v1054
        %v2711 = vpop.f32.mrf.mxu0
        %v2712 = vadd.f32 0.0, %v2711
        %2713 = vmatmul.f32.gmra.mxu0 %v1057
        %v2714 = vpop.f32.mrf.mxu0
        %v2715 = vadd.f32 0.0, %v2714
        %2716 = vmatmul.f32.gmra.mxu0 %v1060
        %v2717 = vpop.f32.mrf.mxu0
        %v2718 = vadd.f32 0.0, %v2717
        %2719 = vmatmul.f32.gmra.mxu0 %v1063
        %v2720 = vpop.f32.mrf.mxu0
        %v2721 = vadd.f32 0.0, %v2720
        %2722 = vmatmul.f32.gmra.mxu0 %v1066
        %v2723 = vpop.f32.mrf.mxu0
        %v2724 = vadd.f32 0.0, %v2723
        %2725 = vmatmul.f32.gmra.mxu0 %v1069
        %v2726 = vpop.f32.mrf.mxu0
        %v2727 = vadd.f32 0.0, %v2726
        %2728 = vmatmul.f32.gmra.mxu0 %v1072
        %v2729 = vpop.f32.mrf.mxu0
        %v2730 = vadd.f32 0.0, %v2729
        %2731 = vmatmul.f32.gmra.mxu0 %v1075
        %v2732 = vpop.f32.mrf.mxu0
        %v2733 = vadd.f32 0.0, %v2732
        %2734 = vmatmul.f32.gmra.mxu0 %v1078
        %v2735 = vpop.f32.mrf.mxu0
        %v2736 = vadd.f32 0.0, %v2735
        %2737 = vmatmul.f32.gmra.mxu0 %v1081
        %v2738 = vpop.f32.mrf.mxu0
        %v2739 = vadd.f32 0.0, %v2738
        %2740 = vmatmul.f32.gmra.mxu0 %v1084
        %v2741 = vpop.f32.mrf.mxu0
        %v2742 = vadd.f32 0.0, %v2741
        %2743 = vmatmul.f32.gmra.mxu0 %v1087
        %v2744 = vpop.f32.mrf.mxu0
        %v2745 = vadd.f32 0.0, %v2744
        %2746 = vmatmul.f32.gmra.mxu0 %v1090
        %v2747 = vpop.f32.mrf.mxu0
        %v2748 = vadd.f32 0.0, %v2747
        %2749 = vmatmul.f32.gmra.mxu0 %v1093
        %v2750 = vpop.f32.mrf.mxu0
        %v2751 = vadd.f32 0.0, %v2750
        %2752 = vmatmul.f32.gmra.mxu0 %v1096
        %v2753 = vpop.f32.mrf.mxu0
        %v2754 = vadd.f32 0.0, %v2753
        %2755 = vmatmul.f32.gmra.mxu0 %v1099
        %v2756 = vpop.f32.mrf.mxu0
        %v2757 = vadd.f32 0.0, %v2756
        %2758 = vmatmul.f32.gmra.mxu0 %v1102
        %v2759 = vpop.f32.mrf.mxu0
        %v2760 = vadd.f32 0.0, %v2759
        %2761 = vmatmul.f32.gmra.mxu0 %v1105
        %v2762 = vpop.f32.mrf.mxu0
        %v2763 = vadd.f32 0.0, %v2762
        %2764 = vdwg.mxu0
        %s2765 = scalar_lea.vmem [#allocation10], 1
        %v2766 = vld [vmem:[%s2765] sm:$0x1]
        %v2768 = vperm.slane %v2766, 0
        %v2770 = vadd.f32 %v2670, %v2768
        %v2771 = vadd.f32 %v2673, %v2768
        %v2772 = vadd.f32 %v2676, %v2768
        %v2773 = vadd.f32 %v2679, %v2768
        %v2774 = vadd.f32 %v2682, %v2768
        %v2775 = vadd.f32 %v2685, %v2768
        %v2776 = vadd.f32 %v2688, %v2768
        %v2777 = vadd.f32 %v2691, %v2768
        %v2778 = vadd.f32 %v2694, %v2768
        %v2779 = vadd.f32 %v2697, %v2768
        %v2780 = vadd.f32 %v2700, %v2768
        %v2781 = vadd.f32 %v2703, %v2768
        %v2782 = vadd.f32 %v2706, %v2768
        %v2783 = vadd.f32 %v2709, %v2768
        %v2784 = vadd.f32 %v2712, %v2768
        %v2785 = vadd.f32 %v2715, %v2768
        %v2786 = vadd.f32 %v2718, %v2768
        %v2787 = vadd.f32 %v2721, %v2768
        %v2788 = vadd.f32 %v2724, %v2768
        %v2789 = vadd.f32 %v2727, %v2768
        %v2790 = vadd.f32 %v2730, %v2768
        %v2791 = vadd.f32 %v2733, %v2768
        %v2792 = vadd.f32 %v2736, %v2768
        %v2793 = vadd.f32 %v2739, %v2768
        %v2794 = vadd.f32 %v2742, %v2768
        %v2795 = vadd.f32 %v2745, %v2768
        %v2796 = vadd.f32 %v2748, %v2768
        %v2797 = vadd.f32 %v2751, %v2768
        %v2798 = vadd.f32 %v2754, %v2768
        %v2799 = vadd.f32 %v2757, %v2768
        %v2800 = vadd.f32 %v2760, %v2768
        %v2801 = vadd.f32 %v2763, %v2768
        %s2802 = scalar_lea.vmem [#allocation12], 32
        %v2803 = vld [vmem:[%s2802] sm:$0xff]
        %v2804 = vld [vmem:[%s2802 + $0x8] sm:$0xff]
        %v2805 = vld [vmem:[%s2802 + $0x10] sm:$0xff]
        %v2806 = vld [vmem:[%s2802 + $0x18] sm:$0xff]
        %2807 = vmatpush.msra.mxu0 0.0
        %2808 = vmatpush.msra.mxu0 0.0
        %2809 = vmatpush.msra.mxu0 0.0
        %2810 = vmatpush.msra.mxu0 0.0
        %2811 = vmatpush.msra.mxu0 0.0
        %2812 = vmatpush.msra.mxu0 0.0
        %2813 = vmatpush.msra.mxu0 0.0
        %2814 = vmatpush.msra.mxu0 0.0
        %2815 = vmatpush.msra.mxu0 0.0
        %2816 = vmatpush.msra.mxu0 0.0
        %2817 = vmatpush.msra.mxu0 0.0
        %2818 = vmatpush.msra.mxu0 0.0
        %2819 = vmatpush.msra.mxu0 %v2806
        %2820 = vmatpush.msra.mxu0 %v2805
        %2821 = vmatpush.msra.mxu0 %v2804
        %2822 = vmatpush.msra.mxu0 %v2803
        %2823 = vmatmul.f32.gmra.mxu0 %v1012
        %v2824 = vpop.f32.mrf.mxu0
        %v2825 = vadd.f32 0.0, %v2824
        %2826 = vmatmul.f32.gmra.mxu0 %v1015
        %v2827 = vpop.f32.mrf.mxu0
        %v2828 = vadd.f32 0.0, %v2827
        %2829 = vmatmul.f32.gmra.mxu0 %v1018
        %v2830 = vpop.f32.mrf.mxu0
        %v2831 = vadd.f32 0.0, %v2830
        %2832 = vmatmul.f32.gmra.mxu0 %v1021
        %v2833 = vpop.f32.mrf.mxu0
        %v2834 = vadd.f32 0.0, %v2833
        %2835 = vmatmul.f32.gmra.mxu0 %v1024
        %v2836 = vpop.f32.mrf.mxu0
        %v2837 = vadd.f32 0.0, %v2836
        %2838 = vmatmul.f32.gmra.mxu0 %v1027
        %v2839 = vpop.f32.mrf.mxu0
        %v2840 = vadd.f32 0.0, %v2839
        %2841 = vmatmul.f32.gmra.mxu0 %v1030
        %v2842 = vpop.f32.mrf.mxu0
        %v2843 = vadd.f32 0.0, %v2842
        %2844 = vmatmul.f32.gmra.mxu0 %v1033
        %v2845 = vpop.f32.mrf.mxu0
        %v2846 = vadd.f32 0.0, %v2845
        %2847 = vmatmul.f32.gmra.mxu0 %v1036
        %v2848 = vpop.f32.mrf.mxu0
        %v2849 = vadd.f32 0.0, %v2848
        %2850 = vmatmul.f32.gmra.mxu0 %v1039
        %v2851 = vpop.f32.mrf.mxu0
        %v2852 = vadd.f32 0.0, %v2851
        %2853 = vmatmul.f32.gmra.mxu0 %v1042
        %v2854 = vpop.f32.mrf.mxu0
        %v2855 = vadd.f32 0.0, %v2854
        %2856 = vmatmul.f32.gmra.mxu0 %v1045
        %v2857 = vpop.f32.mrf.mxu0
        %v2858 = vadd.f32 0.0, %v2857
        %2859 = vmatmul.f32.gmra.mxu0 %v1048
        %v2860 = vpop.f32.mrf.mxu0
        %v2861 = vadd.f32 0.0, %v2860
        %2862 = vmatmul.f32.gmra.mxu0 %v1051
        %v2863 = vpop.f32.mrf.mxu0
        %v2864 = vadd.f32 0.0, %v2863
        %2865 = vmatmul.f32.gmra.mxu0 %v1054
        %v2866 = vpop.f32.mrf.mxu0
        %v2867 = vadd.f32 0.0, %v2866
        %2868 = vmatmul.f32.gmra.mxu0 %v1057
        %v2869 = vpop.f32.mrf.mxu0
        %v2870 = vadd.f32 0.0, %v2869
        %2871 = vmatmul.f32.gmra.mxu0 %v1060
        %v2872 = vpop.f32.mrf.mxu0
        %v2873 = vadd.f32 0.0, %v2872
        %2874 = vmatmul.f32.gmra.mxu0 %v1063
        %v2875 = vpop.f32.mrf.mxu0
        %v2876 = vadd.f32 0.0, %v2875
        %2877 = vmatmul.f32.gmra.mxu0 %v1066
        %v2878 = vpop.f32.mrf.mxu0
        %v2879 = vadd.f32 0.0, %v2878
        %2880 = vmatmul.f32.gmra.mxu0 %v1069
        %v2881 = vpop.f32.mrf.mxu0
        %v2882 = vadd.f32 0.0, %v2881
        %2883 = vmatmul.f32.gmra.mxu0 %v1072
        %v2884 = vpop.f32.mrf.mxu0
        %v2885 = vadd.f32 0.0, %v2884
        %2886 = vmatmul.f32.gmra.mxu0 %v1075
        %v2887 = vpop.f32.mrf.mxu0
        %v2888 = vadd.f32 0.0, %v2887
        %2889 = vmatmul.f32.gmra.mxu0 %v1078
        %v2890 = vpop.f32.mrf.mxu0
        %v2891 = vadd.f32 0.0, %v2890
        %2892 = vmatmul.f32.gmra.mxu0 %v1081
        %v2893 = vpop.f32.mrf.mxu0
        %v2894 = vadd.f32 0.0, %v2893
        %2895 = vmatmul.f32.gmra.mxu0 %v1084
        %v2896 = vpop.f32.mrf.mxu0
        %v2897 = vadd.f32 0.0, %v2896
        %2898 = vmatmul.f32.gmra.mxu0 %v1087
        %v2899 = vpop.f32.mrf.mxu0
        %v2900 = vadd.f32 0.0, %v2899
        %2901 = vmatmul.f32.gmra.mxu0 %v1090
        %v2902 = vpop.f32.mrf.mxu0
        %v2903 = vadd.f32 0.0, %v2902
        %2904 = vmatmul.f32.gmra.mxu0 %v1093
        %v2905 = vpop.f32.mrf.mxu0
        %v2906 = vadd.f32 0.0, %v2905
        %2907 = vmatmul.f32.gmra.mxu0 %v1096
        %v2908 = vpop.f32.mrf.mxu0
        %v2909 = vadd.f32 0.0, %v2908
        %2910 = vmatmul.f32.gmra.mxu0 %v1099
        %v2911 = vpop.f32.mrf.mxu0
        %v2912 = vadd.f32 0.0, %v2911
        %2913 = vmatmul.f32.gmra.mxu0 %v1102
        %v2914 = vpop.f32.mrf.mxu0
        %v2915 = vadd.f32 0.0, %v2914
        %2916 = vmatmul.f32.gmra.mxu0 %v1105
        %v2917 = vpop.f32.mrf.mxu0
        %v2918 = vadd.f32 0.0, %v2917
        %2919 = vdwg.mxu0
        %s2920 = scalar_lea.vmem [#allocation13], 1
        %v2921 = vld [vmem:[%s2920] sm:$0x1]
        %v2923 = vperm.slane %v2921, 0
        %v2925 = vadd.f32 %v2825, %v2923
        %v2926 = vadd.f32 %v2828, %v2923
        %v2927 = vadd.f32 %v2831, %v2923
        %v2928 = vadd.f32 %v2834, %v2923
        %v2929 = vadd.f32 %v2837, %v2923
        %v2930 = vadd.f32 %v2840, %v2923
        %v2931 = vadd.f32 %v2843, %v2923
        %v2932 = vadd.f32 %v2846, %v2923
        %v2933 = vadd.f32 %v2849, %v2923
        %v2934 = vadd.f32 %v2852, %v2923
        %v2935 = vadd.f32 %v2855, %v2923
        %v2936 = vadd.f32 %v2858, %v2923
        %v2937 = vadd.f32 %v2861, %v2923
        %v2938 = vadd.f32 %v2864, %v2923
        %v2939 = vadd.f32 %v2867, %v2923
        %v2940 = vadd.f32 %v2870, %v2923
        %v2941 = vadd.f32 %v2873, %v2923
        %v2942 = vadd.f32 %v2876, %v2923
        %v2943 = vadd.f32 %v2879, %v2923
        %v2944 = vadd.f32 %v2882, %v2923
        %v2945 = vadd.f32 %v2885, %v2923
        %v2946 = vadd.f32 %v2888, %v2923
        %v2947 = vadd.f32 %v2891, %v2923
        %v2948 = vadd.f32 %v2894, %v2923
        %v2949 = vadd.f32 %v2897, %v2923
        %v2950 = vadd.f32 %v2900, %v2923
        %v2951 = vadd.f32 %v2903, %v2923
        %v2952 = vadd.f32 %v2906, %v2923
        %v2953 = vadd.f32 %v2909, %v2923
        %v2954 = vadd.f32 %v2912, %v2923
        %v2955 = vadd.f32 %v2915, %v2923
        %v2956 = vadd.f32 %v2918, %v2923
        %s2957 = scalar_lea.vmem [#allocation15], 32
        %v2958 = vld [vmem:[%s2957] sm:$0xff]
        %v2959 = vld [vmem:[%s2957 + $0x8] sm:$0xff]
        %v2960 = vld [vmem:[%s2957 + $0x10] sm:$0xff]
        %v2961 = vld [vmem:[%s2957 + $0x18] sm:$0xff]
        %2962 = vmatpush.msra.mxu0 0.0
        %2963 = vmatpush.msra.mxu0 0.0
        %2964 = vmatpush.msra.mxu0 0.0
        %2965 = vmatpush.msra.mxu0 0.0
        %2966 = vmatpush.msra.mxu0 0.0
        %2967 = vmatpush.msra.mxu0 0.0
        %2968 = vmatpush.msra.mxu0 0.0
        %2969 = vmatpush.msra.mxu0 0.0
        %2970 = vmatpush.msra.mxu0 0.0
        %2971 = vmatpush.msra.mxu0 0.0
        %2972 = vmatpush.msra.mxu0 0.0
        %2973 = vmatpush.msra.mxu0 0.0
        %2974 = vmatpush.msra.mxu0 %v2961
        %2975 = vmatpush.msra.mxu0 %v2960
        %2976 = vmatpush.msra.mxu0 %v2959
        %2977 = vmatpush.msra.mxu0 %v2958
        %2978 = vmatmul.f32.gmra.mxu0 %v1012
        %v2979 = vpop.f32.mrf.mxu0
        %v2980 = vadd.f32 0.0, %v2979
        %2981 = vmatmul.f32.gmra.mxu0 %v1015
        %v2982 = vpop.f32.mrf.mxu0
        %v2983 = vadd.f32 0.0, %v2982
        %2984 = vmatmul.f32.gmra.mxu0 %v1018
        %v2985 = vpop.f32.mrf.mxu0
        %v2986 = vadd.f32 0.0, %v2985
        %2987 = vmatmul.f32.gmra.mxu0 %v1021
        %v2988 = vpop.f32.mrf.mxu0
        %v2989 = vadd.f32 0.0, %v2988
        %2990 = vmatmul.f32.gmra.mxu0 %v1024
        %v2991 = vpop.f32.mrf.mxu0
        %v2992 = vadd.f32 0.0, %v2991
        %2993 = vmatmul.f32.gmra.mxu0 %v1027
        %v2994 = vpop.f32.mrf.mxu0
        %v2995 = vadd.f32 0.0, %v2994
        %2996 = vmatmul.f32.gmra.mxu0 %v1030
        %v2997 = vpop.f32.mrf.mxu0
        %v2998 = vadd.f32 0.0, %v2997
        %2999 = vmatmul.f32.gmra.mxu0 %v1033
        %v3000 = vpop.f32.mrf.mxu0
        %v3001 = vadd.f32 0.0, %v3000
        %3002 = vmatmul.f32.gmra.mxu0 %v1036
        %v3003 = vpop.f32.mrf.mxu0
        %v3004 = vadd.f32 0.0, %v3003
        %3005 = vmatmul.f32.gmra.mxu0 %v1039
        %v3006 = vpop.f32.mrf.mxu0
        %v3007 = vadd.f32 0.0, %v3006
        %3008 = vmatmul.f32.gmra.mxu0 %v1042
        %v3009 = vpop.f32.mrf.mxu0
        %v3010 = vadd.f32 0.0, %v3009
        %3011 = vmatmul.f32.gmra.mxu0 %v1045
        %v3012 = vpop.f32.mrf.mxu0
        %v3013 = vadd.f32 0.0, %v3012
        %3014 = vmatmul.f32.gmra.mxu0 %v1048
        %v3015 = vpop.f32.mrf.mxu0
        %v3016 = vadd.f32 0.0, %v3015
        %3017 = vmatmul.f32.gmra.mxu0 %v1051
        %v3018 = vpop.f32.mrf.mxu0
        %v3019 = vadd.f32 0.0, %v3018
        %3020 = vmatmul.f32.gmra.mxu0 %v1054
        %v3021 = vpop.f32.mrf.mxu0
        %v3022 = vadd.f32 0.0, %v3021
        %3023 = vmatmul.f32.gmra.mxu0 %v1057
        %v3024 = vpop.f32.mrf.mxu0
        %v3025 = vadd.f32 0.0, %v3024
        %3026 = vmatmul.f32.gmra.mxu0 %v1060
        %v3027 = vpop.f32.mrf.mxu0
        %v3028 = vadd.f32 0.0, %v3027
        %3029 = vmatmul.f32.gmra.mxu0 %v1063
        %v3030 = vpop.f32.mrf.mxu0
        %v3031 = vadd.f32 0.0, %v3030
        %3032 = vmatmul.f32.gmra.mxu0 %v1066
        %v3033 = vpop.f32.mrf.mxu0
        %v3034 = vadd.f32 0.0, %v3033
        %3035 = vmatmul.f32.gmra.mxu0 %v1069
        %v3036 = vpop.f32.mrf.mxu0
        %v3037 = vadd.f32 0.0, %v3036
        %3038 = vmatmul.f32.gmra.mxu0 %v1072
        %v3039 = vpop.f32.mrf.mxu0
        %v3040 = vadd.f32 0.0, %v3039
        %3041 = vmatmul.f32.gmra.mxu0 %v1075
        %v3042 = vpop.f32.mrf.mxu0
        %v3043 = vadd.f32 0.0, %v3042
        %3044 = vmatmul.f32.gmra.mxu0 %v1078
        %v3045 = vpop.f32.mrf.mxu0
        %v3046 = vadd.f32 0.0, %v3045
        %3047 = vmatmul.f32.gmra.mxu0 %v1081
        %v3048 = vpop.f32.mrf.mxu0
        %v3049 = vadd.f32 0.0, %v3048
        %3050 = vmatmul.f32.gmra.mxu0 %v1084
        %v3051 = vpop.f32.mrf.mxu0
        %v3052 = vadd.f32 0.0, %v3051
        %3053 = vmatmul.f32.gmra.mxu0 %v1087
        %v3054 = vpop.f32.mrf.mxu0
        %v3055 = vadd.f32 0.0, %v3054
        %3056 = vmatmul.f32.gmra.mxu0 %v1090
        %v3057 = vpop.f32.mrf.mxu0
        %v3058 = vadd.f32 0.0, %v3057
        %3059 = vmatmul.f32.gmra.mxu0 %v1093
        %v3060 = vpop.f32.mrf.mxu0
        %v3061 = vadd.f32 0.0, %v3060
        %3062 = vmatmul.f32.gmra.mxu0 %v1096
        %v3063 = vpop.f32.mrf.mxu0
        %v3064 = vadd.f32 0.0, %v3063
        %3065 = vmatmul.f32.gmra.mxu0 %v1099
        %v3066 = vpop.f32.mrf.mxu0
        %v3067 = vadd.f32 0.0, %v3066
        %3068 = vmatmul.f32.gmra.mxu0 %v1102
        %v3069 = vpop.f32.mrf.mxu0
        %v3070 = vadd.f32 0.0, %v3069
        %3071 = vmatmul.f32.gmra.mxu0 %v1105
        %v3072 = vpop.f32.mrf.mxu0
        %v3073 = vadd.f32 0.0, %v3072
        %3074 = vdwg.mxu0
        %s3075 = scalar_lea.vmem [#allocation16], 1
        %v3076 = vld [vmem:[%s3075] sm:$0x1]
        %v3078 = vperm.slane %v3076, 0
        %v3080 = vadd.f32 %v2980, %v3078
        %v3081 = vadd.f32 %v2983, %v3078
        %v3082 = vadd.f32 %v2986, %v3078
        %v3083 = vadd.f32 %v2989, %v3078
        %v3084 = vadd.f32 %v2992, %v3078
        %v3085 = vadd.f32 %v2995, %v3078
        %v3086 = vadd.f32 %v2998, %v3078
        %v3087 = vadd.f32 %v3001, %v3078
        %v3088 = vadd.f32 %v3004, %v3078
        %v3089 = vadd.f32 %v3007, %v3078
        %v3090 = vadd.f32 %v3010, %v3078
        %v3091 = vadd.f32 %v3013, %v3078
        %v3092 = vadd.f32 %v3016, %v3078
        %v3093 = vadd.f32 %v3019, %v3078
        %v3094 = vadd.f32 %v3022, %v3078
        %v3095 = vadd.f32 %v3025, %v3078
        %v3096 = vadd.f32 %v3028, %v3078
        %v3097 = vadd.f32 %v3031, %v3078
        %v3098 = vadd.f32 %v3034, %v3078
        %v3099 = vadd.f32 %v3037, %v3078
        %v3100 = vadd.f32 %v3040, %v3078
        %v3101 = vadd.f32 %v3043, %v3078
        %v3102 = vadd.f32 %v3046, %v3078
        %v3103 = vadd.f32 %v3049, %v3078
        %v3104 = vadd.f32 %v3052, %v3078
        %v3105 = vadd.f32 %v3055, %v3078
        %v3106 = vadd.f32 %v3058, %v3078
        %v3107 = vadd.f32 %v3061, %v3078
        %v3108 = vadd.f32 %v3064, %v3078
        %v3109 = vadd.f32 %v3067, %v3078
        %v3110 = vadd.f32 %v3070, %v3078
        %v3111 = vadd.f32 %v3073, %v3078
        %v3112 = vmul.f32 %v2770, 1.442695
        %v3113 = vpow.pop %v3112
        %v3114 = vmul.f32 %v2771, 1.442695
        %v3115 = vpow.pop %v3114
        %v3116 = vmul.f32 %v2772, 1.442695
        %v3117 = vpow.pop %v3116
        %v3118 = vmul.f32 %v2773, 1.442695
        %v3119 = vpow.pop %v3118
        %v3120 = vmul.f32 %v2774, 1.442695
        %v3121 = vpow.pop %v3120
        %v3122 = vmul.f32 %v2775, 1.442695
        %v3123 = vpow.pop %v3122
        %v3124 = vmul.f32 %v2776, 1.442695
        %v3125 = vpow.pop %v3124
        %v3126 = vmul.f32 %v2777, 1.442695
        %v3127 = vpow.pop %v3126
        %v3128 = vmul.f32 %v2778, 1.442695
        %v3129 = vpow.pop %v3128
        %v3130 = vmul.f32 %v2779, 1.442695
        %v3131 = vpow.pop %v3130
        %v3132 = vmul.f32 %v2780, 1.442695
        %v3133 = vpow.pop %v3132
        %v3134 = vmul.f32 %v2781, 1.442695
        %v3135 = vpow.pop %v3134
        %v3136 = vmul.f32 %v2782, 1.442695
        %v3137 = vpow.pop %v3136
        %v3138 = vmul.f32 %v2783, 1.442695
        %v3139 = vpow.pop %v3138
        %v3140 = vmul.f32 %v2784, 1.442695
        %v3141 = vpow.pop %v3140
        %v3142 = vmul.f32 %v2785, 1.442695
        %v3143 = vpow.pop %v3142
        %v3144 = vmul.f32 %v2786, 1.442695
        %v3145 = vpow.pop %v3144
        %v3146 = vmul.f32 %v2787, 1.442695
        %v3147 = vpow.pop %v3146
        %v3148 = vmul.f32 %v2788, 1.442695
        %v3149 = vpow.pop %v3148
        %v3150 = vmul.f32 %v2789, 1.442695
        %v3151 = vpow.pop %v3150
        %v3152 = vmul.f32 %v2790, 1.442695
        %v3153 = vpow.pop %v3152
        %v3154 = vmul.f32 %v2791, 1.442695
        %v3155 = vpow.pop %v3154
        %v3156 = vmul.f32 %v2792, 1.442695
        %v3157 = vpow.pop %v3156
        %v3158 = vmul.f32 %v2793, 1.442695
        %v3159 = vpow.pop %v3158
        %v3160 = vmul.f32 %v2794, 1.442695
        %v3161 = vpow.pop %v3160
        %v3162 = vmul.f32 %v2795, 1.442695
        %v3163 = vpow.pop %v3162
        %v3164 = vmul.f32 %v2796, 1.442695
        %v3165 = vpow.pop %v3164
        %v3166 = vmul.f32 %v2797, 1.442695
        %v3167 = vpow.pop %v3166
        %v3168 = vmul.f32 %v2798, 1.442695
        %v3169 = vpow.pop %v3168
        %v3170 = vmul.f32 %v2799, 1.442695
        %v3171 = vpow.pop %v3170
        %v3172 = vmul.f32 %v2800, 1.442695
        %v3173 = vpow.pop %v3172
        %v3174 = vmul.f32 %v2801, 1.442695
        %v3175 = vpow.pop %v3174
        %v3176 = vmul.f32 %v3113, %v938
        %v3177 = vmul.f32 %v3115, %v939
        %v3178 = vmul.f32 %v3117, %v940
        %v3179 = vmul.f32 %v3119, %v941
        %v3180 = vmul.f32 %v3121, %v942
        %v3181 = vmul.f32 %v3123, %v943
        %v3182 = vmul.f32 %v3125, %v944
        %v3183 = vmul.f32 %v3127, %v945
        %v3184 = vmul.f32 %v3129, %v946
        %v3185 = vmul.f32 %v3131, %v947
        %v3186 = vmul.f32 %v3133, %v948
        %v3187 = vmul.f32 %v3135, %v949
        %v3188 = vmul.f32 %v3137, %v950
        %v3189 = vmul.f32 %v3139, %v951
        %v3190 = vmul.f32 %v3141, %v952
        %v3191 = vmul.f32 %v3143, %v953
        %v3192 = vmul.f32 %v3145, %v954
        %v3193 = vmul.f32 %v3147, %v955
        %v3194 = vmul.f32 %v3149, %v956
        %v3195 = vmul.f32 %v3151, %v957
        %v3196 = vmul.f32 %v3153, %v958
        %v3197 = vmul.f32 %v3155, %v959
        %v3198 = vmul.f32 %v3157, %v960
        %v3199 = vmul.f32 %v3159, %v961
        %v3200 = vmul.f32 %v3161, %v962
        %v3201 = vmul.f32 %v3163, %v963
        %v3202 = vmul.f32 %v3165, %v964
        %v3203 = vmul.f32 %v3167, %v965
        %v3204 = vmul.f32 %v3169, %v966
        %v3205 = vmul.f32 %v3171, %v967
        %v3206 = vmul.f32 %v3173, %v968
        %v3207 = vmul.f32 %v3175, %v969
        %v3208 = vmul.f32 %v2770, %v938
        %v3209 = vmul.f32 %v2771, %v939
        %v3210 = vmul.f32 %v2772, %v940
        %v3211 = vmul.f32 %v2773, %v941
        %v3212 = vmul.f32 %v2774, %v942
        %v3213 = vmul.f32 %v2775, %v943
        %v3214 = vmul.f32 %v2776, %v944
        %v3215 = vmul.f32 %v2777, %v945
        %v3216 = vmul.f32 %v2778, %v946
        %v3217 = vmul.f32 %v2779, %v947
        %v3218 = vmul.f32 %v2780, %v948
        %v3219 = vmul.f32 %v2781, %v949
        %v3220 = vmul.f32 %v2782, %v950
        %v3221 = vmul.f32 %v2783, %v951
        %v3222 = vmul.f32 %v2784, %v952
        %v3223 = vmul.f32 %v2785, %v953
        %v3224 = vmul.f32 %v2786, %v954
        %v3225 = vmul.f32 %v2787, %v955
        %v3226 = vmul.f32 %v2788, %v956
        %v3227 = vmul.f32 %v2789, %v957
        %v3228 = vmul.f32 %v2790, %v958
        %v3229 = vmul.f32 %v2791, %v959
        %v3230 = vmul.f32 %v2792, %v960
        %v3231 = vmul.f32 %v2793, %v961
        %v3232 = vmul.f32 %v2794, %v962
        %v3233 = vmul.f32 %v2795, %v963
        %v3234 = vmul.f32 %v2796, %v964
        %v3235 = vmul.f32 %v2797, %v965
        %v3236 = vmul.f32 %v2798, %v966
        %v3237 = vmul.f32 %v2799, %v967
        %v3238 = vmul.f32 %v2800, %v968
        %v3239 = vmul.f32 %v2801, %v969
        %v3240 = vadd.f32 %v3208, %v970
        %v3241 = vadd.f32 %v3209, %v971
        %v3242 = vadd.f32 %v3210, %v972
        %v3243 = vadd.f32 %v3211, %v973
        %v3244 = vadd.f32 %v3212, %v974
        %v3245 = vadd.f32 %v3213, %v975
        %v3246 = vadd.f32 %v3214, %v976
        %v3247 = vadd.f32 %v3215, %v977
        %v3248 = vadd.f32 %v3216, %v978
        %v3249 = vadd.f32 %v3217, %v979
        %v3250 = vadd.f32 %v3218, %v980
        %v3251 = vadd.f32 %v3219, %v981
        %v3252 = vadd.f32 %v3220, %v982
        %v3253 = vadd.f32 %v3221, %v983
        %v3254 = vadd.f32 %v3222, %v984
        %v3255 = vadd.f32 %v3223, %v985
        %v3256 = vadd.f32 %v3224, %v986
        %v3257 = vadd.f32 %v3225, %v987
        %v3258 = vadd.f32 %v3226, %v988
        %v3259 = vadd.f32 %v3227, %v989
        %v3260 = vadd.f32 %v3228, %v990
        %v3261 = vadd.f32 %v3229, %v991
        %v3262 = vadd.f32 %v3230, %v992
        %v3263 = vadd.f32 %v3231, %v993
        %v3264 = vadd.f32 %v3232, %v994
        %v3265 = vadd.f32 %v3233, %v995
        %v3266 = vadd.f32 %v3234, %v996
        %v3267 = vadd.f32 %v3235, %v997
        %v3268 = vadd.f32 %v3236, %v998
        %v3269 = vadd.f32 %v3237, %v999
        %v3270 = vadd.f32 %v3238, %v1000
        %v3271 = vadd.f32 %v3239, %v1001
        %v3272 = vsel %vm1004, %v3176, %v3240
        %v3273 = vsel %vm1004, %v3177, %v3241
        %v3274 = vsel %vm1004, %v3178, %v3242
        %v3275 = vsel %vm1004, %v3179, %v3243
        %v3276 = vsel %vm1004, %v3180, %v3244
        %v3277 = vsel %vm1004, %v3181, %v3245
        %v3278 = vsel %vm1004, %v3182, %v3246
        %v3279 = vsel %vm1004, %v3183, %v3247
        %v3280 = vsel %vm1004, %v3184, %v3248
        %v3281 = vsel %vm1004, %v3185, %v3249
        %v3282 = vsel %vm1004, %v3186, %v3250
        %v3283 = vsel %vm1004, %v3187, %v3251
        %v3284 = vsel %vm1004, %v3188, %v3252
        %v3285 = vsel %vm1004, %v3189, %v3253
        %v3286 = vsel %vm1004, %v3190, %v3254
        %v3287 = vsel %vm1004, %v3191, %v3255
        %v3288 = vsel %vm1004, %v3192, %v3256
        %v3289 = vsel %vm1004, %v3193, %v3257
        %v3290 = vsel %vm1004, %v3194, %v3258
        %v3291 = vsel %vm1004, %v3195, %v3259
        %v3292 = vsel %vm1004, %v3196, %v3260
        %v3293 = vsel %vm1004, %v3197, %v3261
        %v3294 = vsel %vm1004, %v3198, %v3262
        %v3295 = vsel %vm1004, %v3199, %v3263
        %v3296 = vsel %vm1004, %v3200, %v3264
        %v3297 = vsel %vm1004, %v3201, %v3265
        %v3298 = vsel %vm1004, %v3202, %v3266
        %v3299 = vsel %vm1004, %v3203, %v3267
        %v3300 = vsel %vm1004, %v3204, %v3268
        %v3301 = vsel %vm1004, %v3205, %v3269
        %v3302 = vsel %vm1004, %v3206, %v3270
        %v3303 = vsel %vm1004, %v3207, %v3271
        %vm3304 = vcmp.gt.f32.partialorder %v3080, 0.0
        %vm3305 = vcmp.gt.f32.partialorder %v3081, 0.0
        %vm3306 = vcmp.gt.f32.partialorder %v3082, 0.0
        %vm3307 = vcmp.gt.f32.partialorder %v3083, 0.0
        %vm3308 = vcmp.gt.f32.partialorder %v3084, 0.0
        %vm3309 = vcmp.gt.f32.partialorder %v3085, 0.0
        %vm3310 = vcmp.gt.f32.partialorder %v3086, 0.0
        %vm3311 = vcmp.gt.f32.partialorder %v3087, 0.0
        %vm3312 = vcmp.gt.f32.partialorder %v3088, 0.0
        %vm3313 = vcmp.gt.f32.partialorder %v3089, 0.0
        %vm3314 = vcmp.gt.f32.partialorder %v3090, 0.0
        %vm3315 = vcmp.gt.f32.partialorder %v3091, 0.0
        %vm3316 = vcmp.gt.f32.partialorder %v3092, 0.0
        %vm3317 = vcmp.gt.f32.partialorder %v3093, 0.0
        %vm3318 = vcmp.gt.f32.partialorder %v3094, 0.0
        %vm3319 = vcmp.gt.f32.partialorder %v3095, 0.0
        %vm3320 = vcmp.gt.f32.partialorder %v3096, 0.0
        %vm3321 = vcmp.gt.f32.partialorder %v3097, 0.0
        %vm3322 = vcmp.gt.f32.partialorder %v3098, 0.0
        %vm3323 = vcmp.gt.f32.partialorder %v3099, 0.0
        %vm3324 = vcmp.gt.f32.partialorder %v3100, 0.0
        %vm3325 = vcmp.gt.f32.partialorder %v3101, 0.0
        %vm3326 = vcmp.gt.f32.partialorder %v3102, 0.0
        %vm3327 = vcmp.gt.f32.partialorder %v3103, 0.0
        %vm3328 = vcmp.gt.f32.partialorder %v3104, 0.0
        %vm3329 = vcmp.gt.f32.partialorder %v3105, 0.0
        %vm3330 = vcmp.gt.f32.partialorder %v3106, 0.0
        %vm3331 = vcmp.gt.f32.partialorder %v3107, 0.0
        %vm3332 = vcmp.gt.f32.partialorder %v3108, 0.0
        %vm3333 = vcmp.gt.f32.partialorder %v3109, 0.0
        %vm3334 = vcmp.gt.f32.partialorder %v3110, 0.0
        %vm3335 = vcmp.gt.f32.partialorder %v3111, 0.0
        %v3336 = vsel %vm3304, 1, 0
        %v3337 = vsel %vm3305, 1, 0
        %v3338 = vsel %vm3306, 1, 0
        %v3339 = vsel %vm3307, 1, 0
        %v3340 = vsel %vm3308, 1, 0
        %v3341 = vsel %vm3309, 1, 0
        %v3342 = vsel %vm3310, 1, 0
        %v3343 = vsel %vm3311, 1, 0
        %v3344 = vsel %vm3312, 1, 0
        %v3345 = vsel %vm3313, 1, 0
        %v3346 = vsel %vm3314, 1, 0
        %v3347 = vsel %vm3315, 1, 0
        %v3348 = vsel %vm3316, 1, 0
        %v3349 = vsel %vm3317, 1, 0
        %v3350 = vsel %vm3318, 1, 0
        %v3351 = vsel %vm3319, 1, 0
        %v3352 = vsel %vm3320, 1, 0
        %v3353 = vsel %vm3321, 1, 0
        %v3354 = vsel %vm3322, 1, 0
        %v3355 = vsel %vm3323, 1, 0
        %v3356 = vsel %vm3324, 1, 0
        %v3357 = vsel %vm3325, 1, 0
        %v3358 = vsel %vm3326, 1, 0
        %v3359 = vsel %vm3327, 1, 0
        %v3360 = vsel %vm3328, 1, 0
        %v3361 = vsel %vm3329, 1, 0
        %v3362 = vsel %vm3330, 1, 0
        %v3363 = vsel %vm3331, 1, 0
        %v3364 = vsel %vm3332, 1, 0
        %v3365 = vsel %vm3333, 1, 0
        %v3366 = vsel %vm3334, 1, 0
        %v3367 = vsel %vm3335, 1, 0
        %v3368 = vcvt.s32.f32 %v3336
        %v3369 = vcvt.s32.f32 %v3337
        %v3370 = vcvt.s32.f32 %v3338
        %v3371 = vcvt.s32.f32 %v3339
        %v3372 = vcvt.s32.f32 %v3340
        %v3373 = vcvt.s32.f32 %v3341
        %v3374 = vcvt.s32.f32 %v3342
        %v3375 = vcvt.s32.f32 %v3343
        %v3376 = vcvt.s32.f32 %v3344
        %v3377 = vcvt.s32.f32 %v3345
        %v3378 = vcvt.s32.f32 %v3346
        %v3379 = vcvt.s32.f32 %v3347
        %v3380 = vcvt.s32.f32 %v3348
        %v3381 = vcvt.s32.f32 %v3349
        %v3382 = vcvt.s32.f32 %v3350
        %v3383 = vcvt.s32.f32 %v3351
        %v3384 = vcvt.s32.f32 %v3352
        %v3385 = vcvt.s32.f32 %v3353
        %v3386 = vcvt.s32.f32 %v3354
        %v3387 = vcvt.s32.f32 %v3355
        %v3388 = vcvt.s32.f32 %v3356
        %v3389 = vcvt.s32.f32 %v3357
        %v3390 = vcvt.s32.f32 %v3358
        %v3391 = vcvt.s32.f32 %v3359
        %v3392 = vcvt.s32.f32 %v3360
        %v3393 = vcvt.s32.f32 %v3361
        %v3394 = vcvt.s32.f32 %v3362
        %v3395 = vcvt.s32.f32 %v3363
        %v3396 = vcvt.s32.f32 %v3364
        %v3397 = vcvt.s32.f32 %v3365
        %v3398 = vcvt.s32.f32 %v3366
        %v3399 = vcvt.s32.f32 %v3367
        %v3400 = vsub.f32 %v3272, 0.78539
        %v3401 = vsub.f32 %v3273, 0.78539
        %v3402 = vsub.f32 %v3274, 0.78539
        %v3403 = vsub.f32 %v3275, 0.78539
        %v3404 = vsub.f32 %v3276, 0.78539
        %v3405 = vsub.f32 %v3277, 0.78539
        %v3406 = vsub.f32 %v3278, 0.78539
        %v3407 = vsub.f32 %v3279, 0.78539
        %v3408 = vsub.f32 %v3280, 0.78539
        %v3409 = vsub.f32 %v3281, 0.78539
        %v3410 = vsub.f32 %v3282, 0.78539
        %v3411 = vsub.f32 %v3283, 0.78539
        %v3412 = vsub.f32 %v3284, 0.78539
        %v3413 = vsub.f32 %v3285, 0.78539
        %v3414 = vsub.f32 %v3286, 0.78539
        %v3415 = vsub.f32 %v3287, 0.78539
        %v3416 = vsub.f32 %v3288, 0.78539
        %v3417 = vsub.f32 %v3289, 0.78539
        %v3418 = vsub.f32 %v3290, 0.78539
        %v3419 = vsub.f32 %v3291, 0.78539
        %v3420 = vsub.f32 %v3292, 0.78539
        %v3421 = vsub.f32 %v3293, 0.78539
        %v3422 = vsub.f32 %v3294, 0.78539
        %v3423 = vsub.f32 %v3295, 0.78539
        %v3424 = vsub.f32 %v3296, 0.78539
        %v3425 = vsub.f32 %v3297, 0.78539
        %v3426 = vsub.f32 %v3298, 0.78539
        %v3427 = vsub.f32 %v3299, 0.78539
        %v3428 = vsub.f32 %v3300, 0.78539
        %v3429 = vsub.f32 %v3301, 0.78539
        %v3430 = vsub.f32 %v3302, 0.78539
        %v3431 = vsub.f32 %v3303, 0.78539
        %v3432 = vmul.f32 %v3400, %v2041
        %v3433 = vmul.f32 %v3401, %v2041
        %v3434 = vmul.f32 %v3402, %v2041
        %v3435 = vmul.f32 %v3403, %v2041
        %v3436 = vmul.f32 %v3404, %v2041
        %v3437 = vmul.f32 %v3405, %v2041
        %v3438 = vmul.f32 %v3406, %v2041
        %v3439 = vmul.f32 %v3407, %v2041
        %v3440 = vmul.f32 %v3408, %v2041
        %v3441 = vmul.f32 %v3409, %v2041
        %v3442 = vmul.f32 %v3410, %v2041
        %v3443 = vmul.f32 %v3411, %v2041
        %v3444 = vmul.f32 %v3412, %v2041
        %v3445 = vmul.f32 %v3413, %v2041
        %v3446 = vmul.f32 %v3414, %v2041
        %v3447 = vmul.f32 %v3415, %v2041
        %v3448 = vmul.f32 %v3416, %v2041
        %v3449 = vmul.f32 %v3417, %v2041
        %v3450 = vmul.f32 %v3418, %v2041
        %v3451 = vmul.f32 %v3419, %v2041
        %v3452 = vmul.f32 %v3420, %v2041
        %v3453 = vmul.f32 %v3421, %v2041
        %v3454 = vmul.f32 %v3422, %v2041
        %v3455 = vmul.f32 %v3423, %v2041
        %v3456 = vmul.f32 %v3424, %v2041
        %v3457 = vmul.f32 %v3425, %v2041
        %v3458 = vmul.f32 %v3426, %v2041
        %v3459 = vmul.f32 %v3427, %v2041
        %v3460 = vmul.f32 %v3428, %v2041
        %v3461 = vmul.f32 %v3429, %v2041
        %v3462 = vmul.f32 %v3430, %v2041
        %v3463 = vmul.f32 %v3431, %v2041
        %v3464 = vadd.f32 %v3432, 0.0
        %v3465 = vadd.f32 %v3433, 0.0
        %v3466 = vadd.f32 %v3434, 0.0
        %v3467 = vadd.f32 %v3435, 0.0
        %v3468 = vadd.f32 %v3436, 0.0
        %v3469 = vadd.f32 %v3437, 0.0
        %v3470 = vadd.f32 %v3438, 0.0
        %v3471 = vadd.f32 %v3439, 0.0
        %v3472 = vadd.f32 %v3440, 0.0
        %v3473 = vadd.f32 %v3441, 0.0
        %v3474 = vadd.f32 %v3442, 0.0
        %v3475 = vadd.f32 %v3443, 0.0
        %v3476 = vadd.f32 %v3444, 0.0
        %v3477 = vadd.f32 %v3445, 0.0
        %v3478 = vadd.f32 %v3446, 0.0
        %v3479 = vadd.f32 %v3447, 0.0
        %v3480 = vadd.f32 %v3448, 0.0
        %v3481 = vadd.f32 %v3449, 0.0
        %v3482 = vadd.f32 %v3450, 0.0
        %v3483 = vadd.f32 %v3451, 0.0
        %v3484 = vadd.f32 %v3452, 0.0
        %v3485 = vadd.f32 %v3453, 0.0
        %v3486 = vadd.f32 %v3454, 0.0
        %v3487 = vadd.f32 %v3455, 0.0
        %v3488 = vadd.f32 %v3456, 0.0
        %v3489 = vadd.f32 %v3457, 0.0
        %v3490 = vadd.f32 %v3458, 0.0
        %v3491 = vadd.f32 %v3459, 0.0
        %v3492 = vadd.f32 %v3460, 0.0
        %v3493 = vadd.f32 %v3461, 0.0
        %v3494 = vadd.f32 %v3462, 0.0
        %v3495 = vadd.f32 %v3463, 0.0
        %v3496 = vfloor.f32 %v3464
        %v3497 = vfloor.f32 %v3465
        %v3498 = vfloor.f32 %v3466
        %v3499 = vfloor.f32 %v3467
        %v3500 = vfloor.f32 %v3468
        %v3501 = vfloor.f32 %v3469
        %v3502 = vfloor.f32 %v3470
        %v3503 = vfloor.f32 %v3471
        %v3504 = vfloor.f32 %v3472
        %v3505 = vfloor.f32 %v3473
        %v3506 = vfloor.f32 %v3474
        %v3507 = vfloor.f32 %v3475
        %v3508 = vfloor.f32 %v3476
        %v3509 = vfloor.f32 %v3477
        %v3510 = vfloor.f32 %v3478
        %v3511 = vfloor.f32 %v3479
        %v3512 = vfloor.f32 %v3480
        %v3513 = vfloor.f32 %v3481
        %v3514 = vfloor.f32 %v3482
        %v3515 = vfloor.f32 %v3483
        %v3516 = vfloor.f32 %v3484
        %v3517 = vfloor.f32 %v3485
        %v3518 = vfloor.f32 %v3486
        %v3519 = vfloor.f32 %v3487
        %v3520 = vfloor.f32 %v3488
        %v3521 = vfloor.f32 %v3489
        %v3522 = vfloor.f32 %v3490
        %v3523 = vfloor.f32 %v3491
        %v3524 = vfloor.f32 %v3492
        %v3525 = vfloor.f32 %v3493
        %v3526 = vfloor.f32 %v3494
        %v3527 = vfloor.f32 %v3495
        %v3528 = vmul.f32 %v3496, 3.1415927
        %v3529 = vmul.f32 %v3497, 3.1415927
        %v3530 = vmul.f32 %v3498, 3.1415927
        %v3531 = vmul.f32 %v3499, 3.1415927
        %v3532 = vmul.f32 %v3500, 3.1415927
        %v3533 = vmul.f32 %v3501, 3.1415927
        %v3534 = vmul.f32 %v3502, 3.1415927
        %v3535 = vmul.f32 %v3503, 3.1415927
        %v3536 = vmul.f32 %v3504, 3.1415927
        %v3537 = vmul.f32 %v3505, 3.1415927
        %v3538 = vmul.f32 %v3506, 3.1415927
        %v3539 = vmul.f32 %v3507, 3.1415927
        %v3540 = vmul.f32 %v3508, 3.1415927
        %v3541 = vmul.f32 %v3509, 3.1415927
        %v3542 = vmul.f32 %v3510, 3.1415927
        %v3543 = vmul.f32 %v3511, 3.1415927
        %v3544 = vmul.f32 %v3512, 3.1415927
        %v3545 = vmul.f32 %v3513, 3.1415927
        %v3546 = vmul.f32 %v3514, 3.1415927
        %v3547 = vmul.f32 %v3515, 3.1415927
        %v3548 = vmul.f32 %v3516, 3.1415927
        %v3549 = vmul.f32 %v3517, 3.1415927
        %v3550 = vmul.f32 %v3518, 3.1415927
        %v3551 = vmul.f32 %v3519, 3.1415927
        %v3552 = vmul.f32 %v3520, 3.1415927
        %v3553 = vmul.f32 %v3521, 3.1415927
        %v3554 = vmul.f32 %v3522, 3.1415927
        %v3555 = vmul.f32 %v3523, 3.1415927
        %v3556 = vmul.f32 %v3524, 3.1415927
        %v3557 = vmul.f32 %v3525, 3.1415927
        %v3558 = vmul.f32 %v3526, 3.1415927
        %v3559 = vmul.f32 %v3527, 3.1415927
        %v3560 = vsub.f32 %v3400, %v3528
        %v3561 = vsub.f32 %v3401, %v3529
        %v3562 = vsub.f32 %v3402, %v3530
        %v3563 = vsub.f32 %v3403, %v3531
        %v3564 = vsub.f32 %v3404, %v3532
        %v3565 = vsub.f32 %v3405, %v3533
        %v3566 = vsub.f32 %v3406, %v3534
        %v3567 = vsub.f32 %v3407, %v3535
        %v3568 = vsub.f32 %v3408, %v3536
        %v3569 = vsub.f32 %v3409, %v3537
        %v3570 = vsub.f32 %v3410, %v3538
        %v3571 = vsub.f32 %v3411, %v3539
        %v3572 = vsub.f32 %v3412, %v3540
        %v3573 = vsub.f32 %v3413, %v3541
        %v3574 = vsub.f32 %v3414, %v3542
        %v3575 = vsub.f32 %v3415, %v3543
        %v3576 = vsub.f32 %v3416, %v3544
        %v3577 = vsub.f32 %v3417, %v3545
        %v3578 = vsub.f32 %v3418, %v3546
        %v3579 = vsub.f32 %v3419, %v3547
        %v3580 = vsub.f32 %v3420, %v3548
        %v3581 = vsub.f32 %v3421, %v3549
        %v3582 = vsub.f32 %v3422, %v3550
        %v3583 = vsub.f32 %v3423, %v3551
        %v3584 = vsub.f32 %v3424, %v3552
        %v3585 = vsub.f32 %v3425, %v3553
        %v3586 = vsub.f32 %v3426, %v3554
        %v3587 = vsub.f32 %v3427, %v3555
        %v3588 = vsub.f32 %v3428, %v3556
        %v3589 = vsub.f32 %v3429, %v3557
        %v3590 = vsub.f32 %v3430, %v3558
        %v3591 = vsub.f32 %v3431, %v3559
        %v3592 = vadd.f32 %v3560, 0.78539
        %v3593 = vadd.f32 %v3561, 0.78539
        %v3594 = vadd.f32 %v3562, 0.78539
        %v3595 = vadd.f32 %v3563, 0.78539
        %v3596 = vadd.f32 %v3564, 0.78539
        %v3597 = vadd.f32 %v3565, 0.78539
        %v3598 = vadd.f32 %v3566, 0.78539
        %v3599 = vadd.f32 %v3567, 0.78539
        %v3600 = vadd.f32 %v3568, 0.78539
        %v3601 = vadd.f32 %v3569, 0.78539
        %v3602 = vadd.f32 %v3570, 0.78539
        %v3603 = vadd.f32 %v3571, 0.78539
        %v3604 = vadd.f32 %v3572, 0.78539
        %v3605 = vadd.f32 %v3573, 0.78539
        %v3606 = vadd.f32 %v3574, 0.78539
        %v3607 = vadd.f32 %v3575, 0.78539
        %v3608 = vadd.f32 %v3576, 0.78539
        %v3609 = vadd.f32 %v3577, 0.78539
        %v3610 = vadd.f32 %v3578, 0.78539
        %v3611 = vadd.f32 %v3579, 0.78539
        %v3612 = vadd.f32 %v3580, 0.78539
        %v3613 = vadd.f32 %v3581, 0.78539
        %v3614 = vadd.f32 %v3582, 0.78539
        %v3615 = vadd.f32 %v3583, 0.78539
        %v3616 = vadd.f32 %v3584, 0.78539
        %v3617 = vadd.f32 %v3585, 0.78539
        %v3618 = vadd.f32 %v3586, 0.78539
        %v3619 = vadd.f32 %v3587, 0.78539
        %v3620 = vadd.f32 %v3588, 0.78539
        %v3621 = vadd.f32 %v3589, 0.78539
        %v3622 = vadd.f32 %v3590, 0.78539
        %v3623 = vadd.f32 %v3591, 0.78539
        %v3624 = vmul.f32 %v3368, 3.1415927
        %v3625 = vmul.f32 %v3369, 3.1415927
        %v3626 = vmul.f32 %v3370, 3.1415927
        %v3627 = vmul.f32 %v3371, 3.1415927
        %v3628 = vmul.f32 %v3372, 3.1415927
        %v3629 = vmul.f32 %v3373, 3.1415927
        %v3630 = vmul.f32 %v3374, 3.1415927
        %v3631 = vmul.f32 %v3375, 3.1415927
        %v3632 = vmul.f32 %v3376, 3.1415927
        %v3633 = vmul.f32 %v3377, 3.1415927
        %v3634 = vmul.f32 %v3378, 3.1415927
        %v3635 = vmul.f32 %v3379, 3.1415927
        %v3636 = vmul.f32 %v3380, 3.1415927
        %v3637 = vmul.f32 %v3381, 3.1415927
        %v3638 = vmul.f32 %v3382, 3.1415927
        %v3639 = vmul.f32 %v3383, 3.1415927
        %v3640 = vmul.f32 %v3384, 3.1415927
        %v3641 = vmul.f32 %v3385, 3.1415927
        %v3642 = vmul.f32 %v3386, 3.1415927
        %v3643 = vmul.f32 %v3387, 3.1415927
        %v3644 = vmul.f32 %v3388, 3.1415927
        %v3645 = vmul.f32 %v3389, 3.1415927
        %v3646 = vmul.f32 %v3390, 3.1415927
        %v3647 = vmul.f32 %v3391, 3.1415927
        %v3648 = vmul.f32 %v3392, 3.1415927
        %v3649 = vmul.f32 %v3393, 3.1415927
        %v3650 = vmul.f32 %v3394, 3.1415927
        %v3651 = vmul.f32 %v3395, 3.1415927
        %v3652 = vmul.f32 %v3396, 3.1415927
        %v3653 = vmul.f32 %v3397, 3.1415927
        %v3654 = vmul.f32 %v3398, 3.1415927
        %v3655 = vmul.f32 %v3399, 3.1415927
        %v3656 = vadd.f32 %v3592, %v3624
        %v3657 = vadd.f32 %v3593, %v3625
        %v3658 = vadd.f32 %v3594, %v3626
        %v3659 = vadd.f32 %v3595, %v3627
        %v3660 = vadd.f32 %v3596, %v3628
        %v3661 = vadd.f32 %v3597, %v3629
        %v3662 = vadd.f32 %v3598, %v3630
        %v3663 = vadd.f32 %v3599, %v3631
        %v3664 = vadd.f32 %v3600, %v3632
        %v3665 = vadd.f32 %v3601, %v3633
        %v3666 = vadd.f32 %v3602, %v3634
        %v3667 = vadd.f32 %v3603, %v3635
        %v3668 = vadd.f32 %v3604, %v3636
        %v3669 = vadd.f32 %v3605, %v3637
        %v3670 = vadd.f32 %v3606, %v3638
        %v3671 = vadd.f32 %v3607, %v3639
        %v3672 = vadd.f32 %v3608, %v3640
        %v3673 = vadd.f32 %v3609, %v3641
        %v3674 = vadd.f32 %v3610, %v3642
        %v3675 = vadd.f32 %v3611, %v3643
        %v3676 = vadd.f32 %v3612, %v3644
        %v3677 = vadd.f32 %v3613, %v3645
        %v3678 = vadd.f32 %v3614, %v3646
        %v3679 = vadd.f32 %v3615, %v3647
        %v3680 = vadd.f32 %v3616, %v3648
        %v3681 = vadd.f32 %v3617, %v3649
        %v3682 = vadd.f32 %v3618, %v3650
        %v3683 = vadd.f32 %v3619, %v3651
        %v3684 = vadd.f32 %v3620, %v3652
        %v3685 = vadd.f32 %v3621, %v3653
        %v3686 = vadd.f32 %v3622, %v3654
        %v3687 = vadd.f32 %v3623, %v3655
        %v3688 = vsel %vm1005, %v3656, %v3272
        %v3689 = vsel %vm1005, %v3657, %v3273
        %v3690 = vsel %vm1005, %v3658, %v3274
        %v3691 = vsel %vm1005, %v3659, %v3275
        %v3692 = vsel %vm1005, %v3660, %v3276
        %v3693 = vsel %vm1005, %v3661, %v3277
        %v3694 = vsel %vm1005, %v3662, %v3278
        %v3695 = vsel %vm1005, %v3663, %v3279
        %v3696 = vsel %vm1005, %v3664, %v3280
        %v3697 = vsel %vm1005, %v3665, %v3281
        %v3698 = vsel %vm1005, %v3666, %v3282
        %v3699 = vsel %vm1005, %v3667, %v3283
        %v3700 = vsel %vm1005, %v3668, %v3284
        %v3701 = vsel %vm1005, %v3669, %v3285
        %v3702 = vsel %vm1005, %v3670, %v3286
        %v3703 = vsel %vm1005, %v3671, %v3287
        %v3704 = vsel %vm1005, %v3672, %v3288
        %v3705 = vsel %vm1005, %v3673, %v3289
        %v3706 = vsel %vm1005, %v3674, %v3290
        %v3707 = vsel %vm1005, %v3675, %v3291
        %v3708 = vsel %vm1005, %v3676, %v3292
        %v3709 = vsel %vm1005, %v3677, %v3293
        %v3710 = vsel %vm1005, %v3678, %v3294
        %v3711 = vsel %vm1005, %v3679, %v3295
        %v3712 = vsel %vm1005, %v3680, %v3296
        %v3713 = vsel %vm1005, %v3681, %v3297
        %v3714 = vsel %vm1005, %v3682, %v3298
        %v3715 = vsel %vm1005, %v3683, %v3299
        %v3716 = vsel %vm1005, %v3684, %v3300
        %v3717 = vsel %vm1005, %v3685, %v3301
        %v3718 = vsel %vm1005, %v3686, %v3302
        %v3719 = vsel %vm1005, %v3687, %v3303
        %3720 = vst.msk [vmem:[%s884] sm:$0xff] %vm2330, %v2615
        %3721 = vst.msk [vmem:[%s884 + $0x8] sm:$0xff] %vm2330, %v2616
        %3722 = vst.msk [vmem:[%s884 + $0x10] sm:$0xff] %vm2330, %v2617
        %3723 = vst.msk [vmem:[%s884 + $0x18] sm:$0xff] %vm2330, %v2618
        %3724 = vst.msk [vmem:[%s884 + $0x20] sm:$0xff] %vm2330, %v2619
        %3725 = vst.msk [vmem:[%s884 + $0x28] sm:$0xff] %vm2330, %v2620
        %3726 = vst.msk [vmem:[%s884 + $0x30] sm:$0xff] %vm2330, %v2621
        %3727 = vst.msk [vmem:[%s884 + $0x38] sm:$0xff] %vm2330, %v2622
        %3728 = vst.msk [vmem:[%s884 + $0x40] sm:$0xff] %vm2330, %v2623
        %3729 = vst.msk [vmem:[%s884 + $0x48] sm:$0xff] %vm2330, %v2624
        %3730 = vst.msk [vmem:[%s884 + $0x50] sm:$0xff] %vm2330, %v2625
        %3731 = vst.msk [vmem:[%s884 + $0x58] sm:$0xff] %vm2330, %v2626
        %3732 = vst.msk [vmem:[%s884 + $0x60] sm:$0xff] %vm2330, %v2627
        %3733 = vst.msk [vmem:[%s884 + $0x68] sm:$0xff] %vm2330, %v2628
        %3734 = vst.msk [vmem:[%s884 + $0x70] sm:$0xff] %vm2330, %v2629
        %3735 = vst.msk [vmem:[%s884 + $0x78] sm:$0xff] %vm2330, %v2630
        %3736 = vst.msk [vmem:[%s884 + $0x80] sm:$0xff] %vm2330, %v2631
        %3737 = vst.msk [vmem:[%s884 + $0x88] sm:$0xff] %vm2330, %v2632
        %3738 = vst.msk [vmem:[%s884 + $0x90] sm:$0xff] %vm2330, %v2633
        %3739 = vst.msk [vmem:[%s884 + $0x98] sm:$0xff] %vm2330, %v2634
        %3740 = vst.msk [vmem:[%s884 + $0xa0] sm:$0xff] %vm2330, %v2635
        %3741 = vst.msk [vmem:[%s884 + $0xa8] sm:$0xff] %vm2330, %v2636
        %3742 = vst.msk [vmem:[%s884 + $0xb0] sm:$0xff] %vm2330, %v2637
        %3743 = vst.msk [vmem:[%s884 + $0xb8] sm:$0xff] %vm2330, %v2638
        %3744 = vst.msk [vmem:[%s884 + $0xc0] sm:$0xff] %vm2330, %v2639
        %3745 = vst.msk [vmem:[%s884 + $0xc8] sm:$0xff] %vm2330, %v2640
        %3746 = vst.msk [vmem:[%s884 + $0xd0] sm:$0xff] %vm2330, %v2641
        %3747 = vst.msk [vmem:[%s884 + $0xd8] sm:$0xff] %vm2330, %v2642
        %3748 = vst.msk [vmem:[%s884 + $0xe0] sm:$0xff] %vm2330, %v2643
        %3749 = vst.msk [vmem:[%s884 + $0xe8] sm:$0xff] %vm2330, %v2644
        %3750 = vst.msk [vmem:[%s884 + $0xf0] sm:$0xff] %vm2330, %v2645
        %3751 = vst.msk [vmem:[%s884 + $0xf8] sm:$0xff] %vm2330, %v2646
        %3752 = vst.msk [vmem:[%s894] sm:$0xff] %vm2363, %v3688
        %3753 = vst.msk [vmem:[%s894 + $0x8] sm:$0xff] %vm2363, %v3689
        %3754 = vst.msk [vmem:[%s894 + $0x10] sm:$0xff] %vm2363, %v3690
        %3755 = vst.msk [vmem:[%s894 + $0x18] sm:$0xff] %vm2363, %v3691
        %3756 = vst.msk [vmem:[%s894 + $0x20] sm:$0xff] %vm2363, %v3692
        %3757 = vst.msk [vmem:[%s894 + $0x28] sm:$0xff] %vm2363, %v3693
        %3758 = vst.msk [vmem:[%s894 + $0x30] sm:$0xff] %vm2363, %v3694
        %3759 = vst.msk [vmem:[%s894 + $0x38] sm:$0xff] %vm2363, %v3695
        %3760 = vst.msk [vmem:[%s894 + $0x40] sm:$0xff] %vm2363, %v3696
        %3761 = vst.msk [vmem:[%s894 + $0x48] sm:$0xff] %vm2363, %v3697
        %3762 = vst.msk [vmem:[%s894 + $0x50] sm:$0xff] %vm2363, %v3698
        %3763 = vst.msk [vmem:[%s894 + $0x58] sm:$0xff] %vm2363, %v3699
        %3764 = vst.msk [vmem:[%s894 + $0x60] sm:$0xff] %vm2363, %v3700
        %3765 = vst.msk [vmem:[%s894 + $0x68] sm:$0xff] %vm2363, %v3701
        %3766 = vst.msk [vmem:[%s894 + $0x70] sm:$0xff] %vm2363, %v3702
        %3767 = vst.msk [vmem:[%s894 + $0x78] sm:$0xff] %vm2363, %v3703
        %3768 = vst.msk [vmem:[%s894 + $0x80] sm:$0xff] %vm2363, %v3704
        %3769 = vst.msk [vmem:[%s894 + $0x88] sm:$0xff] %vm2363, %v3705
        %3770 = vst.msk [vmem:[%s894 + $0x90] sm:$0xff] %vm2363, %v3706
        %3771 = vst.msk [vmem:[%s894 + $0x98] sm:$0xff] %vm2363, %v3707
        %3772 = vst.msk [vmem:[%s894 + $0xa0] sm:$0xff] %vm2363, %v3708
        %3773 = vst.msk [vmem:[%s894 + $0xa8] sm:$0xff] %vm2363, %v3709
        %3774 = vst.msk [vmem:[%s894 + $0xb0] sm:$0xff] %vm2363, %v3710
        %3775 = vst.msk [vmem:[%s894 + $0xb8] sm:$0xff] %vm2363, %v3711
        %3776 = vst.msk [vmem:[%s894 + $0xc0] sm:$0xff] %vm2363, %v3712
        %3777 = vst.msk [vmem:[%s894 + $0xc8] sm:$0xff] %vm2363, %v3713
        %3778 = vst.msk [vmem:[%s894 + $0xd0] sm:$0xff] %vm2363, %v3714
        %3779 = vst.msk [vmem:[%s894 + $0xd8] sm:$0xff] %vm2363, %v3715
        %3780 = vst.msk [vmem:[%s894 + $0xe0] sm:$0xff] %vm2363, %v3716
        %3781 = vst.msk [vmem:[%s894 + $0xe8] sm:$0xff] %vm2363, %v3717
        %3782 = vst.msk [vmem:[%s894 + $0xf0] sm:$0xff] %vm2363, %v3718
        %3783 = vst.msk [vmem:[%s894 + $0xf8] sm:$0xff] %vm2363, %v3719
        %v3784 = vmul.f32 %v2925, 1.442695
        %v3785 = vpow.pop %v3784
        %v3786 = vmul.f32 %v2926, 1.442695
        %v3787 = vpow.pop %v3786
        %v3788 = vmul.f32 %v2927, 1.442695
        %v3789 = vpow.pop %v3788
        %v3790 = vmul.f32 %v2928, 1.442695
        %v3791 = vpow.pop %v3790
        %v3792 = vmul.f32 %v2929, 1.442695
        %v3793 = vpow.pop %v3792
        %v3794 = vmul.f32 %v2930, 1.442695
        %v3795 = vpow.pop %v3794
        %v3796 = vmul.f32 %v2931, 1.442695
        %v3797 = vpow.pop %v3796
        %v3798 = vmul.f32 %v2932, 1.442695
        %v3799 = vpow.pop %v3798
        %v3800 = vmul.f32 %v2933, 1.442695
        %v3801 = vpow.pop %v3800
        %v3802 = vmul.f32 %v2934, 1.442695
        %v3803 = vpow.pop %v3802
        %v3804 = vmul.f32 %v2935, 1.442695
        %v3805 = vpow.pop %v3804
        %v3806 = vmul.f32 %v2936, 1.442695
        %v3807 = vpow.pop %v3806
        %v3808 = vmul.f32 %v2937, 1.442695
        %v3809 = vpow.pop %v3808
        %v3810 = vmul.f32 %v2938, 1.442695
        %v3811 = vpow.pop %v3810
        %v3812 = vmul.f32 %v2939, 1.442695
        %v3813 = vpow.pop %v3812
        %v3814 = vmul.f32 %v2940, 1.442695
        %v3815 = vpow.pop %v3814
        %v3816 = vmul.f32 %v2941, 1.442695
        %v3817 = vpow.pop %v3816
        %v3818 = vmul.f32 %v2942, 1.442695
        %v3819 = vpow.pop %v3818
        %v3820 = vmul.f32 %v2943, 1.442695
        %v3821 = vpow.pop %v3820
        %v3822 = vmul.f32 %v2944, 1.442695
        %v3823 = vpow.pop %v3822
        %v3824 = vmul.f32 %v2945, 1.442695
        %v3825 = vpow.pop %v3824
        %v3826 = vmul.f32 %v2946, 1.442695
        %v3827 = vpow.pop %v3826
        %v3828 = vmul.f32 %v2947, 1.442695
        %v3829 = vpow.pop %v3828
        %v3830 = vmul.f32 %v2948, 1.442695
        %v3831 = vpow.pop %v3830
        %v3832 = vmul.f32 %v2949, 1.442695
        %v3833 = vpow.pop %v3832
        %v3834 = vmul.f32 %v2950, 1.442695
        %v3835 = vpow.pop %v3834
        %v3836 = vmul.f32 %v2951, 1.442695
        %v3837 = vpow.pop %v3836
        %v3838 = vmul.f32 %v2952, 1.442695
        %v3839 = vpow.pop %v3838
        %v3840 = vmul.f32 %v2953, 1.442695
        %v3841 = vpow.pop %v3840
        %v3842 = vmul.f32 %v2954, 1.442695
        %v3843 = vpow.pop %v3842
        %v3844 = vmul.f32 %v2955, 1.442695
        %v3845 = vpow.pop %v3844
        %v3846 = vmul.f32 %v2956, 1.442695
        %v3847 = vpow.pop %v3846
        %3848 = vst.msk [vmem:[%s904] sm:$0xff] %vm2363, %v3785
        %3849 = vst.msk [vmem:[%s904 + $0x8] sm:$0xff] %vm2363, %v3787
        %3850 = vst.msk [vmem:[%s904 + $0x10] sm:$0xff] %vm2363, %v3789
        %3851 = vst.msk [vmem:[%s904 + $0x18] sm:$0xff] %vm2363, %v3791
        %3852 = vst.msk [vmem:[%s904 + $0x20] sm:$0xff] %vm2363, %v3793
        %3853 = vst.msk [vmem:[%s904 + $0x28] sm:$0xff] %vm2363, %v3795
        %3854 = vst.msk [vmem:[%s904 + $0x30] sm:$0xff] %vm2363, %v3797
        %3855 = vst.msk [vmem:[%s904 + $0x38] sm:$0xff] %vm2363, %v3799
        %3856 = vst.msk [vmem:[%s904 + $0x40] sm:$0xff] %vm2363, %v3801
        %3857 = vst.msk [vmem:[%s904 + $0x48] sm:$0xff] %vm2363, %v3803
        %3858 = vst.msk [vmem:[%s904 + $0x50] sm:$0xff] %vm2363, %v3805
        %3859 = vst.msk [vmem:[%s904 + $0x58] sm:$0xff] %vm2363, %v3807
        %3860 = vst.msk [vmem:[%s904 + $0x60] sm:$0xff] %vm2363, %v3809
        %3861 = vst.msk [vmem:[%s904 + $0x68] sm:$0xff] %vm2363, %v3811
        %3862 = vst.msk [vmem:[%s904 + $0x70] sm:$0xff] %vm2363, %v3813
        %3863 = vst.msk [vmem:[%s904 + $0x78] sm:$0xff] %vm2363, %v3815
        %3864 = vst.msk [vmem:[%s904 + $0x80] sm:$0xff] %vm2363, %v3817
        %3865 = vst.msk [vmem:[%s904 + $0x88] sm:$0xff] %vm2363, %v3819
        %3866 = vst.msk [vmem:[%s904 + $0x90] sm:$0xff] %vm2363, %v3821
        %3867 = vst.msk [vmem:[%s904 + $0x98] sm:$0xff] %vm2363, %v3823
        %3868 = vst.msk [vmem:[%s904 + $0xa0] sm:$0xff] %vm2363, %v3825
        %3869 = vst.msk [vmem:[%s904 + $0xa8] sm:$0xff] %vm2363, %v3827
        %3870 = vst.msk [vmem:[%s904 + $0xb0] sm:$0xff] %vm2363, %v3829
        %3871 = vst.msk [vmem:[%s904 + $0xb8] sm:$0xff] %vm2363, %v3831
        %3872 = vst.msk [vmem:[%s904 + $0xc0] sm:$0xff] %vm2363, %v3833
        %3873 = vst.msk [vmem:[%s904 + $0xc8] sm:$0xff] %vm2363, %v3835
        %3874 = vst.msk [vmem:[%s904 + $0xd0] sm:$0xff] %vm2363, %v3837
        %3875 = vst.msk [vmem:[%s904 + $0xd8] sm:$0xff] %vm2363, %v3839
        %3876 = vst.msk [vmem:[%s904 + $0xe0] sm:$0xff] %vm2363, %v3841
        %3877 = vst.msk [vmem:[%s904 + $0xe8] sm:$0xff] %vm2363, %v3843
        %3878 = vst.msk [vmem:[%s904 + $0xf0] sm:$0xff] %vm2363, %v3845
        %3879 = vst.msk [vmem:[%s904 + $0xf8] sm:$0xff] %vm2363, %v3847
        %s3880 = smul.u32 32, %s41
        %p3881 = scmp.lt.s32.totalorder %s42, 1
        %s3882 = scalar_select %p3881, %s42, 1
        %p3883 = scmp.lt.s32.totalorder %s3880, 31
        %s3884 = scalar_select %p3883, %s3880, 31
        %s3885 = smul.addr %s3882, 32
        %s3886 = sadd.s32 %s3884, %s3885
        %s3887 = smul.addr %s3886, 8
        %s3888 = scalar_lea.vmem %s12, %s3887
        %s3889 = smul.u32 32, %s41
        %p3890 = scmp.lt.s32.totalorder %s42, 1
        %s3891 = scalar_select %p3890, %s42, 1
        %p3892 = scmp.lt.s32.totalorder %s3889, 31
        %s3893 = scalar_select %p3892, %s3889, 31
        %s3894 = smul.addr %s3891, 32
        %s3895 = sadd.s32 %s3893, %s3894
        %s3896 = smul.addr %s3895, 8
        %s3897 = scalar_lea.vmem %s13, %s3896
        %s3898 = smul.u32 32, %s41
        %p3899 = scmp.lt.s32.totalorder %s42, 1
        %s3900 = scalar_select %p3899, %s42, 1
        %p3901 = scmp.lt.s32.totalorder %s3898, 31
        %s3902 = scalar_select %p3901, %s3898, 31
        %s3903 = smul.addr %s3900, 32
        %s3904 = sadd.s32 %s3902, %s3903
        %s3905 = smul.addr %s3904, 8
        %s3906 = scalar_lea.vmem %s14, %s3905
        %s3907 = smul.u32 32, %s41
        %p3908 = scmp.lt.s32.totalorder %s42, 1
        %s3909 = scalar_select %p3908, %s42, 1
        %p3910 = scmp.lt.s32.totalorder %s3907, 31
        %s3911 = scalar_select %p3910, %s3907, 31
        %s3912 = smul.addr %s3909, 32
        %s3913 = sadd.s32 %s3911, %s3912
        %s3914 = smul.addr %s3913, 8
        %s3915 = scalar_lea.vmem %s15, %s3914
        %s3916 = smul.u32 32, %s41
        %p3917 = scmp.lt.s32.totalorder %s42, 1
        %s3918 = scalar_select %p3917, %s42, 1
        %p3919 = scmp.lt.s32.totalorder %s3916, 31
        %s3920 = scalar_select %p3919, %s3916, 31
        %s3921 = smul.addr %s3918, 32
        %s3922 = sadd.s32 %s3920, %s3921
        %s3923 = smul.addr %s3922, 8
        %s3924 = scalar_lea.vmem %s16, %s3923
        %s3925 = smul.u32 32, %s41
        %p3926 = scmp.lt.s32.totalorder %s42, 1
        %s3927 = scalar_select %p3926, %s42, 1
        %p3928 = scmp.lt.s32.totalorder %s3925, 31
        %s3929 = scalar_select %p3928, %s3925, 31
        %s3930 = smul.addr %s3927, 32
        %s3931 = sadd.s32 %s3929, %s3930
        %s3932 = smul.addr %s3931, 8
        %s3933 = scalar_lea.vmem %s17, %s3932
        // Predicated region
        $region109: #{_mimo_heads_core.1} parent=67 // pred_check
          %p3934 = pneg %p338
        $region110: #{_mimo_heads_core.1} parent=67 // pred_check_branch
          %3936 = sbr.rel (%p3934) target = $region112
        $region111: #{_mimo_heads_core.1} parent=67 // pred_region
          %s3937 = smul.u32 32, %s41
        $region112: #{_mimo_heads_core.1} parent=67 // pred_fallthru
          _
        // Predicated region
        $region113: #{_mimo_heads_core.1} parent=67 // pred_check
          %p3938 = pneg %p366
        $region114: #{_mimo_heads_core.1} parent=67 // pred_check_branch
          %3940 = sbr.rel (%p3938) target = $region116
        $region115: #{_mimo_heads_core.1} parent=67 // pred_region
          %s3941 = smul.u32 32, %s41
        $region116: #{_mimo_heads_core.1} parent=67 // pred_fallthru
          _
        // Predicated region
        $region117: #{_mimo_heads_core.1} parent=67 // pred_check
          %p3942 = pneg %p394
        $region118: #{_mimo_heads_core.1} parent=67 // pred_check_branch
          %3944 = sbr.rel (%p3942) target = $region120
        $region119: #{_mimo_heads_core.1} parent=67 // pred_region
          %s3945 = smul.u32 32, %s41
        $region120: #{_mimo_heads_core.1} parent=67 // pred_fallthru
          _
        // Predicated region
        $region121: #{_mimo_heads_core.1} parent=67 // pred_check
          %p3946 = pneg %p422
        $region122: #{_mimo_heads_core.1} parent=67 // pred_check_branch
          %3948 = sbr.rel (%p3946) target = $region124
        $region123: #{_mimo_heads_core.1} parent=67 // pred_region
          %s3949 = smul.u32 32, %s41
        $region124: #{_mimo_heads_core.1} parent=67 // pred_fallthru
          _
        // Predicated region
        $region125: #{_mimo_heads_core.1} parent=67 // pred_check
          %p3950 = pneg %p450
        $region126: #{_mimo_heads_core.1} parent=67 // pred_check_branch
          %3952 = sbr.rel (%p3950) target = $region128
        $region127: #{_mimo_heads_core.1} parent=67 // pred_region
          %s3953 = smul.u32 32, %s41
        $region128: #{_mimo_heads_core.1} parent=67 // pred_fallthru
          _
        // Predicated region
        $region129: #{_mimo_heads_core.1} parent=67 // pred_check
          %p3954 = pneg %p478
        $region130: #{_mimo_heads_core.1} parent=67 // pred_check_branch
          %3956 = sbr.rel (%p3954) target = $region132
        $region131: #{_mimo_heads_core.1} parent=67 // pred_region
          %s3957 = smul.u32 32, %s41
        $region132: #{_mimo_heads_core.1} parent=67 // pred_fallthru
          _
      $region68: #{_mimo_heads_core.1} parent=5 // pred_fallthru
        _
      %p3958 = scmp.le.s32.totalorder 2, %s32
      // Predicated region
      $region133: #{_mimo_heads_core.1} parent=5 // pred_check
        %p3959 = pneg %p3958
      $region134: #{_mimo_heads_core.1} parent=5 // pred_check_branch
        %3961 = sbr.rel (%p3959) target = $region136
      $region135: #{_mimo_heads_core.1} parent=5 // pred_region
        %s3962 = ssub.s32 %s32, 2
        // Predicated region
        $region137: #{_mimo_heads_core.1} parent=135 // pred_check
          %p3963 = pneg %p344
        $region138: #{_mimo_heads_core.1} parent=135 // pred_check_branch
          %3965 = sbr.rel (%p3963) target = $region140
        $region139: #{_mimo_heads_core.1} parent=135 // pred_region
          %s3966 = smul.u32 32, %s43
          %p3967 = scmp.lt.s32.totalorder %s44, 1
          %s3968 = scalar_select %p3967, %s44, 1
          %p3969 = scmp.lt.s32.totalorder %s3966, 31
          %s3970 = scalar_select %p3969, %s3966, 31
          %s3971 = smul.addr %s3968, 32
          %s3972 = sadd.s32 %s3970, %s3971
          %s3973 = smul.addr %s3972, 8
          %s3974 = scalar_lea.vmem %s12, %s3973
        $region140: #{_mimo_heads_core.1} parent=135 // pred_fallthru
          _
        // Predicated region
        $region141: #{_mimo_heads_core.1} parent=135 // pred_check
          %p3975 = pneg %p372
        $region142: #{_mimo_heads_core.1} parent=135 // pred_check_branch
          %3977 = sbr.rel (%p3975) target = $region144
        $region143: #{_mimo_heads_core.1} parent=135 // pred_region
          %s3978 = smul.u32 32, %s43
          %p3979 = scmp.lt.s32.totalorder %s44, 1
          %s3980 = scalar_select %p3979, %s44, 1
          %p3981 = scmp.lt.s32.totalorder %s3978, 31
          %s3982 = scalar_select %p3981, %s3978, 31
          %s3983 = smul.addr %s3980, 32
          %s3984 = sadd.s32 %s3982, %s3983
          %s3985 = smul.addr %s3984, 8
          %s3986 = scalar_lea.vmem %s13, %s3985
        $region144: #{_mimo_heads_core.1} parent=135 // pred_fallthru
          _
        // Predicated region
        $region145: #{_mimo_heads_core.1} parent=135 // pred_check
          %p3987 = pneg %p400
        $region146: #{_mimo_heads_core.1} parent=135 // pred_check_branch
          %3989 = sbr.rel (%p3987) target = $region148
        $region147: #{_mimo_heads_core.1} parent=135 // pred_region
          %s3990 = smul.u32 32, %s43
          %p3991 = scmp.lt.s32.totalorder %s44, 1
          %s3992 = scalar_select %p3991, %s44, 1
          %p3993 = scmp.lt.s32.totalorder %s3990, 31
          %s3994 = scalar_select %p3993, %s3990, 31
          %s3995 = smul.addr %s3992, 32
          %s3996 = sadd.s32 %s3994, %s3995
          %s3997 = smul.addr %s3996, 8
          %s3998 = scalar_lea.vmem %s14, %s3997
        $region148: #{_mimo_heads_core.1} parent=135 // pred_fallthru
          _
        // Predicated region
        $region149: #{_mimo_heads_core.1} parent=135 // pred_check
          %p3999 = pneg %p428
        $region150: #{_mimo_heads_core.1} parent=135 // pred_check_branch
          %4001 = sbr.rel (%p3999) target = $region152
        $region151: #{_mimo_heads_core.1} parent=135 // pred_region
          %s4002 = smul.u32 32, %s43
          %p4003 = scmp.lt.s32.totalorder %s44, 1
          %s4004 = scalar_select %p4003, %s44, 1
          %p4005 = scmp.lt.s32.totalorder %s4002, 31
          %s4006 = scalar_select %p4005, %s4002, 31
          %s4007 = smul.addr %s4004, 32
          %s4008 = sadd.s32 %s4006, %s4007
          %s4009 = smul.addr %s4008, 8
          %s4010 = scalar_lea.vmem %s15, %s4009
        $region152: #{_mimo_heads_core.1} parent=135 // pred_fallthru
          _
        // Predicated region
        $region153: #{_mimo_heads_core.1} parent=135 // pred_check
          %p4011 = pneg %p456
        $region154: #{_mimo_heads_core.1} parent=135 // pred_check_branch
          %4013 = sbr.rel (%p4011) target = $region156
        $region155: #{_mimo_heads_core.1} parent=135 // pred_region
          %s4014 = smul.u32 32, %s43
          %p4015 = scmp.lt.s32.totalorder %s44, 1
          %s4016 = scalar_select %p4015, %s44, 1
          %p4017 = scmp.lt.s32.totalorder %s4014, 31
          %s4018 = scalar_select %p4017, %s4014, 31
          %s4019 = smul.addr %s4016, 32
          %s4020 = sadd.s32 %s4018, %s4019
          %s4021 = smul.addr %s4020, 8
          %s4022 = scalar_lea.vmem %s16, %s4021
        $region156: #{_mimo_heads_core.1} parent=135 // pred_fallthru
          _
        // Predicated region
        $region157: #{_mimo_heads_core.1} parent=135 // pred_check
          %p4023 = pneg %p484
        $region158: #{_mimo_heads_core.1} parent=135 // pred_check_branch
          %4025 = sbr.rel (%p4023) target = $region160
        $region159: #{_mimo_heads_core.1} parent=135 // pred_region
          %s4026 = smul.u32 32, %s43
          %p4027 = scmp.lt.s32.totalorder %s44, 1
          %s4028 = scalar_select %p4027, %s44, 1
          %p4029 = scmp.lt.s32.totalorder %s4026, 31
          %s4030 = scalar_select %p4029, %s4026, 31
          %s4031 = smul.addr %s4028, 32
          %s4032 = sadd.s32 %s4030, %s4031
          %s4033 = smul.addr %s4032, 8
          %s4034 = scalar_lea.vmem %s17, %s4033
        $region160: #{_mimo_heads_core.1} parent=135 // pred_fallthru
          _
      $region136: #{_mimo_heads_core.1} parent=5 // pred_fallthru
        _
    $region6: #{_mimo_heads_core.1} parent=1 // loop_footer
      %s36 = sadd.s32 1, %s32
    $region7: #{_mimo_heads_core.1} parent=1 // loop_footer_branch
      %31 = sbr.rel target = $region3
    $region8: #{_mimo_heads_core.1} parent=1 // loop_exit
      _
    %4035 = vsyncpa [#allocation3], 1
    %s4036 = scalar_lea.sflag [#allocation3], 1
    %4037 = vsyncpa %s4036, 1
    %4038 = vsyncpa [#allocation5], 1
    %4039 = vsyncpa [#allocation8], 1
    %4040 = vsyncpa [#allocation11], 1
    %4041 = vsyncpa [#allocation14], 1
    %4042 = vsyncpa [#allocation17], 1

</llo_original>
